<compile_context>
chip_gen: v6e
topology: v6e:2x2x1
jax: 0.10.0
libtpu: 0.0.40
codegen_flags: <defaults>
</compile_context>

<pallas_src>
import functools
import math

import jax
import jax.numpy as jnp
from jax.experimental import pallas as pl
from jax.experimental.pallas import tpu as pltpu


# ------------------------------ shared math ---------------------------------

def _gelu_tanh(y):
    # tanh-approx GELU (HF "gelu_new"); tanh rides the EUP slot in-kernel.
    return 0.5 * y * (1.0 + jnp.tanh(
        0.7978845608028654 * (y + 0.044715 * y * y * y)))


def _layer_norm(y, g, b, eps=1e-12):
    mean = jnp.mean(y, axis=-1, keepdims=True)
    var = jnp.mean((y - mean) ** 2, axis=-1, keepdims=True)
    return (y - mean) * jax.lax.rsqrt(var + eps) * g + b


# --------------------------- fused Pallas kernel -----------------------------

def _encoder_fused_kernel(we_ref, ptt_ref, eg_ref, eb_ref, mask_ref,
                          wqkv_ref, bqkv_ref, wo_ref, bo_ref,
                          ln1g_ref, ln1b_ref, w1_ref, fb1_ref,
                          w2_ref, fb2_ref, ln2g_ref, ln2b_ref,
                          o_ref, *, n_layers, n_heads, head_dim, eps):
    """One grid step = one batch element, full BERT-mini forward in VMEM."""
    H = n_heads * head_dim
    scale = 1.0 / math.sqrt(head_dim)

    # ---- embeddings: word + (pos + type), then LayerNorm (fused) ----
    x = we_ref[0].astype(jnp.float32) + ptt_ref[0]           # (S, H)
    x = _layer_norm(x, eg_ref[...], eb_ref[...], eps)

    # additive attention mask, broadcast over query rows: (1, S)
    m_add = (1.0 - mask_ref[0]) * -10000.0

    for l in range(n_layers):
        last = (l == n_layers - 1)
        # Last layer: only the [CLS] query row is needed downstream.
        nq = 1 if last else x.shape[0]

        # ---- fused QKV projection (single matmul, one weight slab) ----
        qkv = (jnp.dot(x, wqkv_ref[l], preferred_element_type=jnp.float32)
               + bqkv_ref[l])                                  # (S, 3H)

        # ---- multi-head attention; head merge folded into out-projection ----
        wo = wo_ref[l]                                         # (H, H)
        attn = jnp.zeros((nq, H), jnp.float32)
        for h in range(n_heads):
            lo = h * head_dim
            q = qkv[:nq, lo:lo + head_dim] * scale             # (nq, hd)
            k = qkv[:, H + lo:H + lo + head_dim]               # (S, hd)
            v = qkv[:, 2 * H + lo:2 * H + lo + head_dim]       # (S, hd)
            s = jnp.dot(q, k.T, preferred_element_type=jnp.float32) + m_add
            s = s - jnp.max(s, axis=-1, keepdims=True)
            p = jnp.exp(s)
            p = p * pl.reciprocal(jnp.sum(p, axis=-1, keepdims=True),
                                  approx=True)
            ctx_h = jnp.dot(p, v, preferred_element_type=jnp.float32)
            attn = attn + jnp.dot(ctx_h, wo[lo:lo + head_dim, :],
                                  preferred_element_type=jnp.float32)

        # ---- output-proj bias + residual + LayerNorm (fused) ----
        y = _layer_norm(attn + bo_ref[l] + x[:nq], ln1g_ref[l], ln1b_ref[l], eps)

        # ---- FFN: bias+GELU fused; down-proj + residual + LayerNorm fused ----
        hmid = (jnp.dot(y, w1_ref[l], preferred_element_type=jnp.float32)
                + fb1_ref[l])
        hmid = _gelu_tanh(hmid)
        y2 = (jnp.dot(hmid, w2_ref[l], preferred_element_type=jnp.float32)
              + fb2_ref[l] + y)
        x = _layer_norm(y2, ln2g_ref[l], ln2b_ref[l], eps)

    # x is (1, H) after the last (CLS-only) layer.
    o_ref[0] = x[:1].astype(o_ref.dtype)


def _bcast_spec(shape):
    """Full-array block whose index map is constant -> stays resident in VMEM."""
    nd = len(shape)
    return pl.BlockSpec(shape, lambda b: (0,) * nd)


def relation_encoder_forward(params, input_ids, attn_mask):
    """Mirrors RelationEncoder.forward: encoder(input_ids, attn_mask)[0][:, 0, :]."""
    B, S = input_ids.shape
    H = params["word_emb"].shape[1]
    n_heads = params["n_heads"]
    n_layers = params["n_layers"]
    head_dim = H // n_heads
    H3 = 3 * H
    FFN = params["w1"].shape[-1]

    # Embedding-table gather stays in XLA (cheap glue); everything else is
    # done inside the single fused kernel.
    we = params["word_emb"][input_ids]                                    # (B,S,H)
    ptt = (params["pos_emb"][:S] + params["type_emb"][0][None, :])[None]  # (1,S,H)
    mask3 = attn_mask.astype(jnp.float32).reshape(B, 1, S)                # (B,1,S)

    kernel = functools.partial(_encoder_fused_kernel, n_layers=n_layers,
                               n_heads=n_heads, head_dim=head_dim, eps=1e-12)

    in_specs = [
        pl.BlockSpec((1, S, H), lambda b: (b, 0, 0)),    # word embeddings (per batch)
        _bcast_spec((1, S, H)),                          # pos + type embeddings
        _bcast_spec((1, H)),                             # emb LN gamma
        _bcast_spec((1, H)),                             # emb LN beta
        pl.BlockSpec((1, 1, S), lambda b: (b, 0, 0)),    # attention mask (per batch)
        _bcast_spec((n_layers, H, H3)),                  # wqkv
        _bcast_spec((n_layers, 1, H3)),                  # bqkv
        _bcast_spec((n_layers, H, H)),                   # wo
        _bcast_spec((n_layers, 1, H)),                   # bo
        _bcast_spec((n_layers, 1, H)),                   # ln1 gamma
        _bcast_spec((n_layers, 1, H)),                   # ln1 beta
        _bcast_spec((n_layers, H, FFN)),                 # w1
        _bcast_spec((n_layers, 1, FFN)),                 # b1
        _bcast_spec((n_layers, FFN, H)),                 # w2
        _bcast_spec((n_layers, 1, H)),                   # b2
        _bcast_spec((n_layers, 1, H)),                   # ln2 gamma
        _bcast_spec((n_layers, 1, H)),                   # ln2 beta
    ]

    out = pl.pallas_call(
        kernel,
        out_shape=jax.ShapeDtypeStruct((B, 1, H), jnp.float32),
        grid_spec=pltpu.PrefetchScalarGridSpec(
            num_scalar_prefetch=0,
            grid=(B,),
            in_specs=in_specs,
            out_specs=pl.BlockSpec((1, 1, H), lambda b: (b, 0, 0)),
        ),
        compiler_params=pltpu.CompilerParams(
            dimension_semantics=("parallel",),   # feeds both TCs on v7x
        ),
    )(we, ptt, params["emb_ln_g"], params["emb_ln_b"], mask3,
      params["wqkv"], params["bqkv"], params["wo"], params["bo"],
      params["ln1_g"], params["ln1_b"], params["w1"], params["b1"],
      params["w2"], params["b2"], params["ln2_g"], params["ln2_b"])

    # relation_output[:, 0, :].squeeze(dim=1) -> (B, H) [CLS] vector
    return out[:, 0, :]


# ---------------------- pure-JAX reference (validation) ----------------------

def relation_encoder_reference(params, input_ids, attn_mask):
    B, S = input_ids.shape
    H = params["word_emb"].shape[1]
    nh = params["n_heads"]
    hd = H // nh

    x = (params["word_emb"][input_ids]
         + params["pos_emb"][:S][None]
         + params["type_emb"][0][None, None])
    x = _layer_norm(x, params["emb_ln_g"], params["emb_ln_b"])
    bias = (1.0 - attn_mask.astype(jnp.float32))[:, None, None, :] * -10000.0

    for l in range(params["n_layers"]):
        qkv = x @ params["wqkv"][l] + params["bqkv"][l]
        q, k, v = jnp.split(qkv, 3, axis=-1)
        q = q.reshape(B, S, nh, hd).transpose(0, 2, 1, 3)
        k = k.reshape(B, S, nh, hd).transpose(0, 2, 1, 3)
        v = v.reshape(B, S, nh, hd).transpose(0, 2, 1, 3)
        s = jnp.einsum("bhqd,bhkd->bhqk", q, k) / math.sqrt(hd) + bias
        p = jax.nn.softmax(s, axis=-1)
        ctx = jnp.einsum("bhqk,bhkd->bhqd", p, v)
        ctx = ctx.transpose(0, 2, 1, 3).reshape(B, S, H)
        x = _layer_norm(ctx @ params["wo"][l] + params["bo"][l] + x,
                        params["ln1_g"][l], params["ln1_b"][l])
        h1 = _gelu_tanh(x @ params["w1"][l] + params["b1"][l])
        x = _layer_norm(h1 @ params["w2"][l] + params["b2"][l] + x,
                        params["ln2_g"][l], params["ln2_b"][l])
    return x[:, 0, :]


# ------------------------ synthetic BERT-mini weights ------------------------

def init_params(key, *, vocab=50, max_pos=64, type_vocab=2, hidden=32,
                n_layers=2, n_heads=4, ffn=64):
    keys = iter(jax.random.split(key, 8 + 16 * n_layers))

    def nrm(shape, scale=0.02):
        return (scale * jax.random.normal(next(keys), shape)).astype(jnp.float32)

    p = {
        "n_heads": n_heads,
        "n_layers": n_layers,
        "word_emb": nrm((vocab, hidden)),
        "pos_emb": nrm((max_pos, hidden)),
        "type_emb": nrm((type_vocab, hidden)),
        "emb_ln_g": 1.0 + nrm((1, hidden)),
        "emb_ln_b": nrm((1, hidden)),
    }

    def stack(fn):
        return jnp.stack([fn() for _ in range(n_layers)])

    p["wqkv"] = stack(lambda: jnp.concatenate(
        [nrm((hidden, hidden)) for _ in range(3)], axis=1))      # (L, H, 3H)
    p["bqkv"] = stack(lambda: nrm((1, 3 * hidden)))              # (L, 1, 3H)
    p["wo"] = stack(lambda: nrm((hidden, hidden)))               # (L, H, H)
    p["bo"] = stack(lambda: nrm((1, hidden)))                    # (L, 1, H)
    p["ln1_g"] = stack(lambda: 1.0 + nrm((1, hidden)))           # (L, 1, H)
    p["ln1_b"] = stack(lambda: nrm((1, hidden)))                 # (L, 1, H)
    p["w1"] = stack(lambda: nrm((hidden, ffn)))                  # (L, H, F)
    p["b1"] = stack(lambda: nrm((1, ffn)))                       # (L, 1, F)
    p["w2"] = stack(lambda: nrm((ffn, hidden)))                  # (L, F, H)
    p["b2"] = stack(lambda: nrm((1, hidden)))                    # (L, 1, H)
    p["ln2_g"] = stack(lambda: 1.0 + nrm((1, hidden)))           # (L, 1, H)
    p["ln2_b"] = stack(lambda: nrm((1, hidden)))                 # (L, 1, H)
    return p


# ---------------------------------- main -------------------------------------

if __name__ == "__main__":
    key = jax.random.PRNGKey(0)
    k_param, k_ids = jax.random.split(key)

    B, S = 2, 8
    VOCAB, HIDDEN, N_LAYERS, N_HEADS, FFN = 50, 32, 2, 4, 64

    params = init_params(k_param, vocab=VOCAB, hidden=HIDDEN,
                         n_layers=N_LAYERS, n_heads=N_HEADS, ffn=FFN)

    input_ids = jax.random.randint(k_ids, (B, S), 0, VOCAB, dtype=jnp.int32)
    # Second sequence has two padding positions masked out.
    attn_mask = jnp.array([[1, 1, 1, 1, 1, 1, 1, 1],
                           [1, 1, 1, 1, 1, 1, 0, 0]], dtype=jnp.int32)

    out = relation_encoder_forward(params, input_ids, attn_mask)
    out = jax.block_until_ready(out)
    assert out.shape == (B, HIDDEN) and out.dtype == jnp.float32

    # Validate the fused kernel against the pure-JAX reference forward.
    ref = relation_encoder_reference(params, input_ids, attn_mask)
    err = float(jnp.max(jnp.abs(out - ref)))
    assert err < 2e-2, f"kernel/reference mismatch: max abs err {err}"

    print("KERNEL_OK")
</pallas_src>

<mosaic_0001>
module attributes {stable_mosaic.version = 11 : i64} {
  func.func @_encoder_fused_kernel(%arg0: i32, %arg1: memref<1x8x32xf32, #tpu.memory_space<vmem>>, %arg2: memref<1x8x32xf32, #tpu.memory_space<vmem>>, %arg3: memref<1x32xf32, #tpu.memory_space<vmem>>, %arg4: memref<1x32xf32, #tpu.memory_space<vmem>>, %arg5: memref<1x1x8xf32, #tpu.memory_space<vmem>>, %arg6: memref<2x32x96xf32, #tpu.memory_space<vmem>>, %arg7: memref<2x1x96xf32, #tpu.memory_space<vmem>>, %arg8: memref<2x32x32xf32, #tpu.memory_space<vmem>>, %arg9: memref<2x1x32xf32, #tpu.memory_space<vmem>>, %arg10: memref<2x1x32xf32, #tpu.memory_space<vmem>>, %arg11: memref<2x1x32xf32, #tpu.memory_space<vmem>>, %arg12: memref<2x32x64xf32, #tpu.memory_space<vmem>>, %arg13: memref<2x1x64xf32, #tpu.memory_space<vmem>>, %arg14: memref<2x64x32xf32, #tpu.memory_space<vmem>>, %arg15: memref<2x1x32xf32, #tpu.memory_space<vmem>>, %arg16: memref<2x1x32xf32, #tpu.memory_space<vmem>>, %arg17: memref<2x1x32xf32, #tpu.memory_space<vmem>>, %arg18: memref<1x1x32xf32, #tpu.memory_space<vmem>>) attributes {dimension_semantics = [#tpu.dimension_semantics<parallel>], iteration_bounds = array<i64: 2>, scalar_prefetch = 0 : i64, scratch_operands = 0 : i64, tpu.core_type = #tpu.core_type<tc>, window_params = [{transform_indices = @transform_0, window_bounds = array<i64: 1, 8, 32>}, {pipeline_mode = #tpu.pipeline_mode<synchronous>, transform_indices = @transform_1, window_bounds = array<i64: 1, 8, 32>}, {pipeline_mode = #tpu.pipeline_mode<synchronous>, transform_indices = @transform_2, window_bounds = array<i64: 1, 32>}, {pipeline_mode = #tpu.pipeline_mode<synchronous>, transform_indices = @transform_3, window_bounds = array<i64: 1, 32>}, {transform_indices = @transform_4, window_bounds = array<i64: 1, 1, 8>}, {pipeline_mode = #tpu.pipeline_mode<synchronous>, transform_indices = @transform_5, window_bounds = array<i64: 2, 32, 96>}, {pipeline_mode = #tpu.pipeline_mode<synchronous>, transform_indices = @transform_6, window_bounds = array<i64: 2, 1, 96>}, {pipeline_mode = #tpu.pipeline_mode<synchronous>, transform_indices = @transform_7, window_bounds = array<i64: 2, 32, 32>}, {pipeline_mode = #tpu.pipeline_mode<synchronous>, transform_indices = @transform_8, window_bounds = array<i64: 2, 1, 32>}, {pipeline_mode = #tpu.pipeline_mode<synchronous>, transform_indices = @transform_9, window_bounds = array<i64: 2, 1, 32>}, {pipeline_mode = #tpu.pipeline_mode<synchronous>, transform_indices = @transform_10, window_bounds = array<i64: 2, 1, 32>}, {pipeline_mode = #tpu.pipeline_mode<synchronous>, transform_indices = @transform_11, window_bounds = array<i64: 2, 32, 64>}, {pipeline_mode = #tpu.pipeline_mode<synchronous>, transform_indices = @transform_12, window_bounds = array<i64: 2, 1, 64>}, {pipeline_mode = #tpu.pipeline_mode<synchronous>, transform_indices = @transform_13, window_bounds = array<i64: 2, 64, 32>}, {pipeline_mode = #tpu.pipeline_mode<synchronous>, transform_indices = @transform_14, window_bounds = array<i64: 2, 1, 32>}, {pipeline_mode = #tpu.pipeline_mode<synchronous>, transform_indices = @transform_15, window_bounds = array<i64: 2, 1, 32>}, {pipeline_mode = #tpu.pipeline_mode<synchronous>, transform_indices = @transform_16, window_bounds = array<i64: 2, 1, 32>}, {transform_indices = @transform_17, window_bounds = array<i64: 1, 1, 32>}]} {
    %c0 = arith.constant 0 : index
    %c0_0 = arith.constant 0 : index
    %c0_1 = arith.constant 0 : index
    %0 = vector.load %arg1[%c0, %c0_0, %c0_1] : memref<1x8x32xf32, #tpu.memory_space<vmem>>, vector<1x8x32xf32>
    %1 = vector.shape_cast %0 : vector<1x8x32xf32> to vector<8x32xf32>
    %c0_2 = arith.constant 0 : index
    %c0_3 = arith.constant 0 : index
    %c0_4 = arith.constant 0 : index
    %2 = vector.load %arg2[%c0_2, %c0_3, %c0_4] : memref<1x8x32xf32, #tpu.memory_space<vmem>>, vector<1x8x32xf32>
    %3 = vector.shape_cast %2 : vector<1x8x32xf32> to vector<8x32xf32>
    %4 = arith.addf %1, %3 : vector<8x32xf32>
    %c0_5 = arith.constant 0 : index
    %c0_6 = arith.constant 0 : index
    %5 = vector.load %arg3[%c0_5, %c0_6] : memref<1x32xf32, #tpu.memory_space<vmem>>, vector<1x32xf32>
    %c0_7 = arith.constant 0 : index
    %c0_8 = arith.constant 0 : index
    %6 = vector.load %arg4[%c0_7, %c0_8] : memref<1x32xf32, #tpu.memory_space<vmem>>, vector<1x32xf32>
    %cst = arith.constant dense<0.000000e+00> : vector<8xf32>
    %7 = vector.multi_reduction <add>, %4, %cst [1] : vector<8x32xf32> to vector<8xf32>
    %8 = vector.shape_cast %7 : vector<8xf32> to vector<8x1xf32>
    %cst_9 = arith.constant 3.200000e+01 : f32
    %9 = vector.broadcast %cst_9 : f32 to vector<8x1xf32>
    %10 = arith.divf %8, %9 : vector<8x1xf32>
    %11 = vector.broadcast %10 : vector<8x1xf32> to vector<8x32xf32>
    %12 = arith.subf %4, %11 : vector<8x32xf32>
    %13 = arith.mulf %12, %12 : vector<8x32xf32>
    %cst_10 = arith.constant dense<0.000000e+00> : vector<8xf32>
    %14 = vector.multi_reduction <add>, %13, %cst_10 [1] : vector<8x32xf32> to vector<8xf32>
    %15 = vector.shape_cast %14 : vector<8xf32> to vector<8x1xf32>
    %cst_11 = arith.constant 3.200000e+01 : f32
    %16 = vector.broadcast %cst_11 : f32 to vector<8x1xf32>
    %17 = arith.divf %15, %16 : vector<8x1xf32>
    %18 = vector.broadcast %10 : vector<8x1xf32> to vector<8x32xf32>
    %19 = arith.subf %4, %18 : vector<8x32xf32>
    %cst_12 = arith.constant 9.99999996E-13 : f32
    %20 = vector.broadcast %cst_12 : f32 to vector<8x1xf32>
    %21 = arith.addf %17, %20 : vector<8x1xf32>
    %22 = math.rsqrt %21 : vector<8x1xf32>
    %23 = vector.broadcast %22 : vector<8x1xf32> to vector<8x32xf32>
    %24 = arith.mulf %19, %23 : vector<8x32xf32>
    %25 = vector.broadcast %5 : vector<1x32xf32> to vector<8x32xf32>
    %26 = arith.mulf %24, %25 : vector<8x32xf32>
    %27 = vector.broadcast %6 : vector<1x32xf32> to vector<8x32xf32>
    %28 = arith.addf %26, %27 : vector<8x32xf32>
    %c0_13 = arith.constant 0 : index
    %c0_14 = arith.constant 0 : index
    %c0_15 = arith.constant 0 : index
    %29 = vector.load %arg5[%c0_13, %c0_14, %c0_15] : memref<1x1x8xf32, #tpu.memory_space<vmem>>, vector<1x1x8xf32>
    %30 = vector.shape_cast %29 : vector<1x1x8xf32> to vector<1x8xf32>
    %cst_16 = arith.constant 1.000000e+00 : f32
    %31 = vector.broadcast %cst_16 : f32 to vector<1x8xf32>
    %32 = arith.subf %31, %30 : vector<1x8xf32>
    %cst_17 = arith.constant -1.000000e+04 : f32
    %33 = vector.broadcast %cst_17 : f32 to vector<1x8xf32>
    %34 = arith.mulf %32, %33 : vector<1x8xf32>
    %c0_18 = arith.constant 0 : index
    %c0_19 = arith.constant 0 : index
    %c0_20 = arith.constant 0 : index
    %35 = vector.load %arg6[%c0_18, %c0_19, %c0_20] : memref<2x32x96xf32, #tpu.memory_space<vmem>>, vector<1x32x96xf32>
    %36 = vector.shape_cast %35 : vector<1x32x96xf32> to vector<32x96xf32>
    %cst_21 = arith.constant dense<0.000000e+00> : vector<8x96xf32>
    %37 = tpu.matmul %28, %36, %cst_21 {dimension_numbers = #tpu.dot_dimension_numbers<[1], [0], [0], [1], [0, 0, 1, 1], [], []>} : vector<8x32xf32>, vector<32x96xf32>, vector<8x96xf32> -> vector<8x96xf32>
    %c0_22 = arith.constant 0 : index
    %c0_23 = arith.constant 0 : index
    %c0_24 = arith.constant 0 : index
    %38 = vector.load %arg7[%c0_22, %c0_23, %c0_24] : memref<2x1x96xf32, #tpu.memory_space<vmem>>, vector<1x1x96xf32>
    %39 = vector.shape_cast %38 : vector<1x1x96xf32> to vector<1x96xf32>
    %40 = vector.broadcast %39 : vector<1x96xf32> to vector<8x96xf32>
    %41 = arith.addf %37, %40 : vector<8x96xf32>
    %c0_25 = arith.constant 0 : index
    %c0_26 = arith.constant 0 : index
    %c0_27 = arith.constant 0 : index
    %42 = vector.load %arg8[%c0_25, %c0_26, %c0_27] : memref<2x32x32xf32, #tpu.memory_space<vmem>>, vector<1x32x32xf32>
    %43 = vector.shape_cast %42 : vector<1x32x32xf32> to vector<32x32xf32>
    %cst_28 = arith.constant 0.000000e+00 : f32
    %44 = vector.broadcast %cst_28 : f32 to vector<8x32xf32>
    %45 = vector.extract_strided_slice %41 {offsets = [0, 0], sizes = [8, 8], strides = [1, 1]} : vector<8x96xf32> to vector<8x8xf32>
    %cst_29 = arith.constant 0.353553385 : f32
    %46 = vector.broadcast %cst_29 : f32 to vector<8x8xf32>
    %47 = arith.mulf %45, %46 : vector<8x8xf32>
    %48 = vector.extract_strided_slice %41 {offsets = [0, 32], sizes = [8, 8], strides = [1, 1]} : vector<8x96xf32> to vector<8x8xf32>
    %49 = vector.extract_strided_slice %41 {offsets = [0, 64], sizes = [8, 8], strides = [1, 1]} : vector<8x96xf32> to vector<8x8xf32>
    %50 = tpu.transpose %48, [1, 0] : vector<8x8xf32> -> vector<8x8xf32>
    %cst_30 = arith.constant dense<0.000000e+00> : vector<8x8xf32>
    %51 = tpu.matmul %47, %50, %cst_30 {dimension_numbers = #tpu.dot_dimension_numbers<[1], [0], [0], [1], [0, 0, 1, 1], [], []>} : vector<8x8xf32>, vector<8x8xf32>, vector<8x8xf32> -> vector<8x8xf32>
    %52 = vector.broadcast %34 : vector<1x8xf32> to vector<8x8xf32>
    %53 = arith.addf %51, %52 : vector<8x8xf32>
    %cst_31 = arith.constant dense<0xFF800000> : vector<8xf32>
    %54 = vector.multi_reduction <maximumf>, %53, %cst_31 [1] : vector<8x8xf32> to vector<8xf32>
    %55 = vector.shape_cast %54 : vector<8xf32> to vector<8x1xf32>
    %56 = vector.broadcast %55 : vector<8x1xf32> to vector<8x8xf32>
    %57 = arith.subf %53, %56 : vector<8x8xf32>
    %58 = math.exp %57 : vector<8x8xf32>
    %cst_32 = arith.constant dense<0.000000e+00> : vector<8xf32>
    %59 = vector.multi_reduction <add>, %58, %cst_32 [1] : vector<8x8xf32> to vector<8xf32>
    %60 = vector.shape_cast %59 : vector<8xf32> to vector<8x1xf32>
    %61 = tpu.reciprocal %60 {approx = true} : vector<8x1xf32> -> vector<8x1xf32>
    %62 = vector.broadcast %61 : vector<8x1xf32> to vector<8x8xf32>
    %63 = arith.mulf %58, %62 : vector<8x8xf32>
    %cst_33 = arith.constant dense<0.000000e+00> : vector<8x8xf32>
    %64 = tpu.matmul %63, %49, %cst_33 {dimension_numbers = #tpu.dot_dimension_numbers<[1], [0], [0], [1], [0, 0, 1, 1], [], []>} : vector<8x8xf32>, vector<8x8xf32>, vector<8x8xf32> -> vector<8x8xf32>
    %65 = vector.extract_strided_slice %43 {offsets = [0, 0], sizes = [8, 32], strides = [1, 1]} : vector<32x32xf32> to vector<8x32xf32>
    %cst_34 = arith.constant dense<0.000000e+00> : vector<8x32xf32>
    %66 = tpu.matmul %64, %65, %cst_34 {dimension_numbers = #tpu.dot_dimension_numbers<[1], [0], [0], [1], [0, 0, 1, 1], [], []>} : vector<8x8xf32>, vector<8x32xf32>, vector<8x32xf32> -> vector<8x32xf32>
    %67 = arith.addf %44, %66 : vector<8x32xf32>
    %68 = vector.extract_strided_slice %41 {offsets = [0, 8], sizes = [8, 8], strides = [1, 1]} : vector<8x96xf32> to vector<8x8xf32>
    %cst_35 = arith.constant 0.353553385 : f32
    %69 = vector.broadcast %cst_35 : f32 to vector<8x8xf32>
    %70 = arith.mulf %68, %69 : vector<8x8xf32>
    %71 = vector.extract_strided_slice %41 {offsets = [0, 40], sizes = [8, 8], strides = [1, 1]} : vector<8x96xf32> to vector<8x8xf32>
    %72 = vector.extract_strided_slice %41 {offsets = [0, 72], sizes = [8, 8], strides = [1, 1]} : vector<8x96xf32> to vector<8x8xf32>
    %73 = tpu.transpose %71, [1, 0] : vector<8x8xf32> -> vector<8x8xf32>
    %cst_36 = arith.constant dense<0.000000e+00> : vector<8x8xf32>
    %74 = tpu.matmul %70, %73, %cst_36 {dimension_numbers = #tpu.dot_dimension_numbers<[1], [0], [0], [1], [0, 0, 1, 1], [], []>} : vector<8x8xf32>, vector<8x8xf32>, vector<8x8xf32> -> vector<8x8xf32>
    %75 = vector.broadcast %34 : vector<1x8xf32> to vector<8x8xf32>
    %76 = arith.addf %74, %75 : vector<8x8xf32>
    %cst_37 = arith.constant dense<0xFF800000> : vector<8xf32>
    %77 = vector.multi_reduction <maximumf>, %76, %cst_37 [1] : vector<8x8xf32> to vector<8xf32>
    %78 = vector.shape_cast %77 : vector<8xf32> to vector<8x1xf32>
    %79 = vector.broadcast %78 : vector<8x1xf32> to vector<8x8xf32>
    %80 = arith.subf %76, %79 : vector<8x8xf32>
    %81 = math.exp %80 : vector<8x8xf32>
    %cst_38 = arith.constant dense<0.000000e+00> : vector<8xf32>
    %82 = vector.multi_reduction <add>, %81, %cst_38 [1] : vector<8x8xf32> to vector<8xf32>
    %83 = vector.shape_cast %82 : vector<8xf32> to vector<8x1xf32>
    %84 = tpu.reciprocal %83 {approx = true} : vector<8x1xf32> -> vector<8x1xf32>
    %85 = vector.broadcast %84 : vector<8x1xf32> to vector<8x8xf32>
    %86 = arith.mulf %81, %85 : vector<8x8xf32>
    %cst_39 = arith.constant dense<0.000000e+00> : vector<8x8xf32>
    %87 = tpu.matmul %86, %72, %cst_39 {dimension_numbers = #tpu.dot_dimension_numbers<[1], [0], [0], [1], [0, 0, 1, 1], [], []>} : vector<8x8xf32>, vector<8x8xf32>, vector<8x8xf32> -> vector<8x8xf32>
    %88 = vector.extract_strided_slice %43 {offsets = [8, 0], sizes = [8, 32], strides = [1, 1]} : vector<32x32xf32> to vector<8x32xf32>
    %cst_40 = arith.constant dense<0.000000e+00> : vector<8x32xf32>
    %89 = tpu.matmul %87, %88, %cst_40 {dimension_numbers = #tpu.dot_dimension_numbers<[1], [0], [0], [1], [0, 0, 1, 1], [], []>} : vector<8x8xf32>, vector<8x32xf32>, vector<8x32xf32> -> vector<8x32xf32>
    %90 = arith.addf %67, %89 : vector<8x32xf32>
    %91 = vector.extract_strided_slice %41 {offsets = [0, 16], sizes = [8, 8], strides = [1, 1]} : vector<8x96xf32> to vector<8x8xf32>
    %cst_41 = arith.constant 0.353553385 : f32
    %92 = vector.broadcast %cst_41 : f32 to vector<8x8xf32>
    %93 = arith.mulf %91, %92 : vector<8x8xf32>
    %94 = vector.extract_strided_slice %41 {offsets = [0, 48], sizes = [8, 8], strides = [1, 1]} : vector<8x96xf32> to vector<8x8xf32>
    %95 = vector.extract_strided_slice %41 {offsets = [0, 80], sizes = [8, 8], strides = [1, 1]} : vector<8x96xf32> to vector<8x8xf32>
    %96 = tpu.transpose %94, [1, 0] : vector<8x8xf32> -> vector<8x8xf32>
    %cst_42 = arith.constant dense<0.000000e+00> : vector<8x8xf32>
    %97 = tpu.matmul %93, %96, %cst_42 {dimension_numbers = #tpu.dot_dimension_numbers<[1], [0], [0], [1], [0, 0, 1, 1], [], []>} : vector<8x8xf32>, vector<8x8xf32>, vector<8x8xf32> -> vector<8x8xf32>
    %98 = vector.broadcast %34 : vector<1x8xf32> to vector<8x8xf32>
    %99 = arith.addf %97, %98 : vector<8x8xf32>
    %cst_43 = arith.constant dense<0xFF800000> : vector<8xf32>
    %100 = vector.multi_reduction <maximumf>, %99, %cst_43 [1] : vector<8x8xf32> to vector<8xf32>
    %101 = vector.shape_cast %100 : vector<8xf32> to vector<8x1xf32>
    %102 = vector.broadcast %101 : vector<8x1xf32> to vector<8x8xf32>
    %103 = arith.subf %99, %102 : vector<8x8xf32>
    %104 = math.exp %103 : vector<8x8xf32>
    %cst_44 = arith.constant dense<0.000000e+00> : vector<8xf32>
    %105 = vector.multi_reduction <add>, %104, %cst_44 [1] : vector<8x8xf32> to vector<8xf32>
    %106 = vector.shape_cast %105 : vector<8xf32> to vector<8x1xf32>
    %107 = tpu.reciprocal %106 {approx = true} : vector<8x1xf32> -> vector<8x1xf32>
    %108 = vector.broadcast %107 : vector<8x1xf32> to vector<8x8xf32>
    %109 = arith.mulf %104, %108 : vector<8x8xf32>
    %cst_45 = arith.constant dense<0.000000e+00> : vector<8x8xf32>
    %110 = tpu.matmul %109, %95, %cst_45 {dimension_numbers = #tpu.dot_dimension_numbers<[1], [0], [0], [1], [0, 0, 1, 1], [], []>} : vector<8x8xf32>, vector<8x8xf32>, vector<8x8xf32> -> vector<8x8xf32>
    %111 = vector.extract_strided_slice %43 {offsets = [16, 0], sizes = [8, 32], strides = [1, 1]} : vector<32x32xf32> to vector<8x32xf32>
    %cst_46 = arith.constant dense<0.000000e+00> : vector<8x32xf32>
    %112 = tpu.matmul %110, %111, %cst_46 {dimension_numbers = #tpu.dot_dimension_numbers<[1], [0], [0], [1], [0, 0, 1, 1], [], []>} : vector<8x8xf32>, vector<8x32xf32>, vector<8x32xf32> -> vector<8x32xf32>
    %113 = arith.addf %90, %112 : vector<8x32xf32>
    %114 = vector.extract_strided_slice %41 {offsets = [0, 24], sizes = [8, 8], strides = [1, 1]} : vector<8x96xf32> to vector<8x8xf32>
    %cst_47 = arith.constant 0.353553385 : f32
    %115 = vector.broadcast %cst_47 : f32 to vector<8x8xf32>
    %116 = arith.mulf %114, %115 : vector<8x8xf32>
    %117 = vector.extract_strided_slice %41 {offsets = [0, 56], sizes = [8, 8], strides = [1, 1]} : vector<8x96xf32> to vector<8x8xf32>
    %118 = vector.extract_strided_slice %41 {offsets = [0, 88], sizes = [8, 8], strides = [1, 1]} : vector<8x96xf32> to vector<8x8xf32>
    %119 = tpu.transpose %117, [1, 0] : vector<8x8xf32> -> vector<8x8xf32>
    %cst_48 = arith.constant dense<0.000000e+00> : vector<8x8xf32>
    %120 = tpu.matmul %116, %119, %cst_48 {dimension_numbers = #tpu.dot_dimension_numbers<[1], [0], [0], [1], [0, 0, 1, 1], [], []>} : vector<8x8xf32>, vector<8x8xf32>, vector<8x8xf32> -> vector<8x8xf32>
    %121 = vector.broadcast %34 : vector<1x8xf32> to vector<8x8xf32>
    %122 = arith.addf %120, %121 : vector<8x8xf32>
    %cst_49 = arith.constant dense<0xFF800000> : vector<8xf32>
    %123 = vector.multi_reduction <maximumf>, %122, %cst_49 [1] : vector<8x8xf32> to vector<8xf32>
    %124 = vector.shape_cast %123 : vector<8xf32> to vector<8x1xf32>
    %125 = vector.broadcast %124 : vector<8x1xf32> to vector<8x8xf32>
    %126 = arith.subf %122, %125 : vector<8x8xf32>
    %127 = math.exp %126 : vector<8x8xf32>
    %cst_50 = arith.constant dense<0.000000e+00> : vector<8xf32>
    %128 = vector.multi_reduction <add>, %127, %cst_50 [1] : vector<8x8xf32> to vector<8xf32>
    %129 = vector.shape_cast %128 : vector<8xf32> to vector<8x1xf32>
    %130 = tpu.reciprocal %129 {approx = true} : vector<8x1xf32> -> vector<8x1xf32>
    %131 = vector.broadcast %130 : vector<8x1xf32> to vector<8x8xf32>
    %132 = arith.mulf %127, %131 : vector<8x8xf32>
    %cst_51 = arith.constant dense<0.000000e+00> : vector<8x8xf32>
    %133 = tpu.matmul %132, %118, %cst_51 {dimension_numbers = #tpu.dot_dimension_numbers<[1], [0], [0], [1], [0, 0, 1, 1], [], []>} : vector<8x8xf32>, vector<8x8xf32>, vector<8x8xf32> -> vector<8x8xf32>
    %134 = vector.extract_strided_slice %43 {offsets = [24, 0], sizes = [8, 32], strides = [1, 1]} : vector<32x32xf32> to vector<8x32xf32>
    %cst_52 = arith.constant dense<0.000000e+00> : vector<8x32xf32>
    %135 = tpu.matmul %133, %134, %cst_52 {dimension_numbers = #tpu.dot_dimension_numbers<[1], [0], [0], [1], [0, 0, 1, 1], [], []>} : vector<8x8xf32>, vector<8x32xf32>, vector<8x32xf32> -> vector<8x32xf32>
    %136 = arith.addf %113, %135 : vector<8x32xf32>
    %c0_53 = arith.constant 0 : index
    %c0_54 = arith.constant 0 : index
    %c0_55 = arith.constant 0 : index
    %137 = vector.load %arg9[%c0_53, %c0_54, %c0_55] : memref<2x1x32xf32, #tpu.memory_space<vmem>>, vector<1x1x32xf32>
    %138 = vector.shape_cast %137 : vector<1x1x32xf32> to vector<1x32xf32>
    %139 = vector.broadcast %138 : vector<1x32xf32> to vector<8x32xf32>
    %140 = arith.addf %136, %139 : vector<8x32xf32>
    %141 = arith.addf %140, %28 : vector<8x32xf32>
    %c0_56 = arith.constant 0 : index
    %c0_57 = arith.constant 0 : index
    %c0_58 = arith.constant 0 : index
    %142 = vector.load %arg10[%c0_56, %c0_57, %c0_58] : memref<2x1x32xf32, #tpu.memory_space<vmem>>, vector<1x1x32xf32>
    %143 = vector.shape_cast %142 : vector<1x1x32xf32> to vector<1x32xf32>
    %c0_59 = arith.constant 0 : index
    %c0_60 = arith.constant 0 : index
    %c0_61 = arith.constant 0 : index
    %144 = vector.load %arg11[%c0_59, %c0_60, %c0_61] : memref<2x1x32xf32, #tpu.memory_space<vmem>>, vector<1x1x32xf32>
    %145 = vector.shape_cast %144 : vector<1x1x32xf32> to vector<1x32xf32>
    %cst_62 = arith.constant dense<0.000000e+00> : vector<8xf32>
    %146 = vector.multi_reduction <add>, %141, %cst_62 [1] : vector<8x32xf32> to vector<8xf32>
    %147 = vector.shape_cast %146 : vector<8xf32> to vector<8x1xf32>
    %cst_63 = arith.constant 3.200000e+01 : f32
    %148 = vector.broadcast %cst_63 : f32 to vector<8x1xf32>
    %149 = arith.divf %147, %148 : vector<8x1xf32>
    %150 = vector.broadcast %149 : vector<8x1xf32> to vector<8x32xf32>
    %151 = arith.subf %141, %150 : vector<8x32xf32>
    %152 = arith.mulf %151, %151 : vector<8x32xf32>
    %cst_64 = arith.constant dense<0.000000e+00> : vector<8xf32>
    %153 = vector.multi_reduction <add>, %152, %cst_64 [1] : vector<8x32xf32> to vector<8xf32>
    %154 = vector.shape_cast %153 : vector<8xf32> to vector<8x1xf32>
    %cst_65 = arith.constant 3.200000e+01 : f32
    %155 = vector.broadcast %cst_65 : f32 to vector<8x1xf32>
    %156 = arith.divf %154, %155 : vector<8x1xf32>
    %157 = vector.broadcast %149 : vector<8x1xf32> to vector<8x32xf32>
    %158 = arith.subf %141, %157 : vector<8x32xf32>
    %cst_66 = arith.constant 9.99999996E-13 : f32
    %159 = vector.broadcast %cst_66 : f32 to vector<8x1xf32>
    %160 = arith.addf %156, %159 : vector<8x1xf32>
    %161 = math.rsqrt %160 : vector<8x1xf32>
    %162 = vector.broadcast %161 : vector<8x1xf32> to vector<8x32xf32>
    %163 = arith.mulf %158, %162 : vector<8x32xf32>
    %164 = vector.broadcast %143 : vector<1x32xf32> to vector<8x32xf32>
    %165 = arith.mulf %163, %164 : vector<8x32xf32>
    %166 = vector.broadcast %145 : vector<1x32xf32> to vector<8x32xf32>
    %167 = arith.addf %165, %166 : vector<8x32xf32>
    %c0_67 = arith.constant 0 : index
    %c0_68 = arith.constant 0 : index
    %c0_69 = arith.constant 0 : index
    %168 = vector.load %arg12[%c0_67, %c0_68, %c0_69] : memref<2x32x64xf32, #tpu.memory_space<vmem>>, vector<1x32x64xf32>
    %169 = vector.shape_cast %168 : vector<1x32x64xf32> to vector<32x64xf32>
    %cst_70 = arith.constant dense<0.000000e+00> : vector<8x64xf32>
    %170 = tpu.matmul %167, %169, %cst_70 {dimension_numbers = #tpu.dot_dimension_numbers<[1], [0], [0], [1], [0, 0, 1, 1], [], []>} : vector<8x32xf32>, vector<32x64xf32>, vector<8x64xf32> -> vector<8x64xf32>
    %c0_71 = arith.constant 0 : index
    %c0_72 = arith.constant 0 : index
    %c0_73 = arith.constant 0 : index
    %171 = vector.load %arg13[%c0_71, %c0_72, %c0_73] : memref<2x1x64xf32, #tpu.memory_space<vmem>>, vector<1x1x64xf32>
    %172 = vector.shape_cast %171 : vector<1x1x64xf32> to vector<1x64xf32>
    %173 = vector.broadcast %172 : vector<1x64xf32> to vector<8x64xf32>
    %174 = arith.addf %170, %173 : vector<8x64xf32>
    %cst_74 = arith.constant 5.000000e-01 : f32
    %175 = vector.broadcast %cst_74 : f32 to vector<8x64xf32>
    %176 = arith.mulf %175, %174 : vector<8x64xf32>
    %cst_75 = arith.constant 4.471500e-02 : f32
    %177 = vector.broadcast %cst_75 : f32 to vector<8x64xf32>
    %178 = arith.mulf %177, %174 : vector<8x64xf32>
    %179 = arith.mulf %178, %174 : vector<8x64xf32>
    %180 = arith.mulf %179, %174 : vector<8x64xf32>
    %181 = arith.addf %174, %180 : vector<8x64xf32>
    %cst_76 = arith.constant 0.797884583 : f32
    %182 = vector.broadcast %cst_76 : f32 to vector<8x64xf32>
    %183 = arith.mulf %182, %181 : vector<8x64xf32>
    %184 = math.tanh %183 : vector<8x64xf32>
    %cst_77 = arith.constant 1.000000e+00 : f32
    %185 = vector.broadcast %cst_77 : f32 to vector<8x64xf32>
    %186 = arith.addf %185, %184 : vector<8x64xf32>
    %187 = arith.mulf %176, %186 : vector<8x64xf32>
    %c0_78 = arith.constant 0 : index
    %c0_79 = arith.constant 0 : index
    %c0_80 = arith.constant 0 : index
    %188 = vector.load %arg14[%c0_78, %c0_79, %c0_80] : memref<2x64x32xf32, #tpu.memory_space<vmem>>, vector<1x64x32xf32>
    %189 = vector.shape_cast %188 : vector<1x64x32xf32> to vector<64x32xf32>
    %cst_81 = arith.constant dense<0.000000e+00> : vector<8x32xf32>
    %190 = tpu.matmul %187, %189, %cst_81 {dimension_numbers = #tpu.dot_dimension_numbers<[1], [0], [0], [1], [0, 0, 1, 1], [], []>} : vector<8x64xf32>, vector<64x32xf32>, vector<8x32xf32> -> vector<8x32xf32>
    %c0_82 = arith.constant 0 : index
    %c0_83 = arith.constant 0 : index
    %c0_84 = arith.constant 0 : index
    %191 = vector.load %arg15[%c0_82, %c0_83, %c0_84] : memref<2x1x32xf32, #tpu.memory_space<vmem>>, vector<1x1x32xf32>
    %192 = vector.shape_cast %191 : vector<1x1x32xf32> to vector<1x32xf32>
    %193 = vector.broadcast %192 : vector<1x32xf32> to vector<8x32xf32>
    %194 = arith.addf %190, %193 : vector<8x32xf32>
    %195 = arith.addf %194, %167 : vector<8x32xf32>
    %c0_85 = arith.constant 0 : index
    %c0_86 = arith.constant 0 : index
    %c0_87 = arith.constant 0 : index
    %196 = vector.load %arg16[%c0_85, %c0_86, %c0_87] : memref<2x1x32xf32, #tpu.memory_space<vmem>>, vector<1x1x32xf32>
    %197 = vector.shape_cast %196 : vector<1x1x32xf32> to vector<1x32xf32>
    %c0_88 = arith.constant 0 : index
    %c0_89 = arith.constant 0 : index
    %c0_90 = arith.constant 0 : index
    %198 = vector.load %arg17[%c0_88, %c0_89, %c0_90] : memref<2x1x32xf32, #tpu.memory_space<vmem>>, vector<1x1x32xf32>
    %199 = vector.shape_cast %198 : vector<1x1x32xf32> to vector<1x32xf32>
    %cst_91 = arith.constant dense<0.000000e+00> : vector<8xf32>
    %200 = vector.multi_reduction <add>, %195, %cst_91 [1] : vector<8x32xf32> to vector<8xf32>
    %201 = vector.shape_cast %200 : vector<8xf32> to vector<8x1xf32>
    %cst_92 = arith.constant 3.200000e+01 : f32
    %202 = vector.broadcast %cst_92 : f32 to vector<8x1xf32>
    %203 = arith.divf %201, %202 : vector<8x1xf32>
    %204 = vector.broadcast %203 : vector<8x1xf32> to vector<8x32xf32>
    %205 = arith.subf %195, %204 : vector<8x32xf32>
    %206 = arith.mulf %205, %205 : vector<8x32xf32>
    %cst_93 = arith.constant dense<0.000000e+00> : vector<8xf32>
    %207 = vector.multi_reduction <add>, %206, %cst_93 [1] : vector<8x32xf32> to vector<8xf32>
    %208 = vector.shape_cast %207 : vector<8xf32> to vector<8x1xf32>
    %cst_94 = arith.constant 3.200000e+01 : f32
    %209 = vector.broadcast %cst_94 : f32 to vector<8x1xf32>
    %210 = arith.divf %208, %209 : vector<8x1xf32>
    %211 = vector.broadcast %203 : vector<8x1xf32> to vector<8x32xf32>
    %212 = arith.subf %195, %211 : vector<8x32xf32>
    %cst_95 = arith.constant 9.99999996E-13 : f32
    %213 = vector.broadcast %cst_95 : f32 to vector<8x1xf32>
    %214 = arith.addf %210, %213 : vector<8x1xf32>
    %215 = math.rsqrt %214 : vector<8x1xf32>
    %216 = vector.broadcast %215 : vector<8x1xf32> to vector<8x32xf32>
    %217 = arith.mulf %212, %216 : vector<8x32xf32>
    %218 = vector.broadcast %197 : vector<1x32xf32> to vector<8x32xf32>
    %219 = arith.mulf %217, %218 : vector<8x32xf32>
    %220 = vector.broadcast %199 : vector<1x32xf32> to vector<8x32xf32>
    %221 = arith.addf %219, %220 : vector<8x32xf32>
    %c1 = arith.constant 1 : index
    %c0_96 = arith.constant 0 : index
    %c0_97 = arith.constant 0 : index
    %222 = vector.load %arg6[%c1, %c0_96, %c0_97] : memref<2x32x96xf32, #tpu.memory_space<vmem>>, vector<1x32x96xf32>
    %223 = vector.shape_cast %222 : vector<1x32x96xf32> to vector<32x96xf32>
    %cst_98 = arith.constant dense<0.000000e+00> : vector<8x96xf32>
    %224 = tpu.matmul %221, %223, %cst_98 {dimension_numbers = #tpu.dot_dimension_numbers<[1], [0], [0], [1], [0, 0, 1, 1], [], []>} : vector<8x32xf32>, vector<32x96xf32>, vector<8x96xf32> -> vector<8x96xf32>
    %c1_99 = arith.constant 1 : index
    %c0_100 = arith.constant 0 : index
    %c0_101 = arith.constant 0 : index
    %225 = vector.load %arg7[%c1_99, %c0_100, %c0_101] : memref<2x1x96xf32, #tpu.memory_space<vmem>>, vector<1x1x96xf32>
    %226 = vector.shape_cast %225 : vector<1x1x96xf32> to vector<1x96xf32>
    %227 = vector.broadcast %226 : vector<1x96xf32> to vector<8x96xf32>
    %228 = arith.addf %224, %227 : vector<8x96xf32>
    %c1_102 = arith.constant 1 : index
    %c0_103 = arith.constant 0 : index
    %c0_104 = arith.constant 0 : index
    %229 = vector.load %arg8[%c1_102, %c0_103, %c0_104] : memref<2x32x32xf32, #tpu.memory_space<vmem>>, vector<1x32x32xf32>
    %230 = vector.shape_cast %229 : vector<1x32x32xf32> to vector<32x32xf32>
    %cst_105 = arith.constant 0.000000e+00 : f32
    %231 = vector.broadcast %cst_105 : f32 to vector<1x32xf32>
    %232 = vector.extract_strided_slice %228 {offsets = [0, 0], sizes = [1, 8], strides = [1, 1]} : vector<8x96xf32> to vector<1x8xf32>
    %cst_106 = arith.constant 0.353553385 : f32
    %233 = vector.broadcast %cst_106 : f32 to vector<1x8xf32>
    %234 = arith.mulf %232, %233 : vector<1x8xf32>
    %235 = vector.extract_strided_slice %228 {offsets = [0, 32], sizes = [8, 8], strides = [1, 1]} : vector<8x96xf32> to vector<8x8xf32>
    %236 = vector.extract_strided_slice %228 {offsets = [0, 64], sizes = [8, 8], strides = [1, 1]} : vector<8x96xf32> to vector<8x8xf32>
    %237 = tpu.transpose %235, [1, 0] : vector<8x8xf32> -> vector<8x8xf32>
    %cst_107 = arith.constant dense<0.000000e+00> : vector<1x8xf32>
    %238 = tpu.matmul %234, %237, %cst_107 {dimension_numbers = #tpu.dot_dimension_numbers<[1], [0], [0], [1], [0, 0, 1, 1], [], []>} : vector<1x8xf32>, vector<8x8xf32>, vector<1x8xf32> -> vector<1x8xf32>
    %239 = arith.addf %238, %34 : vector<1x8xf32>
    %cst_108 = arith.constant dense<0xFF800000> : vector<1xf32>
    %240 = vector.multi_reduction <maximumf>, %239, %cst_108 [1] : vector<1x8xf32> to vector<1xf32>
    %241 = vector.shape_cast %240 : vector<1xf32> to vector<1x1xf32>
    %242 = vector.broadcast %241 : vector<1x1xf32> to vector<1x8xf32>
    %243 = arith.subf %239, %242 : vector<1x8xf32>
    %244 = math.exp %243 : vector<1x8xf32>
    %cst_109 = arith.constant dense<0.000000e+00> : vector<1xf32>
    %245 = vector.multi_reduction <add>, %244, %cst_109 [1] : vector<1x8xf32> to vector<1xf32>
    %246 = vector.shape_cast %245 : vector<1xf32> to vector<1x1xf32>
    %247 = tpu.reciprocal %246 {approx = true} : vector<1x1xf32> -> vector<1x1xf32>
    %248 = vector.broadcast %247 : vector<1x1xf32> to vector<1x8xf32>
    %249 = arith.mulf %244, %248 : vector<1x8xf32>
    %cst_110 = arith.constant dense<0.000000e+00> : vector<1x8xf32>
    %250 = tpu.matmul %249, %236, %cst_110 {dimension_numbers = #tpu.dot_dimension_numbers<[1], [0], [0], [1], [0, 0, 1, 1], [], []>} : vector<1x8xf32>, vector<8x8xf32>, vector<1x8xf32> -> vector<1x8xf32>
    %251 = vector.extract_strided_slice %230 {offsets = [0, 0], sizes = [8, 32], strides = [1, 1]} : vector<32x32xf32> to vector<8x32xf32>
    %cst_111 = arith.constant dense<0.000000e+00> : vector<1x32xf32>
    %252 = tpu.matmul %250, %251, %cst_111 {dimension_numbers = #tpu.dot_dimension_numbers<[1], [0], [0], [1], [0, 0, 1, 1], [], []>} : vector<1x8xf32>, vector<8x32xf32>, vector<1x32xf32> -> vector<1x32xf32>
    %253 = arith.addf %231, %252 : vector<1x32xf32>
    %254 = vector.extract_strided_slice %228 {offsets = [0, 8], sizes = [1, 8], strides = [1, 1]} : vector<8x96xf32> to vector<1x8xf32>
    %cst_112 = arith.constant 0.353553385 : f32
    %255 = vector.broadcast %cst_112 : f32 to vector<1x8xf32>
    %256 = arith.mulf %254, %255 : vector<1x8xf32>
    %257 = vector.extract_strided_slice %228 {offsets = [0, 40], sizes = [8, 8], strides = [1, 1]} : vector<8x96xf32> to vector<8x8xf32>
    %258 = vector.extract_strided_slice %228 {offsets = [0, 72], sizes = [8, 8], strides = [1, 1]} : vector<8x96xf32> to vector<8x8xf32>
    %259 = tpu.transpose %257, [1, 0] : vector<8x8xf32> -> vector<8x8xf32>
    %cst_113 = arith.constant dense<0.000000e+00> : vector<1x8xf32>
    %260 = tpu.matmul %256, %259, %cst_113 {dimension_numbers = #tpu.dot_dimension_numbers<[1], [0], [0], [1], [0, 0, 1, 1], [], []>} : vector<1x8xf32>, vector<8x8xf32>, vector<1x8xf32> -> vector<1x8xf32>
    %261 = arith.addf %260, %34 : vector<1x8xf32>
    %cst_114 = arith.constant dense<0xFF800000> : vector<1xf32>
    %262 = vector.multi_reduction <maximumf>, %261, %cst_114 [1] : vector<1x8xf32> to vector<1xf32>
    %263 = vector.shape_cast %262 : vector<1xf32> to vector<1x1xf32>
    %264 = vector.broadcast %263 : vector<1x1xf32> to vector<1x8xf32>
    %265 = arith.subf %261, %264 : vector<1x8xf32>
    %266 = math.exp %265 : vector<1x8xf32>
    %cst_115 = arith.constant dense<0.000000e+00> : vector<1xf32>
    %267 = vector.multi_reduction <add>, %266, %cst_115 [1] : vector<1x8xf32> to vector<1xf32>
    %268 = vector.shape_cast %267 : vector<1xf32> to vector<1x1xf32>
    %269 = tpu.reciprocal %268 {approx = true} : vector<1x1xf32> -> vector<1x1xf32>
    %270 = vector.broadcast %269 : vector<1x1xf32> to vector<1x8xf32>
    %271 = arith.mulf %266, %270 : vector<1x8xf32>
    %cst_116 = arith.constant dense<0.000000e+00> : vector<1x8xf32>
    %272 = tpu.matmul %271, %258, %cst_116 {dimension_numbers = #tpu.dot_dimension_numbers<[1], [0], [0], [1], [0, 0, 1, 1], [], []>} : vector<1x8xf32>, vector<8x8xf32>, vector<1x8xf32> -> vector<1x8xf32>
    %273 = vector.extract_strided_slice %230 {offsets = [8, 0], sizes = [8, 32], strides = [1, 1]} : vector<32x32xf32> to vector<8x32xf32>
    %cst_117 = arith.constant dense<0.000000e+00> : vector<1x32xf32>
    %274 = tpu.matmul %272, %273, %cst_117 {dimension_numbers = #tpu.dot_dimension_numbers<[1], [0], [0], [1], [0, 0, 1, 1], [], []>} : vector<1x8xf32>, vector<8x32xf32>, vector<1x32xf32> -> vector<1x32xf32>
    %275 = arith.addf %253, %274 : vector<1x32xf32>
    %276 = vector.extract_strided_slice %228 {offsets = [0, 16], sizes = [1, 8], strides = [1, 1]} : vector<8x96xf32> to vector<1x8xf32>
    %cst_118 = arith.constant 0.353553385 : f32
    %277 = vector.broadcast %cst_118 : f32 to vector<1x8xf32>
    %278 = arith.mulf %276, %277 : vector<1x8xf32>
    %279 = vector.extract_strided_slice %228 {offsets = [0, 48], sizes = [8, 8], strides = [1, 1]} : vector<8x96xf32> to vector<8x8xf32>
    %280 = vector.extract_strided_slice %228 {offsets = [0, 80], sizes = [8, 8], strides = [1, 1]} : vector<8x96xf32> to vector<8x8xf32>
    %281 = tpu.transpose %279, [1, 0] : vector<8x8xf32> -> vector<8x8xf32>
    %cst_119 = arith.constant dense<0.000000e+00> : vector<1x8xf32>
    %282 = tpu.matmul %278, %281, %cst_119 {dimension_numbers = #tpu.dot_dimension_numbers<[1], [0], [0], [1], [0, 0, 1, 1], [], []>} : vector<1x8xf32>, vector<8x8xf32>, vector<1x8xf32> -> vector<1x8xf32>
    %283 = arith.addf %282, %34 : vector<1x8xf32>
    %cst_120 = arith.constant dense<0xFF800000> : vector<1xf32>
    %284 = vector.multi_reduction <maximumf>, %283, %cst_120 [1] : vector<1x8xf32> to vector<1xf32>
    %285 = vector.shape_cast %284 : vector<1xf32> to vector<1x1xf32>
    %286 = vector.broadcast %285 : vector<1x1xf32> to vector<1x8xf32>
    %287 = arith.subf %283, %286 : vector<1x8xf32>
    %288 = math.exp %287 : vector<1x8xf32>
    %cst_121 = arith.constant dense<0.000000e+00> : vector<1xf32>
    %289 = vector.multi_reduction <add>, %288, %cst_121 [1] : vector<1x8xf32> to vector<1xf32>
    %290 = vector.shape_cast %289 : vector<1xf32> to vector<1x1xf32>
    %291 = tpu.reciprocal %290 {approx = true} : vector<1x1xf32> -> vector<1x1xf32>
    %292 = vector.broadcast %291 : vector<1x1xf32> to vector<1x8xf32>
    %293 = arith.mulf %288, %292 : vector<1x8xf32>
    %cst_122 = arith.constant dense<0.000000e+00> : vector<1x8xf32>
    %294 = tpu.matmul %293, %280, %cst_122 {dimension_numbers = #tpu.dot_dimension_numbers<[1], [0], [0], [1], [0, 0, 1, 1], [], []>} : vector<1x8xf32>, vector<8x8xf32>, vector<1x8xf32> -> vector<1x8xf32>
    %295 = vector.extract_strided_slice %230 {offsets = [16, 0], sizes = [8, 32], strides = [1, 1]} : vector<32x32xf32> to vector<8x32xf32>
    %cst_123 = arith.constant dense<0.000000e+00> : vector<1x32xf32>
    %296 = tpu.matmul %294, %295, %cst_123 {dimension_numbers = #tpu.dot_dimension_numbers<[1], [0], [0], [1], [0, 0, 1, 1], [], []>} : vector<1x8xf32>, vector<8x32xf32>, vector<1x32xf32> -> vector<1x32xf32>
    %297 = arith.addf %275, %296 : vector<1x32xf32>
    %298 = vector.extract_strided_slice %228 {offsets = [0, 24], sizes = [1, 8], strides = [1, 1]} : vector<8x96xf32> to vector<1x8xf32>
    %cst_124 = arith.constant 0.353553385 : f32
    %299 = vector.broadcast %cst_124 : f32 to vector<1x8xf32>
    %300 = arith.mulf %298, %299 : vector<1x8xf32>
    %301 = vector.extract_strided_slice %228 {offsets = [0, 56], sizes = [8, 8], strides = [1, 1]} : vector<8x96xf32> to vector<8x8xf32>
    %302 = vector.extract_strided_slice %228 {offsets = [0, 88], sizes = [8, 8], strides = [1, 1]} : vector<8x96xf32> to vector<8x8xf32>
    %303 = tpu.transpose %301, [1, 0] : vector<8x8xf32> -> vector<8x8xf32>
    %cst_125 = arith.constant dense<0.000000e+00> : vector<1x8xf32>
    %304 = tpu.matmul %300, %303, %cst_125 {dimension_numbers = #tpu.dot_dimension_numbers<[1], [0], [0], [1], [0, 0, 1, 1], [], []>} : vector<1x8xf32>, vector<8x8xf32>, vector<1x8xf32> -> vector<1x8xf32>
    %305 = arith.addf %304, %34 : vector<1x8xf32>
    %cst_126 = arith.constant dense<0xFF800000> : vector<1xf32>
    %306 = vector.multi_reduction <maximumf>, %305, %cst_126 [1] : vector<1x8xf32> to vector<1xf32>
    %307 = vector.shape_cast %306 : vector<1xf32> to vector<1x1xf32>
    %308 = vector.broadcast %307 : vector<1x1xf32> to vector<1x8xf32>
    %309 = arith.subf %305, %308 : vector<1x8xf32>
    %310 = math.exp %309 : vector<1x8xf32>
    %cst_127 = arith.constant dense<0.000000e+00> : vector<1xf32>
    %311 = vector.multi_reduction <add>, %310, %cst_127 [1] : vector<1x8xf32> to vector<1xf32>
    %312 = vector.shape_cast %311 : vector<1xf32> to vector<1x1xf32>
    %313 = tpu.reciprocal %312 {approx = true} : vector<1x1xf32> -> vector<1x1xf32>
    %314 = vector.broadcast %313 : vector<1x1xf32> to vector<1x8xf32>
    %315 = arith.mulf %310, %314 : vector<1x8xf32>
    %cst_128 = arith.constant dense<0.000000e+00> : vector<1x8xf32>
    %316 = tpu.matmul %315, %302, %cst_128 {dimension_numbers = #tpu.dot_dimension_numbers<[1], [0], [0], [1], [0, 0, 1, 1], [], []>} : vector<1x8xf32>, vector<8x8xf32>, vector<1x8xf32> -> vector<1x8xf32>
    %317 = vector.extract_strided_slice %230 {offsets = [24, 0], sizes = [8, 32], strides = [1, 1]} : vector<32x32xf32> to vector<8x32xf32>
    %cst_129 = arith.constant dense<0.000000e+00> : vector<1x32xf32>
    %318 = tpu.matmul %316, %317, %cst_129 {dimension_numbers = #tpu.dot_dimension_numbers<[1], [0], [0], [1], [0, 0, 1, 1], [], []>} : vector<1x8xf32>, vector<8x32xf32>, vector<1x32xf32> -> vector<1x32xf32>
    %319 = arith.addf %297, %318 : vector<1x32xf32>
    %c1_130 = arith.constant 1 : index
    %c0_131 = arith.constant 0 : index
    %c0_132 = arith.constant 0 : index
    %320 = vector.load %arg9[%c1_130, %c0_131, %c0_132] : memref<2x1x32xf32, #tpu.memory_space<vmem>>, vector<1x1x32xf32>
    %321 = vector.shape_cast %320 : vector<1x1x32xf32> to vector<1x32xf32>
    %322 = arith.addf %319, %321 : vector<1x32xf32>
    %323 = vector.extract_strided_slice %221 {offsets = [0, 0], sizes = [1, 32], strides = [1, 1]} : vector<8x32xf32> to vector<1x32xf32>
    %324 = arith.addf %322, %323 : vector<1x32xf32>
    %c1_133 = arith.constant 1 : index
    %c0_134 = arith.constant 0 : index
    %c0_135 = arith.constant 0 : index
    %325 = vector.load %arg10[%c1_133, %c0_134, %c0_135] : memref<2x1x32xf32, #tpu.memory_space<vmem>>, vector<1x1x32xf32>
    %326 = vector.shape_cast %325 : vector<1x1x32xf32> to vector<1x32xf32>
    %c1_136 = arith.constant 1 : index
    %c0_137 = arith.constant 0 : index
    %c0_138 = arith.constant 0 : index
    %327 = vector.load %arg11[%c1_136, %c0_137, %c0_138] : memref<2x1x32xf32, #tpu.memory_space<vmem>>, vector<1x1x32xf32>
    %328 = vector.shape_cast %327 : vector<1x1x32xf32> to vector<1x32xf32>
    %cst_139 = arith.constant dense<0.000000e+00> : vector<1xf32>
    %329 = vector.multi_reduction <add>, %324, %cst_139 [1] : vector<1x32xf32> to vector<1xf32>
    %330 = vector.shape_cast %329 : vector<1xf32> to vector<1x1xf32>
    %cst_140 = arith.constant 3.200000e+01 : f32
    %331 = vector.broadcast %cst_140 : f32 to vector<1x1xf32>
    %332 = arith.divf %330, %331 : vector<1x1xf32>
    %333 = vector.broadcast %332 : vector<1x1xf32> to vector<1x32xf32>
    %334 = arith.subf %324, %333 : vector<1x32xf32>
    %335 = arith.mulf %334, %334 : vector<1x32xf32>
    %cst_141 = arith.constant dense<0.000000e+00> : vector<1xf32>
    %336 = vector.multi_reduction <add>, %335, %cst_141 [1] : vector<1x32xf32> to vector<1xf32>
    %337 = vector.shape_cast %336 : vector<1xf32> to vector<1x1xf32>
    %cst_142 = arith.constant 3.200000e+01 : f32
    %338 = vector.broadcast %cst_142 : f32 to vector<1x1xf32>
    %339 = arith.divf %337, %338 : vector<1x1xf32>
    %340 = vector.broadcast %332 : vector<1x1xf32> to vector<1x32xf32>
    %341 = arith.subf %324, %340 : vector<1x32xf32>
    %cst_143 = arith.constant 9.99999996E-13 : f32
    %342 = vector.broadcast %cst_143 : f32 to vector<1x1xf32>
    %343 = arith.addf %339, %342 : vector<1x1xf32>
    %344 = math.rsqrt %343 : vector<1x1xf32>
    %345 = vector.broadcast %344 : vector<1x1xf32> to vector<1x32xf32>
    %346 = arith.mulf %341, %345 : vector<1x32xf32>
    %347 = arith.mulf %346, %326 : vector<1x32xf32>
    %348 = arith.addf %347, %328 : vector<1x32xf32>
    %c1_144 = arith.constant 1 : index
    %c0_145 = arith.constant 0 : index
    %c0_146 = arith.constant 0 : index
    %349 = vector.load %arg12[%c1_144, %c0_145, %c0_146] : memref<2x32x64xf32, #tpu.memory_space<vmem>>, vector<1x32x64xf32>
    %350 = vector.shape_cast %349 : vector<1x32x64xf32> to vector<32x64xf32>
    %cst_147 = arith.constant dense<0.000000e+00> : vector<1x64xf32>
    %351 = tpu.matmul %348, %350, %cst_147 {dimension_numbers = #tpu.dot_dimension_numbers<[1], [0], [0], [1], [0, 0, 1, 1], [], []>} : vector<1x32xf32>, vector<32x64xf32>, vector<1x64xf32> -> vector<1x64xf32>
    %c1_148 = arith.constant 1 : index
    %c0_149 = arith.constant 0 : index
    %c0_150 = arith.constant 0 : index
    %352 = vector.load %arg13[%c1_148, %c0_149, %c0_150] : memref<2x1x64xf32, #tpu.memory_space<vmem>>, vector<1x1x64xf32>
    %353 = vector.shape_cast %352 : vector<1x1x64xf32> to vector<1x64xf32>
    %354 = arith.addf %351, %353 : vector<1x64xf32>
    %cst_151 = arith.constant 5.000000e-01 : f32
    %355 = vector.broadcast %cst_151 : f32 to vector<1x64xf32>
    %356 = arith.mulf %355, %354 : vector<1x64xf32>
    %cst_152 = arith.constant 4.471500e-02 : f32
    %357 = vector.broadcast %cst_152 : f32 to vector<1x64xf32>
    %358 = arith.mulf %357, %354 : vector<1x64xf32>
    %359 = arith.mulf %358, %354 : vector<1x64xf32>
    %360 = arith.mulf %359, %354 : vector<1x64xf32>
    %361 = arith.addf %354, %360 : vector<1x64xf32>
    %cst_153 = arith.constant 0.797884583 : f32
    %362 = vector.broadcast %cst_153 : f32 to vector<1x64xf32>
    %363 = arith.mulf %362, %361 : vector<1x64xf32>
    %364 = math.tanh %363 : vector<1x64xf32>
    %cst_154 = arith.constant 1.000000e+00 : f32
    %365 = vector.broadcast %cst_154 : f32 to vector<1x64xf32>
    %366 = arith.addf %365, %364 : vector<1x64xf32>
    %367 = arith.mulf %356, %366 : vector<1x64xf32>
    %c1_155 = arith.constant 1 : index
    %c0_156 = arith.constant 0 : index
    %c0_157 = arith.constant 0 : index
    %368 = vector.load %arg14[%c1_155, %c0_156, %c0_157] : memref<2x64x32xf32, #tpu.memory_space<vmem>>, vector<1x64x32xf32>
    %369 = vector.shape_cast %368 : vector<1x64x32xf32> to vector<64x32xf32>
    %cst_158 = arith.constant dense<0.000000e+00> : vector<1x32xf32>
    %370 = tpu.matmul %367, %369, %cst_158 {dimension_numbers = #tpu.dot_dimension_numbers<[1], [0], [0], [1], [0, 0, 1, 1], [], []>} : vector<1x64xf32>, vector<64x32xf32>, vector<1x32xf32> -> vector<1x32xf32>
    %c1_159 = arith.constant 1 : index
    %c0_160 = arith.constant 0 : index
    %c0_161 = arith.constant 0 : index
    %371 = vector.load %arg15[%c1_159, %c0_160, %c0_161] : memref<2x1x32xf32, #tpu.memory_space<vmem>>, vector<1x1x32xf32>
    %372 = vector.shape_cast %371 : vector<1x1x32xf32> to vector<1x32xf32>
    %373 = arith.addf %370, %372 : vector<1x32xf32>
    %374 = arith.addf %373, %348 : vector<1x32xf32>
    %c1_162 = arith.constant 1 : index
    %c0_163 = arith.constant 0 : index
    %c0_164 = arith.constant 0 : index
    %375 = vector.load %arg16[%c1_162, %c0_163, %c0_164] : memref<2x1x32xf32, #tpu.memory_space<vmem>>, vector<1x1x32xf32>
    %376 = vector.shape_cast %375 : vector<1x1x32xf32> to vector<1x32xf32>
    %c1_165 = arith.constant 1 : index
    %c0_166 = arith.constant 0 : index
    %c0_167 = arith.constant 0 : index
    %377 = vector.load %arg17[%c1_165, %c0_166, %c0_167] : memref<2x1x32xf32, #tpu.memory_space<vmem>>, vector<1x1x32xf32>
    %378 = vector.shape_cast %377 : vector<1x1x32xf32> to vector<1x32xf32>
    %cst_168 = arith.constant dense<0.000000e+00> : vector<1xf32>
    %379 = vector.multi_reduction <add>, %374, %cst_168 [1] : vector<1x32xf32> to vector<1xf32>
    %380 = vector.shape_cast %379 : vector<1xf32> to vector<1x1xf32>
    %cst_169 = arith.constant 3.200000e+01 : f32
    %381 = vector.broadcast %cst_169 : f32 to vector<1x1xf32>
    %382 = arith.divf %380, %381 : vector<1x1xf32>
    %383 = vector.broadcast %382 : vector<1x1xf32> to vector<1x32xf32>
    %384 = arith.subf %374, %383 : vector<1x32xf32>
    %385 = arith.mulf %384, %384 : vector<1x32xf32>
    %cst_170 = arith.constant dense<0.000000e+00> : vector<1xf32>
    %386 = vector.multi_reduction <add>, %385, %cst_170 [1] : vector<1x32xf32> to vector<1xf32>
    %387 = vector.shape_cast %386 : vector<1xf32> to vector<1x1xf32>
    %cst_171 = arith.constant 3.200000e+01 : f32
    %388 = vector.broadcast %cst_171 : f32 to vector<1x1xf32>
    %389 = arith.divf %387, %388 : vector<1x1xf32>
    %390 = vector.broadcast %382 : vector<1x1xf32> to vector<1x32xf32>
    %391 = arith.subf %374, %390 : vector<1x32xf32>
    %cst_172 = arith.constant 9.99999996E-13 : f32
    %392 = vector.broadcast %cst_172 : f32 to vector<1x1xf32>
    %393 = arith.addf %389, %392 : vector<1x1xf32>
    %394 = math.rsqrt %393 : vector<1x1xf32>
    %395 = vector.broadcast %394 : vector<1x1xf32> to vector<1x32xf32>
    %396 = arith.mulf %391, %395 : vector<1x32xf32>
    %397 = arith.mulf %396, %376 : vector<1x32xf32>
    %398 = arith.addf %397, %378 : vector<1x32xf32>
    %c0_173 = arith.constant 0 : index
    %c0_174 = arith.constant 0 : index
    %c0_175 = arith.constant 0 : index
    %399 = vector.load %arg18[%c0_173, %c0_174, %c0_175] : memref<1x1x32xf32, #tpu.memory_space<vmem>>, vector<1x1x32xf32>
    %400 = vector.shape_cast %399 : vector<1x1x32xf32> to vector<1x32xf32>
    %401 = vector.shape_cast %398 : vector<1x32xf32> to vector<1x1x32xf32>
    tpu.vector_store %arg18[%c0_173, %c0_174, %c0_175], %401 {strides = array<i32>} : memref<1x1x32xf32, #tpu.memory_space<vmem>>, vector<1x1x32xf32>,
    return
  }
  func.func @transform_0(%arg0: i32) -> (i32, i32, i32) {
    %c0_i32 = arith.constant 0 : i32
    %c0_i32_0 = arith.constant 0 : i32
    %c0_i32_1 = arith.constant 0 : i32
    return %arg0, %c0_i32, %c0_i32_0 : i32, i32, i32
  }
  func.func @transform_1(%arg0: i32) -> (i32, i32, i32) {
    %c0_i32 = arith.constant 0 : i32
    %c0_i32_0 = arith.constant 0 : i32
    %c0_i32_1 = arith.constant 0 : i32
    %c0_i32_2 = arith.constant 0 : i32
    return %c0_i32, %c0_i32_0, %c0_i32_1 : i32, i32, i32
  }
  func.func @transform_2(%arg0: i32) -> (i32, i32) {
    %c0_i32 = arith.constant 0 : i32
    %c0_i32_0 = arith.constant 0 : i32
    %c0_i32_1 = arith.constant 0 : i32
    return %c0_i32, %c0_i32_0 : i32, i32
  }
  func.func @transform_3(%arg0: i32) -> (i32, i32) {
    %c0_i32 = arith.constant 0 : i32
    %c0_i32_0 = arith.constant 0 : i32
    %c0_i32_1 = arith.constant 0 : i32
    return %c0_i32, %c0_i32_0 : i32, i32
  }
  func.func @transform_4(%arg0: i32) -> (i32, i32, i32) {
    %c0_i32 = arith.constant 0 : i32
    %c0_i32_0 = arith.constant 0 : i32
    %c0_i32_1 = arith.constant 0 : i32
    return %arg0, %c0_i32, %c0_i32_0 : i32, i32, i32
  }
  func.func @transform_5(%arg0: i32) -> (i32, i32, i32) {
    %c0_i32 = arith.constant 0 : i32
    %c0_i32_0 = arith.constant 0 : i32
    %c0_i32_1 = arith.constant 0 : i32
    %c0_i32_2 = arith.constant 0 : i32
    return %c0_i32, %c0_i32_0, %c0_i32_1 : i32, i32, i32
  }
  func.func @transform_6(%arg0: i32) -> (i32, i32, i32) {
    %c0_i32 = arith.constant 0 : i32
    %c0_i32_0 = arith.constant 0 : i32
    %c0_i32_1 = arith.constant 0 : i32
    %c0_i32_2 = arith.constant 0 : i32
    return %c0_i32, %c0_i32_0, %c0_i32_1 : i32, i32, i32
  }
  func.func @transform_7(%arg0: i32) -> (i32, i32, i32) {
    %c0_i32 = arith.constant 0 : i32
    %c0_i32_0 = arith.constant 0 : i32
    %c0_i32_1 = arith.constant 0 : i32
    %c0_i32_2 = arith.constant 0 : i32
    return %c0_i32, %c0_i32_0, %c0_i32_1 : i32, i32, i32
  }
  func.func @transform_8(%arg0: i32) -> (i32, i32, i32) {
    %c0_i32 = arith.constant 0 : i32
    %c0_i32_0 = arith.constant 0 : i32
    %c0_i32_1 = arith.constant 0 : i32
    %c0_i32_2 = arith.constant 0 : i32
    return %c0_i32, %c0_i32_0, %c0_i32_1 : i32, i32, i32
  }
  func.func @transform_9(%arg0: i32) -> (i32, i32, i32) {
    %c0_i32 = arith.constant 0 : i32
    %c0_i32_0 = arith.constant 0 : i32
    %c0_i32_1 = arith.constant 0 : i32
    %c0_i32_2 = arith.constant 0 : i32
    return %c0_i32, %c0_i32_0, %c0_i32_1 : i32, i32, i32
  }
  func.func @transform_10(%arg0: i32) -> (i32, i32, i32) {
    %c0_i32 = arith.constant 0 : i32
    %c0_i32_0 = arith.constant 0 : i32
    %c0_i32_1 = arith.constant 0 : i32
    %c0_i32_2 = arith.constant 0 : i32
    return %c0_i32, %c0_i32_0, %c0_i32_1 : i32, i32, i32
  }
  func.func @transform_11(%arg0: i32) -> (i32, i32, i32) {
    %c0_i32 = arith.constant 0 : i32
    %c0_i32_0 = arith.constant 0 : i32
    %c0_i32_1 = arith.constant 0 : i32
    %c0_i32_2 = arith.constant 0 : i32
    return %c0_i32, %c0_i32_0, %c0_i32_1 : i32, i32, i32
  }
  func.func @transform_12(%arg0: i32) -> (i32, i32, i32) {
    %c0_i32 = arith.constant 0 : i32
    %c0_i32_0 = arith.constant 0 : i32
    %c0_i32_1 = arith.constant 0 : i32
    %c0_i32_2 = arith.constant 0 : i32
    return %c0_i32, %c0_i32_0, %c0_i32_1 : i32, i32, i32
  }
  func.func @transform_13(%arg0: i32) -> (i32, i32, i32) {
    %c0_i32 = arith.constant 0 : i32
    %c0_i32_0 = arith.constant 0 : i32
    %c0_i32_1 = arith.constant 0 : i32
    %c0_i32_2 = arith.constant 0 : i32
    return %c0_i32, %c0_i32_0, %c0_i32_1 : i32, i32, i32
  }
  func.func @transform_14(%arg0: i32) -> (i32, i32, i32) {
    %c0_i32 = arith.constant 0 : i32
    %c0_i32_0 = arith.constant 0 : i32
    %c0_i32_1 = arith.constant 0 : i32
    %c0_i32_2 = arith.constant 0 : i32
    return %c0_i32, %c0_i32_0, %c0_i32_1 : i32, i32, i32
  }
  func.func @transform_15(%arg0: i32) -> (i32, i32, i32) {
    %c0_i32 = arith.constant 0 : i32
    %c0_i32_0 = arith.constant 0 : i32
    %c0_i32_1 = arith.constant 0 : i32
    %c0_i32_2 = arith.constant 0 : i32
    return %c0_i32, %c0_i32_0, %c0_i32_1 : i32, i32, i32
  }
  func.func @transform_16(%arg0: i32) -> (i32, i32, i32) {
    %c0_i32 = arith.constant 0 : i32
    %c0_i32_0 = arith.constant 0 : i32
    %c0_i32_1 = arith.constant 0 : i32
    %c0_i32_2 = arith.constant 0 : i32
    return %c0_i32, %c0_i32_0, %c0_i32_1 : i32, i32, i32
  }
  func.func @transform_17(%arg0: i32) -> (i32, i32, i32) {
    %c0_i32 = arith.constant 0 : i32
    %c0_i32_0 = arith.constant 0 : i32
    %c0_i32_1 = arith.constant 0 : i32
    return %arg0, %c0_i32, %c0_i32_0 : i32, i32, i32
  }
}

</mosaic_0001>

<llo_original>
// kernel: tpu_custom_call.1
$region0: #{tpu_custom_call.1}
  #allocation0 [shape = 'u32[]', space=smem, size = 0x4, offset = 0x4, fixed_abs, tag = 'smem constant byte address 0x4 - core index']
  #allocation1 [shape = 'u32[144,128]{1,0:T(1,128)}', space=vmem, size = 0x12000, scoped, tag = 'internal scratch']
  %s0 = inlined_call_operand.hbm [shape: f32[2,8,32], index: 0, kind: input, shape index: {}]
  %s1 = inlined_call_operand.hbm [shape: f32[1,8,32], index: 1, kind: input, shape index: {}]
  %s2 = inlined_call_operand.hbm [shape: f32[1,32], index: 2, kind: input, shape index: {}]
  %s3 = inlined_call_operand.hbm [shape: f32[1,32], index: 3, kind: input, shape index: {}]
  %s4 = inlined_call_operand.vmem [shape: f32[2,1,8], index: 4, kind: input, shape index: {}]
  %s5 = inlined_call_operand.vmem [shape: f32[2,32,96], index: 5, kind: input, shape index: {}]
  %s6 = inlined_call_operand.vmem [shape: f32[2,1,96], index: 6, kind: input, shape index: {}]
  %s7 = inlined_call_operand.vmem [shape: f32[2,32,32], index: 7, kind: input, shape index: {}]
  %s8 = inlined_call_operand.vmem [shape: f32[2,1,32], index: 8, kind: input, shape index: {}]
  %s9 = inlined_call_operand.vmem [shape: f32[2,1,32], index: 9, kind: input, shape index: {}]
  %s10 = inlined_call_operand.vmem [shape: f32[2,1,32], index: 10, kind: input, shape index: {}]
  %s11 = inlined_call_operand.vmem [shape: f32[2,32,64], index: 11, kind: input, shape index: {}]
  %s12 = inlined_call_operand.vmem [shape: f32[2,1,64], index: 12, kind: input, shape index: {}]
  %s13 = inlined_call_operand.vmem [shape: f32[2,64,32], index: 13, kind: input, shape index: {}]
  %s14 = inlined_call_operand.vmem [shape: f32[2,1,32], index: 14, kind: input, shape index: {}]
  %s15 = inlined_call_operand.vmem [shape: f32[2,1,32], index: 15, kind: input, shape index: {}]
  %s16 = inlined_call_operand.vmem [shape: f32[2,1,32], index: 16, kind: input, shape index: {}]
  %s17 = inlined_call_operand.hbm [shape: f32[2,1,32], index: 17, kind: output, shape index: {}]
  %s18 = sld [smem:[#allocation0]]
  $region117: #{tpu_custom_call.1} parent=0
    _
  %s20 = ssub.s32 1, %s18
  %s21 = scalar_select 0, %s20, %s18
  $region1: #{tpu_custom_call.1} parent=0
    #allocation2 [shape = 'u8[8192]{0}', space=vmem, size = 0x2000, scoped, tag = 'input window, operand 0']
    #allocation3 [shape = 's32[2]{0}', space=sflag, size = 0x8, scoped, tag = 'scoped memory for tpu_custom_call.1']
    #allocation4 [shape = 's32[2]{0}', space=sflag, size = 0x8, scoped, tag = 'scoped memory for tpu_custom_call.1']
    #allocation5 [shape = 'u8[4096]{0}', space=vmem, size = 0x1000, scoped, tag = 'input window, operand 1, single buffered']
    #allocation6 [shape = 's32[1]{0}', space=sflag, size = 0x4, scoped, tag = 'scoped memory for tpu_custom_call.1']
    #allocation7 [shape = 'u8[512]{0}', space=vmem, size = 0x400, scoped, tag = 'input window, operand 2, single buffered']
    #allocation8 [shape = 'u8[512]{0}', space=vmem, size = 0x400, scoped, tag = 'input window, operand 3, single buffered']
    #allocation9 [shape = 's32[1]{0}', space=sflag, size = 0x4, scoped, tag = 'scoped memory for tpu_custom_call.1']
    #allocation10 [shape = 'u8[1024]{0}', space=vmem, size = 0x400, scoped, tag = 'output window, operand 0']
    %22 = vsyncpa [#allocation3], 0
    %s23 = scalar_lea.sflag [#allocation3], 1
    %24 = vsyncpa %s23, 0
    %25 = vsyncpa [#allocation6], 0
    %26 = vsyncpa [#allocation9], 0
    %27 = vsyncpa [#allocation4], 0
    %s28 = scalar_lea.sflag [#allocation4], 1
    %29 = vsyncpa %s28, 0
    loop: start=0, step=1, limit=4
    $region2: #{tpu_custom_call.1} parent=1 // loop_pre_header
      _
    $region3: #{tpu_custom_call.1} parent=1 // loop_header
      %s31 = sphi 0, %s35
      %p32 = scmp.ge.s32.totalorder %s31, 4
      %s41 = sphi 0, %s43
      %s44 = sphi 0, %s41
      %s45 = sphi 0, %s44
      %s61 = sphi 0, %s45
      %s65 = sphi 0, %s65
      %s67 = sphi 0, %s65
      %s68 = sphi 0, %s67
      %s82 = sphi 0, %s68
      %s86 = sphi 0, %s86
      %s88 = sphi 0, %s86
      %s89 = sphi 0, %s88
      %s103 = sphi 0, %s89
      %s107 = sphi 0, %s107
      %s109 = sphi 0, %s107
      %s110 = sphi 0, %s109
      %s124 = sphi 0, %s110
      %s130 = sphi 0, %s132
      %s133 = sphi 0, %s130
      %s134 = sphi 0, %s133
      %s150 = sphi 0, %s134
      %s154 = sphi 0, %s154
      %s156 = sphi 0, %s154
      %s157 = sphi 0, %s156
      %s171 = sphi 0, %s157
      %s175 = sphi 0, %s175
      %s177 = sphi 0, %s175
      %s178 = sphi 0, %s177
      %s192 = sphi 0, %s178
      %s196 = sphi 0, %s196
      %s198 = sphi 0, %s196
      %s199 = sphi 0, %s198
      %s213 = sphi 0, %s199
      %s217 = sphi 0, %s217
      %s219 = sphi 0, %s217
      %s220 = sphi 0, %s219
      %s234 = sphi 0, %s220
      %s238 = sphi 0, %s238
      %s240 = sphi 0, %s238
      %s241 = sphi 0, %s240
      %s255 = sphi 0, %s241
      %s259 = sphi 0, %s259
      %s261 = sphi 0, %s259
      %s262 = sphi 0, %s261
      %s276 = sphi 0, %s262
      %s280 = sphi 0, %s280
      %s282 = sphi 0, %s280
      %s283 = sphi 0, %s282
      %s297 = sphi 0, %s283
      %s301 = sphi 0, %s301
      %s303 = sphi 0, %s301
      %s304 = sphi 0, %s303
      %s318 = sphi 0, %s304
      %s322 = sphi 0, %s322
      %s324 = sphi 0, %s322
      %s325 = sphi 0, %s324
      %s339 = sphi 0, %s325
      %s343 = sphi 0, %s343
      %s345 = sphi 0, %s343
      %s346 = sphi 0, %s345
      %s360 = sphi 0, %s346
      %s364 = sphi 0, %s364
      %s366 = sphi 0, %s364
      %s367 = sphi 0, %s366
      %s381 = sphi 0, %s367
      %s385 = sphi 0, %s385
      %s387 = sphi 0, %s385
      %s388 = sphi 0, %s387
      %s402 = sphi 0, %s388
      %s408 = sphi 0, %s410
      %s411 = sphi 0, %s408
      %s412 = sphi 0, %s411
      %s428 = sphi 0, %s412
    $region4: #{tpu_custom_call.1} parent=1 // loop_header_branch
      %34 = sbr.rel (%p32) target = $region8
    $region5: #{tpu_custom_call.1} parent=1 // loop_body
      %s36 = ssub.s32 %s31, 1
      %s37 = ssub.s32 %s31, 2
      %s38 = sadd.s32 %s31, 1
      %s39 = ssub.s32 %s31, %s38
      %p40 = scmp.eq.s32.totalorder %s39, 0
      %s42 = sadd.s32 %s41, 1
      %s43 = scalar_select %p40, %s41, %s42
      %p46 = pneg %p40
      %p47 = scmp.eq.s32.totalorder %s31, 1
      %p48 = por %p46, %p47
      %p49 = scmp.ne.s32.totalorder %s41, %s44
      %p50 = scmp.eq.s32.totalorder %s31, 0
      %p51 = por %p49, %p50
      %p52 = scmp.ne.s32.totalorder %s41, %s44
      %p53 = scmp.eq.s32.totalorder %s36, 1
      %p54 = por %p52, %p53
      %p55 = scmp.ne.s32.totalorder %s44, %s45
      %p56 = scmp.eq.s32.totalorder %s36, 0
      %p57 = por %p55, %p56
      %p58 = scmp.ne.s32.totalorder %s44, %s45
      %p59 = scmp.eq.s32.totalorder %s37, 1
      %p60 = por %p58, %p59
      %p62 = scmp.ne.s32.totalorder %s45, %s61
      %p63 = scmp.eq.s32.totalorder %s37, 0
      %p64 = por %p62, %p63
      %s66 = sadd.s32 %s65, 1
      %p69 = scmp.eq.s32.totalorder %s31, 1
      %p70 = scmp.ne.s32.totalorder %s65, %s67
      %p71 = scmp.eq.s32.totalorder %s31, 0
      %p72 = por %p70, %p71
      %p73 = scmp.ne.s32.totalorder %s65, %s67
      %p74 = scmp.eq.s32.totalorder %s36, 1
      %p75 = por %p73, %p74
      %p76 = scmp.ne.s32.totalorder %s67, %s68
      %p77 = scmp.eq.s32.totalorder %s36, 0
      %p78 = por %p76, %p77
      %p79 = scmp.ne.s32.totalorder %s67, %s68
      %p80 = scmp.eq.s32.totalorder %s37, 1
      %p81 = por %p79, %p80
      %p83 = scmp.ne.s32.totalorder %s68, %s82
      %p84 = scmp.eq.s32.totalorder %s37, 0
      %p85 = por %p83, %p84
      %s87 = sadd.s32 %s86, 1
      %p90 = scmp.eq.s32.totalorder %s31, 1
      %p91 = scmp.ne.s32.totalorder %s86, %s88
      %p92 = scmp.eq.s32.totalorder %s31, 0
      %p93 = por %p91, %p92
      %p94 = scmp.ne.s32.totalorder %s86, %s88
      %p95 = scmp.eq.s32.totalorder %s36, 1
      %p96 = por %p94, %p95
      %p97 = scmp.ne.s32.totalorder %s88, %s89
      %p98 = scmp.eq.s32.totalorder %s36, 0
      %p99 = por %p97, %p98
      %p100 = scmp.ne.s32.totalorder %s88, %s89
      %p101 = scmp.eq.s32.totalorder %s37, 1
      %p102 = por %p100, %p101
      %p104 = scmp.ne.s32.totalorder %s89, %s103
      %p105 = scmp.eq.s32.totalorder %s37, 0
      %p106 = por %p104, %p105
      %s108 = sadd.s32 %s107, 1
      %p111 = scmp.eq.s32.totalorder %s31, 1
      %p112 = scmp.ne.s32.totalorder %s107, %s109
      %p113 = scmp.eq.s32.totalorder %s31, 0
      %p114 = por %p112, %p113
      %p115 = scmp.ne.s32.totalorder %s107, %s109
      %p116 = scmp.eq.s32.totalorder %s36, 1
      %p117 = por %p115, %p116
      %p118 = scmp.ne.s32.totalorder %s109, %s110
      %p119 = scmp.eq.s32.totalorder %s36, 0
      %p120 = por %p118, %p119
      %p121 = scmp.ne.s32.totalorder %s109, %s110
      %p122 = scmp.eq.s32.totalorder %s37, 1
      %p123 = por %p121, %p122
      %p125 = scmp.ne.s32.totalorder %s110, %s124
      %p126 = scmp.eq.s32.totalorder %s37, 0
      %p127 = por %p125, %p126
      %s128 = ssub.s32 %s31, %s38
      %p129 = scmp.eq.s32.totalorder %s128, 0
      %s131 = sadd.s32 %s130, 1
      %s132 = scalar_select %p129, %s130, %s131
      %p135 = pneg %p129
      %p136 = scmp.eq.s32.totalorder %s31, 1
      %p137 = por %p135, %p136
      %p138 = scmp.ne.s32.totalorder %s130, %s133
      %p139 = scmp.eq.s32.totalorder %s31, 0
      %p140 = por %p138, %p139
      %p141 = scmp.ne.s32.totalorder %s130, %s133
      %p142 = scmp.eq.s32.totalorder %s36, 1
      %p143 = por %p141, %p142
      %p144 = scmp.ne.s32.totalorder %s133, %s134
      %p145 = scmp.eq.s32.totalorder %s36, 0
      %p146 = por %p144, %p145
      %p147 = scmp.ne.s32.totalorder %s133, %s134
      %p148 = scmp.eq.s32.totalorder %s37, 1
      %p149 = por %p147, %p148
      %p151 = scmp.ne.s32.totalorder %s134, %s150
      %p152 = scmp.eq.s32.totalorder %s37, 0
      %p153 = por %p151, %p152
      %s155 = sadd.s32 %s154, 1
      %p158 = scmp.eq.s32.totalorder %s31, 1
      %p159 = scmp.ne.s32.totalorder %s154, %s156
      %p160 = scmp.eq.s32.totalorder %s31, 0
      %p161 = por %p159, %p160
      %p162 = scmp.ne.s32.totalorder %s154, %s156
      %p163 = scmp.eq.s32.totalorder %s36, 1
      %p164 = por %p162, %p163
      %p165 = scmp.ne.s32.totalorder %s156, %s157
      %p166 = scmp.eq.s32.totalorder %s36, 0
      %p167 = por %p165, %p166
      %p168 = scmp.ne.s32.totalorder %s156, %s157
      %p169 = scmp.eq.s32.totalorder %s37, 1
      %p170 = por %p168, %p169
      %p172 = scmp.ne.s32.totalorder %s157, %s171
      %p173 = scmp.eq.s32.totalorder %s37, 0
      %p174 = por %p172, %p173
      %s176 = sadd.s32 %s175, 1
      %p179 = scmp.eq.s32.totalorder %s31, 1
      %p180 = scmp.ne.s32.totalorder %s175, %s177
      %p181 = scmp.eq.s32.totalorder %s31, 0
      %p182 = por %p180, %p181
      %p183 = scmp.ne.s32.totalorder %s175, %s177
      %p184 = scmp.eq.s32.totalorder %s36, 1
      %p185 = por %p183, %p184
      %p186 = scmp.ne.s32.totalorder %s177, %s178
      %p187 = scmp.eq.s32.totalorder %s36, 0
      %p188 = por %p186, %p187
      %p189 = scmp.ne.s32.totalorder %s177, %s178
      %p190 = scmp.eq.s32.totalorder %s37, 1
      %p191 = por %p189, %p190
      %p193 = scmp.ne.s32.totalorder %s178, %s192
      %p194 = scmp.eq.s32.totalorder %s37, 0
      %p195 = por %p193, %p194
      %s197 = sadd.s32 %s196, 1
      %p200 = scmp.eq.s32.totalorder %s31, 1
      %p201 = scmp.ne.s32.totalorder %s196, %s198
      %p202 = scmp.eq.s32.totalorder %s31, 0
      %p203 = por %p201, %p202
      %p204 = scmp.ne.s32.totalorder %s196, %s198
      %p205 = scmp.eq.s32.totalorder %s36, 1
      %p206 = por %p204, %p205
      %p207 = scmp.ne.s32.totalorder %s198, %s199
      %p208 = scmp.eq.s32.totalorder %s36, 0
      %p209 = por %p207, %p208
      %p210 = scmp.ne.s32.totalorder %s198, %s199
      %p211 = scmp.eq.s32.totalorder %s37, 1
      %p212 = por %p210, %p211
      %p214 = scmp.ne.s32.totalorder %s199, %s213
      %p215 = scmp.eq.s32.totalorder %s37, 0
      %p216 = por %p214, %p215
      %s218 = sadd.s32 %s217, 1
      %p221 = scmp.eq.s32.totalorder %s31, 1
      %p222 = scmp.ne.s32.totalorder %s217, %s219
      %p223 = scmp.eq.s32.totalorder %s31, 0
      %p224 = por %p222, %p223
      %p225 = scmp.ne.s32.totalorder %s217, %s219
      %p226 = scmp.eq.s32.totalorder %s36, 1
      %p227 = por %p225, %p226
      %p228 = scmp.ne.s32.totalorder %s219, %s220
      %p229 = scmp.eq.s32.totalorder %s36, 0
      %p230 = por %p228, %p229
      %p231 = scmp.ne.s32.totalorder %s219, %s220
      %p232 = scmp.eq.s32.totalorder %s37, 1
      %p233 = por %p231, %p232
      %p235 = scmp.ne.s32.totalorder %s220, %s234
      %p236 = scmp.eq.s32.totalorder %s37, 0
      %p237 = por %p235, %p236
      %s239 = sadd.s32 %s238, 1
      %p242 = scmp.eq.s32.totalorder %s31, 1
      %p243 = scmp.ne.s32.totalorder %s238, %s240
      %p244 = scmp.eq.s32.totalorder %s31, 0
      %p245 = por %p243, %p244
      %p246 = scmp.ne.s32.totalorder %s238, %s240
      %p247 = scmp.eq.s32.totalorder %s36, 1
      %p248 = por %p246, %p247
      %p249 = scmp.ne.s32.totalorder %s240, %s241
      %p250 = scmp.eq.s32.totalorder %s36, 0
      %p251 = por %p249, %p250
      %p252 = scmp.ne.s32.totalorder %s240, %s241
      %p253 = scmp.eq.s32.totalorder %s37, 1
      %p254 = por %p252, %p253
      %p256 = scmp.ne.s32.totalorder %s241, %s255
      %p257 = scmp.eq.s32.totalorder %s37, 0
      %p258 = por %p256, %p257
      %s260 = sadd.s32 %s259, 1
      %p263 = scmp.eq.s32.totalorder %s31, 1
      %p264 = scmp.ne.s32.totalorder %s259, %s261
      %p265 = scmp.eq.s32.totalorder %s31, 0
      %p266 = por %p264, %p265
      %p267 = scmp.ne.s32.totalorder %s259, %s261
      %p268 = scmp.eq.s32.totalorder %s36, 1
      %p269 = por %p267, %p268
      %p270 = scmp.ne.s32.totalorder %s261, %s262
      %p271 = scmp.eq.s32.totalorder %s36, 0
      %p272 = por %p270, %p271
      %p273 = scmp.ne.s32.totalorder %s261, %s262
      %p274 = scmp.eq.s32.totalorder %s37, 1
      %p275 = por %p273, %p274
      %p277 = scmp.ne.s32.totalorder %s262, %s276
      %p278 = scmp.eq.s32.totalorder %s37, 0
      %p279 = por %p277, %p278
      %s281 = sadd.s32 %s280, 1
      %p284 = scmp.eq.s32.totalorder %s31, 1
      %p285 = scmp.ne.s32.totalorder %s280, %s282
      %p286 = scmp.eq.s32.totalorder %s31, 0
      %p287 = por %p285, %p286
      %p288 = scmp.ne.s32.totalorder %s280, %s282
      %p289 = scmp.eq.s32.totalorder %s36, 1
      %p290 = por %p288, %p289
      %p291 = scmp.ne.s32.totalorder %s282, %s283
      %p292 = scmp.eq.s32.totalorder %s36, 0
      %p293 = por %p291, %p292
      %p294 = scmp.ne.s32.totalorder %s282, %s283
      %p295 = scmp.eq.s32.totalorder %s37, 1
      %p296 = por %p294, %p295
      %p298 = scmp.ne.s32.totalorder %s283, %s297
      %p299 = scmp.eq.s32.totalorder %s37, 0
      %p300 = por %p298, %p299
      %s302 = sadd.s32 %s301, 1
      %p305 = scmp.eq.s32.totalorder %s31, 1
      %p306 = scmp.ne.s32.totalorder %s301, %s303
      %p307 = scmp.eq.s32.totalorder %s31, 0
      %p308 = por %p306, %p307
      %p309 = scmp.ne.s32.totalorder %s301, %s303
      %p310 = scmp.eq.s32.totalorder %s36, 1
      %p311 = por %p309, %p310
      %p312 = scmp.ne.s32.totalorder %s303, %s304
      %p313 = scmp.eq.s32.totalorder %s36, 0
      %p314 = por %p312, %p313
      %p315 = scmp.ne.s32.totalorder %s303, %s304
      %p316 = scmp.eq.s32.totalorder %s37, 1
      %p317 = por %p315, %p316
      %p319 = scmp.ne.s32.totalorder %s304, %s318
      %p320 = scmp.eq.s32.totalorder %s37, 0
      %p321 = por %p319, %p320
      %s323 = sadd.s32 %s322, 1
      %p326 = scmp.eq.s32.totalorder %s31, 1
      %p327 = scmp.ne.s32.totalorder %s322, %s324
      %p328 = scmp.eq.s32.totalorder %s31, 0
      %p329 = por %p327, %p328
      %p330 = scmp.ne.s32.totalorder %s322, %s324
      %p331 = scmp.eq.s32.totalorder %s36, 1
      %p332 = por %p330, %p331
      %p333 = scmp.ne.s32.totalorder %s324, %s325
      %p334 = scmp.eq.s32.totalorder %s36, 0
      %p335 = por %p333, %p334
      %p336 = scmp.ne.s32.totalorder %s324, %s325
      %p337 = scmp.eq.s32.totalorder %s37, 1
      %p338 = por %p336, %p337
      %p340 = scmp.ne.s32.totalorder %s325, %s339
      %p341 = scmp.eq.s32.totalorder %s37, 0
      %p342 = por %p340, %p341
      %s344 = sadd.s32 %s343, 1
      %p347 = scmp.eq.s32.totalorder %s31, 1
      %p348 = scmp.ne.s32.totalorder %s343, %s345
      %p349 = scmp.eq.s32.totalorder %s31, 0
      %p350 = por %p348, %p349
      %p351 = scmp.ne.s32.totalorder %s343, %s345
      %p352 = scmp.eq.s32.totalorder %s36, 1
      %p353 = por %p351, %p352
      %p354 = scmp.ne.s32.totalorder %s345, %s346
      %p355 = scmp.eq.s32.totalorder %s36, 0
      %p356 = por %p354, %p355
      %p357 = scmp.ne.s32.totalorder %s345, %s346
      %p358 = scmp.eq.s32.totalorder %s37, 1
      %p359 = por %p357, %p358
      %p361 = scmp.ne.s32.totalorder %s346, %s360
      %p362 = scmp.eq.s32.totalorder %s37, 0
      %p363 = por %p361, %p362
      %s365 = sadd.s32 %s364, 1
      %p368 = scmp.eq.s32.totalorder %s31, 1
      %p369 = scmp.ne.s32.totalorder %s364, %s366
      %p370 = scmp.eq.s32.totalorder %s31, 0
      %p371 = por %p369, %p370
      %p372 = scmp.ne.s32.totalorder %s364, %s366
      %p373 = scmp.eq.s32.totalorder %s36, 1
      %p374 = por %p372, %p373
      %p375 = scmp.ne.s32.totalorder %s366, %s367
      %p376 = scmp.eq.s32.totalorder %s36, 0
      %p377 = por %p375, %p376
      %p378 = scmp.ne.s32.totalorder %s366, %s367
      %p379 = scmp.eq.s32.totalorder %s37, 1
      %p380 = por %p378, %p379
      %p382 = scmp.ne.s32.totalorder %s367, %s381
      %p383 = scmp.eq.s32.totalorder %s37, 0
      %p384 = por %p382, %p383
      %s386 = sadd.s32 %s385, 1
      %p389 = scmp.eq.s32.totalorder %s31, 1
      %p390 = scmp.ne.s32.totalorder %s385, %s387
      %p391 = scmp.eq.s32.totalorder %s31, 0
      %p392 = por %p390, %p391
      %p393 = scmp.ne.s32.totalorder %s385, %s387
      %p394 = scmp.eq.s32.totalorder %s36, 1
      %p395 = por %p393, %p394
      %p396 = scmp.ne.s32.totalorder %s387, %s388
      %p397 = scmp.eq.s32.totalorder %s36, 0
      %p398 = por %p396, %p397
      %p399 = scmp.ne.s32.totalorder %s387, %s388
      %p400 = scmp.eq.s32.totalorder %s37, 1
      %p401 = por %p399, %p400
      %p403 = scmp.ne.s32.totalorder %s388, %s402
      %p404 = scmp.eq.s32.totalorder %s37, 0
      %p405 = por %p403, %p404
      %s406 = ssub.s32 %s31, %s38
      %p407 = scmp.eq.s32.totalorder %s406, 0
      %s409 = sadd.s32 %s408, 1
      %s410 = scalar_select %p407, %s408, %s409
      %p413 = pneg %p407
      %p414 = scmp.eq.s32.totalorder %s31, 1
      %p415 = por %p413, %p414
      %p416 = scmp.ne.s32.totalorder %s408, %s411
      %p417 = scmp.eq.s32.totalorder %s31, 0
      %p418 = por %p416, %p417
      %p419 = scmp.ne.s32.totalorder %s408, %s411
      %p420 = scmp.eq.s32.totalorder %s36, 1
      %p421 = por %p419, %p420
      %p422 = scmp.ne.s32.totalorder %s411, %s412
      %p423 = scmp.eq.s32.totalorder %s36, 0
      %p424 = por %p422, %p423
      %p425 = scmp.ne.s32.totalorder %s411, %s412
      %p426 = scmp.eq.s32.totalorder %s37, 1
      %p427 = por %p425, %p426
      %p429 = scmp.ne.s32.totalorder %s412, %s428
      %p430 = scmp.eq.s32.totalorder %s37, 0
      %p431 = por %p429, %p430
      %p432 = scmp.le.s32.totalorder 1, %s31
      %p433 = scmp.lt.s32.totalorder %s31, 3
      %p434 = pnand %p432, %p433
      %p435 = pneg %p434
      // Predicated region
      $region9: #{tpu_custom_call.1} parent=5 // pred_check
        _
      $region10: #{tpu_custom_call.1} parent=5 // pred_check_branch
        %437 = sbr.rel (%p434) target = $region12
      $region11: #{tpu_custom_call.1} parent=5 // pred_region
        %s438 = ssub.s32 %s31, 1
        // Predicated region
        $region13: #{tpu_custom_call.1} parent=11 // pred_check
          %p439 = pneg %p78
        $region14: #{tpu_custom_call.1} parent=11 // pred_check_branch
          %441 = sbr.rel (%p439) target = $region16
        $region15: #{tpu_custom_call.1} parent=11 // pred_region
          %s443 = ssub.s32 128, 128
          %444 = vsyncadd [#allocation6], %s443
          %s446 = sshll.u32 [#allocation5], 4
          %s447 = int_to_ptr.vmem [resolvable:$true] %s446
          %449 = dma.hbm_to_vmem [thread:$0]  %s1, 128, %s447, [#allocation6]
        $region16: #{tpu_custom_call.1} parent=11 // pred_fallthru
          _
        // Predicated region
        $region17: #{tpu_custom_call.1} parent=11 // pred_check
          %p450 = pneg %p99
        $region18: #{tpu_custom_call.1} parent=11 // pred_check_branch
          %452 = sbr.rel (%p450) target = $region20
        $region19: #{tpu_custom_call.1} parent=11 // pred_region
          %s454 = ssub.s32 16, 16
          %455 = vsyncadd [#allocation6], %s454
          %s457 = sshll.u32 [#allocation7], 4
          %s458 = int_to_ptr.vmem [resolvable:$true] %s457
          %460 = dma.hbm_to_vmem [thread:$0]  %s2, 16, %s458, [#allocation6]
        $region20: #{tpu_custom_call.1} parent=11 // pred_fallthru
          _
        // Predicated region
        $region21: #{tpu_custom_call.1} parent=11 // pred_check
          %p461 = pneg %p120
        $region22: #{tpu_custom_call.1} parent=11 // pred_check_branch
          %463 = sbr.rel (%p461) target = $region24
        $region23: #{tpu_custom_call.1} parent=11 // pred_region
          %s465 = ssub.s32 16, 16
          %466 = vsyncadd [#allocation9], %s465
          %s468 = sshll.u32 [#allocation8], 4
          %s469 = int_to_ptr.vmem [resolvable:$true] %s468
          %471 = dma.hbm_to_vmem [thread:$0]  %s3, 16, %s469, [#allocation9]
        $region24: #{tpu_custom_call.1} parent=11 // pred_fallthru
          _
        // Predicated region
        $region25: #{tpu_custom_call.1} parent=11 // pred_check
          %p472 = pneg %p167
        $region26: #{tpu_custom_call.1} parent=11 // pred_check_branch
          %474 = sbr.rel (%p472) target = $region28
        $region27: #{tpu_custom_call.1} parent=11 // pred_region
          _
        $region28: #{tpu_custom_call.1} parent=11 // pred_fallthru
          _
        // Predicated region
        $region29: #{tpu_custom_call.1} parent=11 // pred_check
          %p475 = pneg %p188
        $region30: #{tpu_custom_call.1} parent=11 // pred_check_branch
          %477 = sbr.rel (%p475) target = $region32
        $region31: #{tpu_custom_call.1} parent=11 // pred_region
          _
        $region32: #{tpu_custom_call.1} parent=11 // pred_fallthru
          _
        // Predicated region
        $region33: #{tpu_custom_call.1} parent=11 // pred_check
          %p478 = pneg %p209
        $region34: #{tpu_custom_call.1} parent=11 // pred_check_branch
          %480 = sbr.rel (%p478) target = $region36
        $region35: #{tpu_custom_call.1} parent=11 // pred_region
          _
        $region36: #{tpu_custom_call.1} parent=11 // pred_fallthru
          _
        // Predicated region
        $region37: #{tpu_custom_call.1} parent=11 // pred_check
          %p481 = pneg %p230
        $region38: #{tpu_custom_call.1} parent=11 // pred_check_branch
          %483 = sbr.rel (%p481) target = $region40
        $region39: #{tpu_custom_call.1} parent=11 // pred_region
          _
        $region40: #{tpu_custom_call.1} parent=11 // pred_fallthru
          _
        // Predicated region
        $region41: #{tpu_custom_call.1} parent=11 // pred_check
          %p484 = pneg %p251
        $region42: #{tpu_custom_call.1} parent=11 // pred_check_branch
          %486 = sbr.rel (%p484) target = $region44
        $region43: #{tpu_custom_call.1} parent=11 // pred_region
          _
        $region44: #{tpu_custom_call.1} parent=11 // pred_fallthru
          _
        // Predicated region
        $region45: #{tpu_custom_call.1} parent=11 // pred_check
          %p487 = pneg %p272
        $region46: #{tpu_custom_call.1} parent=11 // pred_check_branch
          %489 = sbr.rel (%p487) target = $region48
        $region47: #{tpu_custom_call.1} parent=11 // pred_region
          _
        $region48: #{tpu_custom_call.1} parent=11 // pred_fallthru
          _
        // Predicated region
        $region49: #{tpu_custom_call.1} parent=11 // pred_check
          %p490 = pneg %p293
        $region50: #{tpu_custom_call.1} parent=11 // pred_check_branch
          %492 = sbr.rel (%p490) target = $region52
        $region51: #{tpu_custom_call.1} parent=11 // pred_region
          _
        $region52: #{tpu_custom_call.1} parent=11 // pred_fallthru
          _
        // Predicated region
        $region53: #{tpu_custom_call.1} parent=11 // pred_check
          %p493 = pneg %p314
        $region54: #{tpu_custom_call.1} parent=11 // pred_check_branch
          %495 = sbr.rel (%p493) target = $region56
        $region55: #{tpu_custom_call.1} parent=11 // pred_region
          _
        $region56: #{tpu_custom_call.1} parent=11 // pred_fallthru
          _
        // Predicated region
        $region57: #{tpu_custom_call.1} parent=11 // pred_check
          %p496 = pneg %p335
        $region58: #{tpu_custom_call.1} parent=11 // pred_check_branch
          %498 = sbr.rel (%p496) target = $region60
        $region59: #{tpu_custom_call.1} parent=11 // pred_region
          _
        $region60: #{tpu_custom_call.1} parent=11 // pred_fallthru
          _
        // Predicated region
        $region61: #{tpu_custom_call.1} parent=11 // pred_check
          %p499 = pneg %p356
        $region62: #{tpu_custom_call.1} parent=11 // pred_check_branch
          %501 = sbr.rel (%p499) target = $region64
        $region63: #{tpu_custom_call.1} parent=11 // pred_region
          _
        $region64: #{tpu_custom_call.1} parent=11 // pred_fallthru
          _
        // Predicated region
        $region65: #{tpu_custom_call.1} parent=11 // pred_check
          %p502 = pneg %p377
        $region66: #{tpu_custom_call.1} parent=11 // pred_check_branch
          %504 = sbr.rel (%p502) target = $region68
        $region67: #{tpu_custom_call.1} parent=11 // pred_region
          _
        $region68: #{tpu_custom_call.1} parent=11 // pred_fallthru
          _
        // Predicated region
        $region69: #{tpu_custom_call.1} parent=11 // pred_check
          %p505 = pneg %p398
        $region70: #{tpu_custom_call.1} parent=11 // pred_check_branch
          %507 = sbr.rel (%p505) target = $region72
        $region71: #{tpu_custom_call.1} parent=11 // pred_region
          _
        $region72: #{tpu_custom_call.1} parent=11 // pred_fallthru
          _
      $region12: #{tpu_custom_call.1} parent=5 // pred_fallthru
        _
      %p508 = scmp.lt.s32.totalorder %s31, 2
      // Predicated region
      $region73: #{tpu_custom_call.1} parent=5 // pred_check
        %p509 = pneg %p508
      $region74: #{tpu_custom_call.1} parent=5 // pred_check_branch
        %511 = sbr.rel (%p509) target = $region76
      $region75: #{tpu_custom_call.1} parent=5 // pred_region
        // Predicated region
        $region77: #{tpu_custom_call.1} parent=75 // pred_check
          %p512 = pneg %p51
        $region78: #{tpu_custom_call.1} parent=75 // pred_check_branch
          %514 = sbr.rel (%p512) target = $region80
        $region79: #{tpu_custom_call.1} parent=75 // pred_region
          %s515 = sand.u32 %s41, 1
          %s516 = scalar_lea.sflag [#allocation3], %s515
          %s517 = sand.u32 %s41, 1
          %s518 = smul.addr %s517, 8
          %s519 = scalar_lea.vmem [#allocation2], %s518
          %s521 = ssub.s32 128, 128
          %522 = vsyncadd %s516, %s521
          %s523 = smul.addr %s31, 128
          %s524 = scalar_lea.hbm %s0, %s523
          %s526 = sshll.u32 %s519, 4
          %s527 = int_to_ptr.vmem [resolvable:$true] %s526
          %529 = dma.hbm_to_vmem [thread:$0]  %s524, 128, %s527, %s516
        $region80: #{tpu_custom_call.1} parent=75 // pred_fallthru
          _
        // Predicated region
        $region81: #{tpu_custom_call.1} parent=75 // pred_check
          %p530 = pneg %p140
        $region82: #{tpu_custom_call.1} parent=75 // pred_check_branch
          %532 = sbr.rel (%p530) target = $region84
        $region83: #{tpu_custom_call.1} parent=75 // pred_region
          %p533 = scmp.lt.s32.totalorder %s31, 1
          %s534 = scalar_select %p533, %s31, 1
          %s535 = scalar_lea.vmem %s4, %s534
        $region84: #{tpu_custom_call.1} parent=75 // pred_fallthru
          _
      $region76: #{tpu_custom_call.1} parent=5 // pred_fallthru
        _
      %p536 = scmp.le.s32.totalorder 1, %s31
      %p537 = scmp.lt.s32.totalorder %s31, 3
      %p538 = pnand %p536, %p537
      %p539 = pneg %p538
      // Predicated region
      $region85: #{tpu_custom_call.1} parent=5 // pred_check
        _
      $region86: #{tpu_custom_call.1} parent=5 // pred_check_branch
        %541 = sbr.rel (%p538) target = $region88
      $region87: #{tpu_custom_call.1} parent=5 // pred_region
        %s542 = ssub.s32 %s31, 1
        %s543 = sand.u32 %s44, 1
        %s544 = scalar_lea.sflag [#allocation3], %s543
        %s545 = sand.u32 %s44, 1
        %s546 = smul.addr %s545, 8
        %s547 = scalar_lea.vmem [#allocation2], %s546
        // Predicated region
        $region89: #{tpu_custom_call.1} parent=87 // pred_check
          %p548 = pneg %p57
        $region90: #{tpu_custom_call.1} parent=87 // pred_check_branch
          %550 = sbr.rel (%p548) target = $region92
        $region91: #{tpu_custom_call.1} parent=87 // pred_region
          %551 = dma.done %s544, 128
        $region92: #{tpu_custom_call.1} parent=87 // pred_fallthru
          _
        // Predicated region
        $region93: #{tpu_custom_call.1} parent=87 // pred_check
          %p552 = pneg %p78
        $region94: #{tpu_custom_call.1} parent=87 // pred_check_branch
          %554 = sbr.rel (%p552) target = $region96
        $region95: #{tpu_custom_call.1} parent=87 // pred_region
          %555 = dma.done [#allocation6], 128
        $region96: #{tpu_custom_call.1} parent=87 // pred_fallthru
          _
        // Predicated region
        $region97: #{tpu_custom_call.1} parent=87 // pred_check
          %p556 = pneg %p99
        $region98: #{tpu_custom_call.1} parent=87 // pred_check_branch
          %558 = sbr.rel (%p556) target = $region100
        $region99: #{tpu_custom_call.1} parent=87 // pred_region
          %559 = dma.done [#allocation6], 16
        $region100: #{tpu_custom_call.1} parent=87 // pred_fallthru
          _
        // Predicated region
        $region101: #{tpu_custom_call.1} parent=87 // pred_check
          %p560 = pneg %p120
        $region102: #{tpu_custom_call.1} parent=87 // pred_check_branch
          %562 = sbr.rel (%p560) target = $region104
        $region103: #{tpu_custom_call.1} parent=87 // pred_region
          %563 = dma.done [#allocation9], 16
        $region104: #{tpu_custom_call.1} parent=87 // pred_fallthru
          _
        %s564 = sand.u32 %s44, 1
        %s565 = scalar_lea.sflag [#allocation3], %s564
        %s566 = sand.u32 %s44, 1
        %s567 = smul.addr %s566, 8
        %s568 = scalar_lea.vmem [#allocation2], %s567
        %p569 = pneg %p57
        %p570 = pneg %p54
        %p571 = pneg %p78
        %p572 = pneg %p75
        %p573 = pneg %p99
        %p574 = pneg %p96
        %p575 = pneg %p120
        %p576 = pneg %p117
        %p577 = scmp.lt.s32.totalorder %s36, 1
        %s578 = scalar_select %p577, %s36, 1
        %s579 = scalar_lea.vmem %s4, %s578
        %p580 = pneg %p146
        %p581 = pneg %p143
        %p582 = pneg %p167
        %p583 = pneg %p164
        %p584 = pneg %p188
        %p585 = pneg %p185
        %p586 = pneg %p209
        %p587 = pneg %p206
        %p588 = pneg %p230
        %p589 = pneg %p227
        %p590 = pneg %p251
        %p591 = pneg %p248
        %p592 = pneg %p272
        %p593 = pneg %p269
        %p594 = pneg %p293
        %p595 = pneg %p290
        %p596 = pneg %p314
        %p597 = pneg %p311
        %p598 = pneg %p335
        %p599 = pneg %p332
        %p600 = pneg %p356
        %p601 = pneg %p353
        %p602 = pneg %p377
        %p603 = pneg %p374
        %p604 = pneg %p398
        %p605 = pneg %p395
        %p606 = pneg %p424
        %p607 = pneg %p421
        %s608 = sand.u32 %s411, 1
        %s609 = scalar_lea.sflag [#allocation4], %s608
        %s610 = sand.u32 %s411, 1
        %s611 = scalar_lea.vmem [#allocation10], %s610
        %p612 = scmp.lt.s32.totalorder %s36, 1
        %s613 = scalar_select %p612, %s36, 1
        %s614 = scalar_lea.vmem %s4, %s613
        %v615 = vld [vmem:[%s547] sm:$0xff]
        %v616 = vld [vmem:[#allocation5] sm:$0xff]
        %v617 = vadd.f32 %v615, %v616
        %v618 = vld [vmem:[#allocation7] sm:$0x1]
        %v619 = vld [vmem:[#allocation8] sm:$0x1]
        %vm620 = vcmask 261120
        %v621 = vsel %vm620, %v617, 0.0
        %622 = vadd.xlane.f32.xlu0 %v621
        %v623 = vpop.xlane.xlu0 %622
        %v624 = vrcp.pop 32.0
        %v625 = vmul.f32 %v623, %v624
        %v626 = vsub.f32 %v617, %v625
        %v627 = vmul.f32 %v626, %v626
        %v628 = vsel %vm620, %v627, 0.0
        %629 = vadd.xlane.f32.xlu0 %v628
        %v630 = vpop.xlane.xlu0 %629
        %v631 = vmul.f32 %v630, %v624
        %v632 = vadd.f32 %v631, 1e-12
        %v633 = vrsqrt.pop %v632
        %v634 = vmul.f32 %v626, %v633
        %v636 = vlaneseq
        %v637 = vshrl.u32 %v636, 7
        %v638 = vsub.s32 0, %v637
        %v639 = vrot.slane %v618, %v638
        %v641 = vmul.f32 %v634, %v639
        %v643 = vlaneseq
        %v644 = vshrl.u32 %v643, 7
        %v645 = vsub.s32 0, %v644
        %v646 = vrot.slane %v619, %v645
        %v648 = vadd.f32 %v641, %v646
        %v649 = vld [vmem:[%s614] sm:$0x1]
        %v650 = vsub.f32 1.0, %v649
        %v651 = vmul.f32 %v650, -10000.0
        %v652 = vld [vmem:[%s5] sm:$0xff]
        %v653 = vld [vmem:[%s5 + $0x8] sm:$0xff]
        %v654 = vld [vmem:[%s5 + $0x10] sm:$0xff]
        %v655 = vld [vmem:[%s5 + $0x18] sm:$0xff]
        %v656 = vld [vmem:[%s6] sm:$0x1]
        %v658 = vlaneseq
        %v659 = vshrl.u32 %v658, 7
        %v660 = vsub.s32 0, %v659
        %v661 = vrot.slane %v656, %v660
        %v664 = vsel %vm620, %v648, 0
        %666 = vmatprep.subr.mxu0 0.0
        %667 = vmatpush1.msra.mxu0 0.0
        %668 = vmatprep.subr.mxu0 0.0
        %669 = vmatpush1.msra.mxu0 0.0
        %670 = vmatprep.subr.mxu0 0.0
        %671 = vmatpush1.msra.mxu0 0.0
        %672 = vmatprep.subr.mxu0 0.0
        %673 = vmatpush1.msra.mxu0 0.0
        %674 = vmatprep.subr.mxu0 0.0
        %675 = vmatpush1.msra.mxu0 0.0
        %676 = vmatprep.subr.mxu0 0.0
        %677 = vmatpush1.msra.mxu0 0.0
        %678 = vmatprep.subr.mxu0 0.0
        %679 = vmatpush1.msra.mxu0 0.0
        %680 = vmatprep.subr.mxu0 0.0
        %681 = vmatpush1.msra.mxu0 0.0
        %682 = vmatprep.subr.mxu0 0.0
        %683 = vmatpush1.msra.mxu0 0.0
        %684 = vmatprep.subr.mxu0 0.0
        %685 = vmatpush1.msra.mxu0 0.0
        %686 = vmatprep.subr.mxu0 0.0
        %687 = vmatpush1.msra.mxu0 0.0
        %688 = vmatprep.subr.mxu0 0.0
        %689 = vmatpush1.msra.mxu0 0.0
        %690 = vmatprep.subr.mxu0 0.0
        %691 = vmatpush1.msra.mxu0 %v655
        %692 = vmatprep.subr.mxu0 0.0
        %693 = vmatpush1.msra.mxu0 %v654
        %694 = vmatprep.subr.mxu0 0.0
        %695 = vmatpush1.msra.mxu0 %v653
        %696 = vmatprep.subr.mxu0 0.0
        %697 = vmatpush1.msra.mxu0 %v652
        %698 = vmatprep.subr.mxu0 0.0
        %699 = vmatpush2.msra.mxu0 0.0
        %700 = vmatprep.subr.mxu0 0.0
        %701 = vmatpush2.msra.mxu0 0.0
        %702 = vmatprep.subr.mxu0 0.0
        %703 = vmatpush2.msra.mxu0 0.0
        %704 = vmatprep.subr.mxu0 0.0
        %705 = vmatpush2.msra.mxu0 0.0
        %706 = vmatprep.subr.mxu0 0.0
        %707 = vmatpush2.msra.mxu0 0.0
        %708 = vmatprep.subr.mxu0 0.0
        %709 = vmatpush2.msra.mxu0 0.0
        %710 = vmatprep.subr.mxu0 0.0
        %711 = vmatpush2.msra.mxu0 0.0
        %712 = vmatprep.subr.mxu0 0.0
        %713 = vmatpush2.msra.mxu0 0.0
        %714 = vmatprep.subr.mxu0 0.0
        %715 = vmatpush2.msra.mxu0 0.0
        %716 = vmatprep.subr.mxu0 0.0
        %717 = vmatpush2.msra.mxu0 0.0
        %718 = vmatprep.subr.mxu0 0.0
        %719 = vmatpush2.msra.mxu0 0.0
        %720 = vmatprep.subr.mxu0 0.0
        %721 = vmatpush2.msra.mxu0 0.0
        %722 = vmatprep.subr.mxu0 0.0
        %723 = vmatpush2.msra.mxu0 0.0
        %724 = vmatprep.subr.mxu0 0.0
        %725 = vmatpush2.msra.mxu0 0.0
        %726 = vmatprep.subr.mxu0 0.0
        %727 = vmatpush2.msra.mxu0 0.0
        %728 = vmatprep.subr.mxu0 0.0
        %729 = vmatpush2.msra.mxu0 0.0
        %730 = vmatprep.mubr.f32.mxu0 0.0
        %731 = vmatmul.mubr.f32.gmra.mxu0 %v664
        %v732 = vpop.f32.mrf.mxu0
        %v733 = vadd.f32 %v661, %v732
        %v734 = vpop.f32.mrf.mxu0
        %735 = vdwg.mxu0
        %v736 = vld [vmem:[%s7] sm:$0xff]
        %v737 = vld [vmem:[%s7 + $0x8] sm:$0xff]
        %v738 = vld [vmem:[%s7 + $0x10] sm:$0xff]
        %v739 = vld [vmem:[%s7 + $0x18] sm:$0xff]
        %v740 = vmul.f32 %v733, 0.35355338
        %v742 = vlaneseq
        %v743 = vshrl.u32 %v742, 7
        %v744 = vsub.s32 0, %v743
        %v745 = vrot.slane %v651, %v744
        %748 = vrot.lane.b32.xlu0 %v733, 96
        %v749 = vpop.permute.xlu0 %748
        %vm750 = vcmask 64512
        %v752 = vsel %vm750, %v740, 0
        %v754 = vsel %vm750, %v749, 0
        %756 = vmatprep.subr.mxu0 0.0
        %757 = vmatpush1.xpose.msra.mxu0 0.0
        %758 = vmatprep.subr.mxu0 0.0
        %759 = vmatpush1.xpose.msra.mxu0 0.0
        %760 = vmatprep.subr.mxu0 0.0
        %761 = vmatpush1.xpose.msra.mxu0 0.0
        %762 = vmatprep.subr.mxu0 0.0
        %763 = vmatpush1.xpose.msra.mxu0 0.0
        %764 = vmatprep.subr.mxu0 0.0
        %765 = vmatpush1.xpose.msra.mxu0 0.0
        %766 = vmatprep.subr.mxu0 0.0
        %767 = vmatpush1.xpose.msra.mxu0 0.0
        %768 = vmatprep.subr.mxu0 0.0
        %769 = vmatpush1.xpose.msra.mxu0 0.0
        %770 = vmatprep.subr.mxu0 0.0
        %771 = vmatpush1.xpose.msra.mxu0 0.0
        %772 = vmatprep.subr.mxu0 0.0
        %773 = vmatpush1.xpose.msra.mxu0 0.0
        %774 = vmatprep.subr.mxu0 0.0
        %775 = vmatpush1.xpose.msra.mxu0 0.0
        %776 = vmatprep.subr.mxu0 0.0
        %777 = vmatpush1.xpose.msra.mxu0 0.0
        %778 = vmatprep.subr.mxu0 0.0
        %779 = vmatpush1.xpose.msra.mxu0 0.0
        %780 = vmatprep.subr.mxu0 0.0
        %781 = vmatpush1.xpose.msra.mxu0 0.0
        %782 = vmatprep.subr.mxu0 0.0
        %783 = vmatpush1.xpose.msra.mxu0 0.0
        %784 = vmatprep.subr.mxu0 0.0
        %785 = vmatpush1.xpose.msra.mxu0 0.0
        %786 = vmatprep.subr.mxu0 0.0
        %787 = vmatpush1.xpose.msra.mxu0 %v754
        %788 = vmatprep.subr.mxu0 0.0
        %789 = vmatpush2.xpose.msra.mxu0 0.0
        %790 = vmatprep.subr.mxu0 0.0
        %791 = vmatpush2.xpose.msra.mxu0 0.0
        %792 = vmatprep.subr.mxu0 0.0
        %793 = vmatpush2.xpose.msra.mxu0 0.0
        %794 = vmatprep.subr.mxu0 0.0
        %795 = vmatpush2.xpose.msra.mxu0 0.0
        %796 = vmatprep.subr.mxu0 0.0
        %797 = vmatpush2.xpose.msra.mxu0 0.0
        %798 = vmatprep.subr.mxu0 0.0
        %799 = vmatpush2.xpose.msra.mxu0 0.0
        %800 = vmatprep.subr.mxu0 0.0
        %801 = vmatpush2.xpose.msra.mxu0 0.0
        %802 = vmatprep.subr.mxu0 0.0
        %803 = vmatpush2.xpose.msra.mxu0 0.0
        %804 = vmatprep.subr.mxu0 0.0
        %805 = vmatpush2.xpose.msra.mxu0 0.0
        %806 = vmatprep.subr.mxu0 0.0
        %807 = vmatpush2.xpose.msra.mxu0 0.0
        %808 = vmatprep.subr.mxu0 0.0
        %809 = vmatpush2.xpose.msra.mxu0 0.0
        %810 = vmatprep.subr.mxu0 0.0
        %811 = vmatpush2.xpose.msra.mxu0 0.0
        %812 = vmatprep.subr.mxu0 0.0
        %813 = vmatpush2.xpose.msra.mxu0 0.0
        %814 = vmatprep.subr.mxu0 0.0
        %815 = vmatpush2.xpose.msra.mxu0 0.0
        %816 = vmatprep.subr.mxu0 0.0
        %817 = vmatpush2.xpose.msra.mxu0 0.0
        %818 = vmatprep.subr.mxu0 0.0
        %819 = vmatpush2.xpose.msra.mxu0 0.0
        %820 = vmatprep.mubr.f32.mxu0 0.0
        %821 = vmatmul.mubr.f32.gmra.mxu0 %v752
        %v822 = vpop.f32.mrf.mxu0
        %v823 = vadd.f32 %v745, %v822
        %v824 = vpop.f32.mrf.mxu0
        %825 = vdwg.mxu0
        %v826 = vsel %vm750, %v823, -inf
        %827 = vmax.xlane.f32.xlu0 %v826
        %v828 = vpop.xlane.xlu0 %827
        %v829 = vsub.f32 %v823, %v828
        %v830 = vmul.f32 %v829, 1.442695
        %v831 = vpow.pop %v830
        %v832 = vsel %vm750, %v831, 0.0
        %833 = vadd.xlane.f32.xlu0 %v832
        %v834 = vpop.xlane.xlu0 %833
        %v835 = vrcp.pop %v834
        %v836 = vmul.f32 %v831, %v835
        %837 = vrot.lane.b32.xlu0 %v733, 64
        %v838 = vpop.permute.xlu0 %837
        %v841 = vsel %vm750, %v836, 0
        %843 = vmatprep.subr.mxu0 0.0
        %844 = vmatpush1.msra.mxu0 0.0
        %845 = vmatprep.subr.mxu0 0.0
        %846 = vmatpush1.msra.mxu0 0.0
        %847 = vmatprep.subr.mxu0 0.0
        %848 = vmatpush1.msra.mxu0 0.0
        %849 = vmatprep.subr.mxu0 0.0
        %850 = vmatpush1.msra.mxu0 0.0
        %851 = vmatprep.subr.mxu0 0.0
        %852 = vmatpush1.msra.mxu0 0.0
        %853 = vmatprep.subr.mxu0 0.0
        %854 = vmatpush1.msra.mxu0 0.0
        %855 = vmatprep.subr.mxu0 0.0
        %856 = vmatpush1.msra.mxu0 0.0
        %857 = vmatprep.subr.mxu0 0.0
        %858 = vmatpush1.msra.mxu0 0.0
        %859 = vmatprep.subr.mxu0 0.0
        %860 = vmatpush1.msra.mxu0 0.0
        %861 = vmatprep.subr.mxu0 0.0
        %862 = vmatpush1.msra.mxu0 0.0
        %863 = vmatprep.subr.mxu0 0.0
        %864 = vmatpush1.msra.mxu0 0.0
        %865 = vmatprep.subr.mxu0 0.0
        %866 = vmatpush1.msra.mxu0 0.0
        %867 = vmatprep.subr.mxu0 0.0
        %868 = vmatpush1.msra.mxu0 0.0
        %869 = vmatprep.subr.mxu0 0.0
        %870 = vmatpush1.msra.mxu0 0.0
        %871 = vmatprep.subr.mxu0 0.0
        %872 = vmatpush1.msra.mxu0 0.0
        %873 = vmatprep.subr.mxu0 0.0
        %874 = vmatpush1.msra.mxu0 %v838
        %875 = vmatprep.subr.mxu0 0.0
        %876 = vmatpush2.msra.mxu0 0.0
        %877 = vmatprep.subr.mxu0 0.0
        %878 = vmatpush2.msra.mxu0 0.0
        %879 = vmatprep.subr.mxu0 0.0
        %880 = vmatpush2.msra.mxu0 0.0
        %881 = vmatprep.subr.mxu0 0.0
        %882 = vmatpush2.msra.mxu0 0.0
        %883 = vmatprep.subr.mxu0 0.0
        %884 = vmatpush2.msra.mxu0 0.0
        %885 = vmatprep.subr.mxu0 0.0
        %886 = vmatpush2.msra.mxu0 0.0
        %887 = vmatprep.subr.mxu0 0.0
        %888 = vmatpush2.msra.mxu0 0.0
        %889 = vmatprep.subr.mxu0 0.0
        %890 = vmatpush2.msra.mxu0 0.0
        %891 = vmatprep.subr.mxu0 0.0
        %892 = vmatpush2.msra.mxu0 0.0
        %893 = vmatprep.subr.mxu0 0.0
        %894 = vmatpush2.msra.mxu0 0.0
        %895 = vmatprep.subr.mxu0 0.0
        %896 = vmatpush2.msra.mxu0 0.0
        %897 = vmatprep.subr.mxu0 0.0
        %898 = vmatpush2.msra.mxu0 0.0
        %899 = vmatprep.subr.mxu0 0.0
        %900 = vmatpush2.msra.mxu0 0.0
        %901 = vmatprep.subr.mxu0 0.0
        %902 = vmatpush2.msra.mxu0 0.0
        %903 = vmatprep.subr.mxu0 0.0
        %904 = vmatpush2.msra.mxu0 0.0
        %905 = vmatprep.subr.mxu0 0.0
        %906 = vmatpush2.msra.mxu0 0.0
        %907 = vmatprep.mubr.f32.mxu0 0.0
        %908 = vmatmul.mubr.f32.gmra.mxu0 %v841
        %v909 = vpop.f32.mrf.mxu0
        %v910 = vadd.f32 0.0, %v909
        %v911 = vpop.f32.mrf.mxu0
        %912 = vdwg.mxu0
        %913 = vrot.lane.b32.xlu0 %v740, 120
        %v914 = vpop.permute.xlu0 %913
        %915 = vrot.lane.b32.xlu0 %v733, 88
        %v916 = vpop.permute.xlu0 %915
        %v917 = vsel %vm750, %v914, 0
        %v919 = vsel %vm750, %v916, 0
        %921 = vmatprep.subr.mxu0 0.0
        %922 = vmatpush1.xpose.msra.mxu0 0.0
        %923 = vmatprep.subr.mxu0 0.0
        %924 = vmatpush1.xpose.msra.mxu0 0.0
        %925 = vmatprep.subr.mxu0 0.0
        %926 = vmatpush1.xpose.msra.mxu0 0.0
        %927 = vmatprep.subr.mxu0 0.0
        %928 = vmatpush1.xpose.msra.mxu0 0.0
        %929 = vmatprep.subr.mxu0 0.0
        %930 = vmatpush1.xpose.msra.mxu0 0.0
        %931 = vmatprep.subr.mxu0 0.0
        %932 = vmatpush1.xpose.msra.mxu0 0.0
        %933 = vmatprep.subr.mxu0 0.0
        %934 = vmatpush1.xpose.msra.mxu0 0.0
        %935 = vmatprep.subr.mxu0 0.0
        %936 = vmatpush1.xpose.msra.mxu0 0.0
        %937 = vmatprep.subr.mxu0 0.0
        %938 = vmatpush1.xpose.msra.mxu0 0.0
        %939 = vmatprep.subr.mxu0 0.0
        %940 = vmatpush1.xpose.msra.mxu0 0.0
        %941 = vmatprep.subr.mxu0 0.0
        %942 = vmatpush1.xpose.msra.mxu0 0.0
        %943 = vmatprep.subr.mxu0 0.0
        %944 = vmatpush1.xpose.msra.mxu0 0.0
        %945 = vmatprep.subr.mxu0 0.0
        %946 = vmatpush1.xpose.msra.mxu0 0.0
        %947 = vmatprep.subr.mxu0 0.0
        %948 = vmatpush1.xpose.msra.mxu0 0.0
        %949 = vmatprep.subr.mxu0 0.0
        %950 = vmatpush1.xpose.msra.mxu0 0.0
        %951 = vmatprep.subr.mxu0 0.0
        %952 = vmatpush1.xpose.msra.mxu0 %v919
        %953 = vmatprep.subr.mxu0 0.0
        %954 = vmatpush2.xpose.msra.mxu0 0.0
        %955 = vmatprep.subr.mxu0 0.0
        %956 = vmatpush2.xpose.msra.mxu0 0.0
        %957 = vmatprep.subr.mxu0 0.0
        %958 = vmatpush2.xpose.msra.mxu0 0.0
        %959 = vmatprep.subr.mxu0 0.0
        %960 = vmatpush2.xpose.msra.mxu0 0.0
        %961 = vmatprep.subr.mxu0 0.0
        %962 = vmatpush2.xpose.msra.mxu0 0.0
        %963 = vmatprep.subr.mxu0 0.0
        %964 = vmatpush2.xpose.msra.mxu0 0.0
        %965 = vmatprep.subr.mxu0 0.0
        %966 = vmatpush2.xpose.msra.mxu0 0.0
        %967 = vmatprep.subr.mxu0 0.0
        %968 = vmatpush2.xpose.msra.mxu0 0.0
        %969 = vmatprep.subr.mxu0 0.0
        %970 = vmatpush2.xpose.msra.mxu0 0.0
        %971 = vmatprep.subr.mxu0 0.0
        %972 = vmatpush2.xpose.msra.mxu0 0.0
        %973 = vmatprep.subr.mxu0 0.0
        %974 = vmatpush2.xpose.msra.mxu0 0.0
        %975 = vmatprep.subr.mxu0 0.0
        %976 = vmatpush2.xpose.msra.mxu0 0.0
        %977 = vmatprep.subr.mxu0 0.0
        %978 = vmatpush2.xpose.msra.mxu0 0.0
        %979 = vmatprep.subr.mxu0 0.0
        %980 = vmatpush2.xpose.msra.mxu0 0.0
        %981 = vmatprep.subr.mxu0 0.0
        %982 = vmatpush2.xpose.msra.mxu0 0.0
        %983 = vmatprep.subr.mxu0 0.0
        %984 = vmatpush2.xpose.msra.mxu0 0.0
        %985 = vmatprep.mubr.f32.mxu0 0.0
        %986 = vmatmul.mubr.f32.gmra.mxu0 %v917
        %v987 = vpop.f32.mrf.mxu0
        %v988 = vadd.f32 %v745, %v987
        %v989 = vpop.f32.mrf.mxu0
        %990 = vdwg.mxu0
        %v991 = vsel %vm750, %v988, -inf
        %992 = vmax.xlane.f32.xlu0 %v991
        %v993 = vpop.xlane.xlu0 %992
        %v994 = vsub.f32 %v988, %v993
        %v995 = vmul.f32 %v994, 1.442695
        %v996 = vpow.pop %v995
        %v997 = vsel %vm750, %v996, 0.0
        %998 = vadd.xlane.f32.xlu0 %v997
        %v999 = vpop.xlane.xlu0 %998
        %v1000 = vrcp.pop %v999
        %v1001 = vmul.f32 %v996, %v1000
        %1002 = vrot.lane.b32.xlu0 %v733, 56
        %v1003 = vpop.permute.xlu0 %1002
        %v1006 = vsel %vm750, %v1001, 0
        %1008 = vmatprep.subr.mxu0 0.0
        %1009 = vmatpush1.msra.mxu0 0.0
        %1010 = vmatprep.subr.mxu0 0.0
        %1011 = vmatpush1.msra.mxu0 0.0
        %1012 = vmatprep.subr.mxu0 0.0
        %1013 = vmatpush1.msra.mxu0 0.0
        %1014 = vmatprep.subr.mxu0 0.0
        %1015 = vmatpush1.msra.mxu0 0.0
        %1016 = vmatprep.subr.mxu0 0.0
        %1017 = vmatpush1.msra.mxu0 0.0
        %1018 = vmatprep.subr.mxu0 0.0
        %1019 = vmatpush1.msra.mxu0 0.0
        %1020 = vmatprep.subr.mxu0 0.0
        %1021 = vmatpush1.msra.mxu0 0.0
        %1022 = vmatprep.subr.mxu0 0.0
        %1023 = vmatpush1.msra.mxu0 0.0
        %1024 = vmatprep.subr.mxu0 0.0
        %1025 = vmatpush1.msra.mxu0 0.0
        %1026 = vmatprep.subr.mxu0 0.0
        %1027 = vmatpush1.msra.mxu0 0.0
        %1028 = vmatprep.subr.mxu0 0.0
        %1029 = vmatpush1.msra.mxu0 0.0
        %1030 = vmatprep.subr.mxu0 0.0
        %1031 = vmatpush1.msra.mxu0 0.0
        %1032 = vmatprep.subr.mxu0 0.0
        %1033 = vmatpush1.msra.mxu0 0.0
        %1034 = vmatprep.subr.mxu0 0.0
        %1035 = vmatpush1.msra.mxu0 0.0
        %1036 = vmatprep.subr.mxu0 0.0
        %1037 = vmatpush1.msra.mxu0 0.0
        %1038 = vmatprep.subr.mxu0 0.0
        %1039 = vmatpush1.msra.mxu0 %v1003
        %1040 = vmatprep.subr.mxu0 0.0
        %1041 = vmatpush2.msra.mxu0 0.0
        %1042 = vmatprep.subr.mxu0 0.0
        %1043 = vmatpush2.msra.mxu0 0.0
        %1044 = vmatprep.subr.mxu0 0.0
        %1045 = vmatpush2.msra.mxu0 0.0
        %1046 = vmatprep.subr.mxu0 0.0
        %1047 = vmatpush2.msra.mxu0 0.0
        %1048 = vmatprep.subr.mxu0 0.0
        %1049 = vmatpush2.msra.mxu0 0.0
        %1050 = vmatprep.subr.mxu0 0.0
        %1051 = vmatpush2.msra.mxu0 0.0
        %1052 = vmatprep.subr.mxu0 0.0
        %1053 = vmatpush2.msra.mxu0 0.0
        %1054 = vmatprep.subr.mxu0 0.0
        %1055 = vmatpush2.msra.mxu0 0.0
        %1056 = vmatprep.subr.mxu0 0.0
        %1057 = vmatpush2.msra.mxu0 0.0
        %1058 = vmatprep.subr.mxu0 0.0
        %1059 = vmatpush2.msra.mxu0 0.0
        %1060 = vmatprep.subr.mxu0 0.0
        %1061 = vmatpush2.msra.mxu0 0.0
        %1062 = vmatprep.subr.mxu0 0.0
        %1063 = vmatpush2.msra.mxu0 0.0
        %1064 = vmatprep.subr.mxu0 0.0
        %1065 = vmatpush2.msra.mxu0 0.0
        %1066 = vmatprep.subr.mxu0 0.0
        %1067 = vmatpush2.msra.mxu0 0.0
        %1068 = vmatprep.subr.mxu0 0.0
        %1069 = vmatpush2.msra.mxu0 0.0
        %1070 = vmatprep.subr.mxu0 0.0
        %1071 = vmatpush2.msra.mxu0 0.0
        %1072 = vmatprep.mubr.f32.mxu0 0.0
        %1073 = vmatmul.mubr.f32.gmra.mxu0 %v1006
        %v1074 = vpop.f32.mrf.mxu0
        %v1075 = vadd.f32 0.0, %v1074
        %v1076 = vpop.f32.mrf.mxu0
        %1077 = vdwg.mxu0
        %v1079 = vsel %vm750, %v1075, 0
        %1081 = vmatprep.subr.mxu0 0.0
        %1082 = vmatpush1.msra.mxu0 0.0
        %1083 = vmatprep.subr.mxu0 0.0
        %1084 = vmatpush1.msra.mxu0 0.0
        %1085 = vmatprep.subr.mxu0 0.0
        %1086 = vmatpush1.msra.mxu0 0.0
        %1087 = vmatprep.subr.mxu0 0.0
        %1088 = vmatpush1.msra.mxu0 0.0
        %1089 = vmatprep.subr.mxu0 0.0
        %1090 = vmatpush1.msra.mxu0 0.0
        %1091 = vmatprep.subr.mxu0 0.0
        %1092 = vmatpush1.msra.mxu0 0.0
        %1093 = vmatprep.subr.mxu0 0.0
        %1094 = vmatpush1.msra.mxu0 0.0
        %1095 = vmatprep.subr.mxu0 0.0
        %1096 = vmatpush1.msra.mxu0 0.0
        %1097 = vmatprep.subr.mxu0 0.0
        %1098 = vmatpush1.msra.mxu0 0.0
        %1099 = vmatprep.subr.mxu0 0.0
        %1100 = vmatpush1.msra.mxu0 0.0
        %1101 = vmatprep.subr.mxu0 0.0
        %1102 = vmatpush1.msra.mxu0 0.0
        %1103 = vmatprep.subr.mxu0 0.0
        %1104 = vmatpush1.msra.mxu0 0.0
        %1105 = vmatprep.subr.mxu0 0.0
        %1106 = vmatpush1.msra.mxu0 0.0
        %1107 = vmatprep.subr.mxu0 0.0
        %1108 = vmatpush1.msra.mxu0 0.0
        %1109 = vmatprep.subr.mxu0 0.0
        %1110 = vmatpush1.msra.mxu0 0.0
        %1111 = vmatprep.subr.mxu0 0.0
        %1112 = vmatpush1.msra.mxu0 %v737
        %1113 = vmatprep.subr.mxu0 0.0
        %1114 = vmatpush2.msra.mxu0 0.0
        %1115 = vmatprep.subr.mxu0 0.0
        %1116 = vmatpush2.msra.mxu0 0.0
        %1117 = vmatprep.subr.mxu0 0.0
        %1118 = vmatpush2.msra.mxu0 0.0
        %1119 = vmatprep.subr.mxu0 0.0
        %1120 = vmatpush2.msra.mxu0 0.0
        %1121 = vmatprep.subr.mxu0 0.0
        %1122 = vmatpush2.msra.mxu0 0.0
        %1123 = vmatprep.subr.mxu0 0.0
        %1124 = vmatpush2.msra.mxu0 0.0
        %1125 = vmatprep.subr.mxu0 0.0
        %1126 = vmatpush2.msra.mxu0 0.0
        %1127 = vmatprep.subr.mxu0 0.0
        %1128 = vmatpush2.msra.mxu0 0.0
        %1129 = vmatprep.subr.mxu0 0.0
        %1130 = vmatpush2.msra.mxu0 0.0
        %1131 = vmatprep.subr.mxu0 0.0
        %1132 = vmatpush2.msra.mxu0 0.0
        %1133 = vmatprep.subr.mxu0 0.0
        %1134 = vmatpush2.msra.mxu0 0.0
        %1135 = vmatprep.subr.mxu0 0.0
        %1136 = vmatpush2.msra.mxu0 0.0
        %1137 = vmatprep.subr.mxu0 0.0
        %1138 = vmatpush2.msra.mxu0 0.0
        %1139 = vmatprep.subr.mxu0 0.0
        %1140 = vmatpush2.msra.mxu0 0.0
        %1141 = vmatprep.subr.mxu0 0.0
        %1142 = vmatpush2.msra.mxu0 0.0
        %1143 = vmatprep.subr.mxu0 0.0
        %1144 = vmatpush2.msra.mxu0 0.0
        %1145 = vmatprep.mubr.f32.mxu0 0.0
        %1146 = vmatmul.mubr.f32.gmra.mxu0 %v1079
        %v1147 = vpop.f32.mrf.mxu0
        %v1148 = vadd.f32 0.0, %v1147
        %v1149 = vpop.f32.mrf.mxu0
        %1150 = vdwg.mxu0
        %v1152 = vsel %vm750, %v910, 0
        %1154 = vmatprep.subr.mxu0 0.0
        %1155 = vmatpush1.msra.mxu0 0.0
        %1156 = vmatprep.subr.mxu0 0.0
        %1157 = vmatpush1.msra.mxu0 0.0
        %1158 = vmatprep.subr.mxu0 0.0
        %1159 = vmatpush1.msra.mxu0 0.0
        %1160 = vmatprep.subr.mxu0 0.0
        %1161 = vmatpush1.msra.mxu0 0.0
        %1162 = vmatprep.subr.mxu0 0.0
        %1163 = vmatpush1.msra.mxu0 0.0
        %1164 = vmatprep.subr.mxu0 0.0
        %1165 = vmatpush1.msra.mxu0 0.0
        %1166 = vmatprep.subr.mxu0 0.0
        %1167 = vmatpush1.msra.mxu0 0.0
        %1168 = vmatprep.subr.mxu0 0.0
        %1169 = vmatpush1.msra.mxu0 0.0
        %1170 = vmatprep.subr.mxu0 0.0
        %1171 = vmatpush1.msra.mxu0 0.0
        %1172 = vmatprep.subr.mxu0 0.0
        %1173 = vmatpush1.msra.mxu0 0.0
        %1174 = vmatprep.subr.mxu0 0.0
        %1175 = vmatpush1.msra.mxu0 0.0
        %1176 = vmatprep.subr.mxu0 0.0
        %1177 = vmatpush1.msra.mxu0 0.0
        %1178 = vmatprep.subr.mxu0 0.0
        %1179 = vmatpush1.msra.mxu0 0.0
        %1180 = vmatprep.subr.mxu0 0.0
        %1181 = vmatpush1.msra.mxu0 0.0
        %1182 = vmatprep.subr.mxu0 0.0
        %1183 = vmatpush1.msra.mxu0 0.0
        %1184 = vmatprep.subr.mxu0 0.0
        %1185 = vmatpush1.msra.mxu0 %v736
        %1186 = vmatprep.subr.mxu0 0.0
        %1187 = vmatpush2.msra.mxu0 0.0
        %1188 = vmatprep.subr.mxu0 0.0
        %1189 = vmatpush2.msra.mxu0 0.0
        %1190 = vmatprep.subr.mxu0 0.0
        %1191 = vmatpush2.msra.mxu0 0.0
        %1192 = vmatprep.subr.mxu0 0.0
        %1193 = vmatpush2.msra.mxu0 0.0
        %1194 = vmatprep.subr.mxu0 0.0
        %1195 = vmatpush2.msra.mxu0 0.0
        %1196 = vmatprep.subr.mxu0 0.0
        %1197 = vmatpush2.msra.mxu0 0.0
        %1198 = vmatprep.subr.mxu0 0.0
        %1199 = vmatpush2.msra.mxu0 0.0
        %1200 = vmatprep.subr.mxu0 0.0
        %1201 = vmatpush2.msra.mxu0 0.0
        %1202 = vmatprep.subr.mxu0 0.0
        %1203 = vmatpush2.msra.mxu0 0.0
        %1204 = vmatprep.subr.mxu0 0.0
        %1205 = vmatpush2.msra.mxu0 0.0
        %1206 = vmatprep.subr.mxu0 0.0
        %1207 = vmatpush2.msra.mxu0 0.0
        %1208 = vmatprep.subr.mxu0 0.0
        %1209 = vmatpush2.msra.mxu0 0.0
        %1210 = vmatprep.subr.mxu0 0.0
        %1211 = vmatpush2.msra.mxu0 0.0
        %1212 = vmatprep.subr.mxu0 0.0
        %1213 = vmatpush2.msra.mxu0 0.0
        %1214 = vmatprep.subr.mxu0 0.0
        %1215 = vmatpush2.msra.mxu0 0.0
        %1216 = vmatprep.subr.mxu0 0.0
        %1217 = vmatpush2.msra.mxu0 0.0
        %1218 = vmatprep.mubr.f32.mxu0 0.0
        %1219 = vmatmul.mubr.f32.gmra.mxu0 %v1152
        %v1220 = vpop.f32.mrf.mxu0
        %v1221 = vadd.f32 %v1148, %v1220
        %v1222 = vpop.f32.mrf.mxu0
        %1223 = vdwg.mxu0
        %1224 = vrot.lane.b32.xlu0 %v740, 112
        %v1225 = vpop.permute.xlu0 %1224
        %1226 = vrot.lane.b32.xlu0 %v733, 80
        %v1227 = vpop.permute.xlu0 %1226
        %v1228 = vsel %vm750, %v1225, 0
        %v1230 = vsel %vm750, %v1227, 0
        %1232 = vmatprep.subr.mxu0 0.0
        %1233 = vmatpush1.xpose.msra.mxu0 0.0
        %1234 = vmatprep.subr.mxu0 0.0
        %1235 = vmatpush1.xpose.msra.mxu0 0.0
        %1236 = vmatprep.subr.mxu0 0.0
        %1237 = vmatpush1.xpose.msra.mxu0 0.0
        %1238 = vmatprep.subr.mxu0 0.0
        %1239 = vmatpush1.xpose.msra.mxu0 0.0
        %1240 = vmatprep.subr.mxu0 0.0
        %1241 = vmatpush1.xpose.msra.mxu0 0.0
        %1242 = vmatprep.subr.mxu0 0.0
        %1243 = vmatpush1.xpose.msra.mxu0 0.0
        %1244 = vmatprep.subr.mxu0 0.0
        %1245 = vmatpush1.xpose.msra.mxu0 0.0
        %1246 = vmatprep.subr.mxu0 0.0
        %1247 = vmatpush1.xpose.msra.mxu0 0.0
        %1248 = vmatprep.subr.mxu0 0.0
        %1249 = vmatpush1.xpose.msra.mxu0 0.0
        %1250 = vmatprep.subr.mxu0 0.0
        %1251 = vmatpush1.xpose.msra.mxu0 0.0
        %1252 = vmatprep.subr.mxu0 0.0
        %1253 = vmatpush1.xpose.msra.mxu0 0.0
        %1254 = vmatprep.subr.mxu0 0.0
        %1255 = vmatpush1.xpose.msra.mxu0 0.0
        %1256 = vmatprep.subr.mxu0 0.0
        %1257 = vmatpush1.xpose.msra.mxu0 0.0
        %1258 = vmatprep.subr.mxu0 0.0
        %1259 = vmatpush1.xpose.msra.mxu0 0.0
        %1260 = vmatprep.subr.mxu0 0.0
        %1261 = vmatpush1.xpose.msra.mxu0 0.0
        %1262 = vmatprep.subr.mxu0 0.0
        %1263 = vmatpush1.xpose.msra.mxu0 %v1230
        %1264 = vmatprep.subr.mxu0 0.0
        %1265 = vmatpush2.xpose.msra.mxu0 0.0
        %1266 = vmatprep.subr.mxu0 0.0
        %1267 = vmatpush2.xpose.msra.mxu0 0.0
        %1268 = vmatprep.subr.mxu0 0.0
        %1269 = vmatpush2.xpose.msra.mxu0 0.0
        %1270 = vmatprep.subr.mxu0 0.0
        %1271 = vmatpush2.xpose.msra.mxu0 0.0
        %1272 = vmatprep.subr.mxu0 0.0
        %1273 = vmatpush2.xpose.msra.mxu0 0.0
        %1274 = vmatprep.subr.mxu0 0.0
        %1275 = vmatpush2.xpose.msra.mxu0 0.0
        %1276 = vmatprep.subr.mxu0 0.0
        %1277 = vmatpush2.xpose.msra.mxu0 0.0
        %1278 = vmatprep.subr.mxu0 0.0
        %1279 = vmatpush2.xpose.msra.mxu0 0.0
        %1280 = vmatprep.subr.mxu0 0.0
        %1281 = vmatpush2.xpose.msra.mxu0 0.0
        %1282 = vmatprep.subr.mxu0 0.0
        %1283 = vmatpush2.xpose.msra.mxu0 0.0
        %1284 = vmatprep.subr.mxu0 0.0
        %1285 = vmatpush2.xpose.msra.mxu0 0.0
        %1286 = vmatprep.subr.mxu0 0.0
        %1287 = vmatpush2.xpose.msra.mxu0 0.0
        %1288 = vmatprep.subr.mxu0 0.0
        %1289 = vmatpush2.xpose.msra.mxu0 0.0
        %1290 = vmatprep.subr.mxu0 0.0
        %1291 = vmatpush2.xpose.msra.mxu0 0.0
        %1292 = vmatprep.subr.mxu0 0.0
        %1293 = vmatpush2.xpose.msra.mxu0 0.0
        %1294 = vmatprep.subr.mxu0 0.0
        %1295 = vmatpush2.xpose.msra.mxu0 0.0
        %1296 = vmatprep.mubr.f32.mxu0 0.0
        %1297 = vmatmul.mubr.f32.gmra.mxu0 %v1228
        %v1298 = vpop.f32.mrf.mxu0
        %v1299 = vadd.f32 %v745, %v1298
        %v1300 = vpop.f32.mrf.mxu0
        %1301 = vdwg.mxu0
        %v1302 = vsel %vm750, %v1299, -inf
        %1303 = vmax.xlane.f32.xlu0 %v1302
        %v1304 = vpop.xlane.xlu0 %1303
        %v1305 = vsub.f32 %v1299, %v1304
        %v1306 = vmul.f32 %v1305, 1.442695
        %v1307 = vpow.pop %v1306
        %v1308 = vsel %vm750, %v1307, 0.0
        %1309 = vadd.xlane.f32.xlu0 %v1308
        %v1310 = vpop.xlane.xlu0 %1309
        %v1311 = vrcp.pop %v1310
        %v1312 = vmul.f32 %v1307, %v1311
        %1313 = vrot.lane.b32.xlu0 %v733, 48
        %v1314 = vpop.permute.xlu0 %1313
        %v1317 = vsel %vm750, %v1312, 0
        %1319 = vmatprep.subr.mxu0 0.0
        %1320 = vmatpush1.msra.mxu0 0.0
        %1321 = vmatprep.subr.mxu0 0.0
        %1322 = vmatpush1.msra.mxu0 0.0
        %1323 = vmatprep.subr.mxu0 0.0
        %1324 = vmatpush1.msra.mxu0 0.0
        %1325 = vmatprep.subr.mxu0 0.0
        %1326 = vmatpush1.msra.mxu0 0.0
        %1327 = vmatprep.subr.mxu0 0.0
        %1328 = vmatpush1.msra.mxu0 0.0
        %1329 = vmatprep.subr.mxu0 0.0
        %1330 = vmatpush1.msra.mxu0 0.0
        %1331 = vmatprep.subr.mxu0 0.0
        %1332 = vmatpush1.msra.mxu0 0.0
        %1333 = vmatprep.subr.mxu0 0.0
        %1334 = vmatpush1.msra.mxu0 0.0
        %1335 = vmatprep.subr.mxu0 0.0
        %1336 = vmatpush1.msra.mxu0 0.0
        %1337 = vmatprep.subr.mxu0 0.0
        %1338 = vmatpush1.msra.mxu0 0.0
        %1339 = vmatprep.subr.mxu0 0.0
        %1340 = vmatpush1.msra.mxu0 0.0
        %1341 = vmatprep.subr.mxu0 0.0
        %1342 = vmatpush1.msra.mxu0 0.0
        %1343 = vmatprep.subr.mxu0 0.0
        %1344 = vmatpush1.msra.mxu0 0.0
        %1345 = vmatprep.subr.mxu0 0.0
        %1346 = vmatpush1.msra.mxu0 0.0
        %1347 = vmatprep.subr.mxu0 0.0
        %1348 = vmatpush1.msra.mxu0 0.0
        %1349 = vmatprep.subr.mxu0 0.0
        %1350 = vmatpush1.msra.mxu0 %v1314
        %1351 = vmatprep.subr.mxu0 0.0
        %1352 = vmatpush2.msra.mxu0 0.0
        %1353 = vmatprep.subr.mxu0 0.0
        %1354 = vmatpush2.msra.mxu0 0.0
        %1355 = vmatprep.subr.mxu0 0.0
        %1356 = vmatpush2.msra.mxu0 0.0
        %1357 = vmatprep.subr.mxu0 0.0
        %1358 = vmatpush2.msra.mxu0 0.0
        %1359 = vmatprep.subr.mxu0 0.0
        %1360 = vmatpush2.msra.mxu0 0.0
        %1361 = vmatprep.subr.mxu0 0.0
        %1362 = vmatpush2.msra.mxu0 0.0
        %1363 = vmatprep.subr.mxu0 0.0
        %1364 = vmatpush2.msra.mxu0 0.0
        %1365 = vmatprep.subr.mxu0 0.0
        %1366 = vmatpush2.msra.mxu0 0.0
        %1367 = vmatprep.subr.mxu0 0.0
        %1368 = vmatpush2.msra.mxu0 0.0
        %1369 = vmatprep.subr.mxu0 0.0
        %1370 = vmatpush2.msra.mxu0 0.0
        %1371 = vmatprep.subr.mxu0 0.0
        %1372 = vmatpush2.msra.mxu0 0.0
        %1373 = vmatprep.subr.mxu0 0.0
        %1374 = vmatpush2.msra.mxu0 0.0
        %1375 = vmatprep.subr.mxu0 0.0
        %1376 = vmatpush2.msra.mxu0 0.0
        %1377 = vmatprep.subr.mxu0 0.0
        %1378 = vmatpush2.msra.mxu0 0.0
        %1379 = vmatprep.subr.mxu0 0.0
        %1380 = vmatpush2.msra.mxu0 0.0
        %1381 = vmatprep.subr.mxu0 0.0
        %1382 = vmatpush2.msra.mxu0 0.0
        %1383 = vmatprep.mubr.f32.mxu0 0.0
        %1384 = vmatmul.mubr.f32.gmra.mxu0 %v1317
        %v1385 = vpop.f32.mrf.mxu0
        %v1386 = vadd.f32 0.0, %v1385
        %v1387 = vpop.f32.mrf.mxu0
        %1388 = vdwg.mxu0
        %v1390 = vsel %vm750, %v1386, 0
        %1392 = vmatprep.subr.mxu0 0.0
        %1393 = vmatpush1.msra.mxu0 0.0
        %1394 = vmatprep.subr.mxu0 0.0
        %1395 = vmatpush1.msra.mxu0 0.0
        %1396 = vmatprep.subr.mxu0 0.0
        %1397 = vmatpush1.msra.mxu0 0.0
        %1398 = vmatprep.subr.mxu0 0.0
        %1399 = vmatpush1.msra.mxu0 0.0
        %1400 = vmatprep.subr.mxu0 0.0
        %1401 = vmatpush1.msra.mxu0 0.0
        %1402 = vmatprep.subr.mxu0 0.0
        %1403 = vmatpush1.msra.mxu0 0.0
        %1404 = vmatprep.subr.mxu0 0.0
        %1405 = vmatpush1.msra.mxu0 0.0
        %1406 = vmatprep.subr.mxu0 0.0
        %1407 = vmatpush1.msra.mxu0 0.0
        %1408 = vmatprep.subr.mxu0 0.0
        %1409 = vmatpush1.msra.mxu0 0.0
        %1410 = vmatprep.subr.mxu0 0.0
        %1411 = vmatpush1.msra.mxu0 0.0
        %1412 = vmatprep.subr.mxu0 0.0
        %1413 = vmatpush1.msra.mxu0 0.0
        %1414 = vmatprep.subr.mxu0 0.0
        %1415 = vmatpush1.msra.mxu0 0.0
        %1416 = vmatprep.subr.mxu0 0.0
        %1417 = vmatpush1.msra.mxu0 0.0
        %1418 = vmatprep.subr.mxu0 0.0
        %1419 = vmatpush1.msra.mxu0 0.0
        %1420 = vmatprep.subr.mxu0 0.0
        %1421 = vmatpush1.msra.mxu0 0.0
        %1422 = vmatprep.subr.mxu0 0.0
        %1423 = vmatpush1.msra.mxu0 %v738
        %1424 = vmatprep.subr.mxu0 0.0
        %1425 = vmatpush2.msra.mxu0 0.0
        %1426 = vmatprep.subr.mxu0 0.0
        %1427 = vmatpush2.msra.mxu0 0.0
        %1428 = vmatprep.subr.mxu0 0.0
        %1429 = vmatpush2.msra.mxu0 0.0
        %1430 = vmatprep.subr.mxu0 0.0
        %1431 = vmatpush2.msra.mxu0 0.0
        %1432 = vmatprep.subr.mxu0 0.0
        %1433 = vmatpush2.msra.mxu0 0.0
        %1434 = vmatprep.subr.mxu0 0.0
        %1435 = vmatpush2.msra.mxu0 0.0
        %1436 = vmatprep.subr.mxu0 0.0
        %1437 = vmatpush2.msra.mxu0 0.0
        %1438 = vmatprep.subr.mxu0 0.0
        %1439 = vmatpush2.msra.mxu0 0.0
        %1440 = vmatprep.subr.mxu0 0.0
        %1441 = vmatpush2.msra.mxu0 0.0
        %1442 = vmatprep.subr.mxu0 0.0
        %1443 = vmatpush2.msra.mxu0 0.0
        %1444 = vmatprep.subr.mxu0 0.0
        %1445 = vmatpush2.msra.mxu0 0.0
        %1446 = vmatprep.subr.mxu0 0.0
        %1447 = vmatpush2.msra.mxu0 0.0
        %1448 = vmatprep.subr.mxu0 0.0
        %1449 = vmatpush2.msra.mxu0 0.0
        %1450 = vmatprep.subr.mxu0 0.0
        %1451 = vmatpush2.msra.mxu0 0.0
        %1452 = vmatprep.subr.mxu0 0.0
        %1453 = vmatpush2.msra.mxu0 0.0
        %1454 = vmatprep.subr.mxu0 0.0
        %1455 = vmatpush2.msra.mxu0 0.0
        %1456 = vmatprep.mubr.f32.mxu0 0.0
        %1457 = vmatmul.mubr.f32.gmra.mxu0 %v1390
        %v1458 = vpop.f32.mrf.mxu0
        %v1459 = vadd.f32 0.0, %v1458
        %v1460 = vpop.f32.mrf.mxu0
        %1461 = vdwg.mxu0
        %v1462 = vadd.f32 %v1221, %v1459
        %1463 = vrot.lane.b32.xlu0 %v740, 104
        %v1464 = vpop.permute.xlu0 %1463
        %1465 = vrot.lane.b32.xlu0 %v733, 72
        %v1466 = vpop.permute.xlu0 %1465
        %v1467 = vsel %vm750, %v1464, 0
        %v1469 = vsel %vm750, %v1466, 0
        %1471 = vmatprep.subr.mxu0 0.0
        %1472 = vmatpush1.xpose.msra.mxu0 0.0
        %1473 = vmatprep.subr.mxu0 0.0
        %1474 = vmatpush1.xpose.msra.mxu0 0.0
        %1475 = vmatprep.subr.mxu0 0.0
        %1476 = vmatpush1.xpose.msra.mxu0 0.0
        %1477 = vmatprep.subr.mxu0 0.0
        %1478 = vmatpush1.xpose.msra.mxu0 0.0
        %1479 = vmatprep.subr.mxu0 0.0
        %1480 = vmatpush1.xpose.msra.mxu0 0.0
        %1481 = vmatprep.subr.mxu0 0.0
        %1482 = vmatpush1.xpose.msra.mxu0 0.0
        %1483 = vmatprep.subr.mxu0 0.0
        %1484 = vmatpush1.xpose.msra.mxu0 0.0
        %1485 = vmatprep.subr.mxu0 0.0
        %1486 = vmatpush1.xpose.msra.mxu0 0.0
        %1487 = vmatprep.subr.mxu0 0.0
        %1488 = vmatpush1.xpose.msra.mxu0 0.0
        %1489 = vmatprep.subr.mxu0 0.0
        %1490 = vmatpush1.xpose.msra.mxu0 0.0
        %1491 = vmatprep.subr.mxu0 0.0
        %1492 = vmatpush1.xpose.msra.mxu0 0.0
        %1493 = vmatprep.subr.mxu0 0.0
        %1494 = vmatpush1.xpose.msra.mxu0 0.0
        %1495 = vmatprep.subr.mxu0 0.0
        %1496 = vmatpush1.xpose.msra.mxu0 0.0
        %1497 = vmatprep.subr.mxu0 0.0
        %1498 = vmatpush1.xpose.msra.mxu0 0.0
        %1499 = vmatprep.subr.mxu0 0.0
        %1500 = vmatpush1.xpose.msra.mxu0 0.0
        %1501 = vmatprep.subr.mxu0 0.0
        %1502 = vmatpush1.xpose.msra.mxu0 %v1469
        %1503 = vmatprep.subr.mxu0 0.0
        %1504 = vmatpush2.xpose.msra.mxu0 0.0
        %1505 = vmatprep.subr.mxu0 0.0
        %1506 = vmatpush2.xpose.msra.mxu0 0.0
        %1507 = vmatprep.subr.mxu0 0.0
        %1508 = vmatpush2.xpose.msra.mxu0 0.0
        %1509 = vmatprep.subr.mxu0 0.0
        %1510 = vmatpush2.xpose.msra.mxu0 0.0
        %1511 = vmatprep.subr.mxu0 0.0
        %1512 = vmatpush2.xpose.msra.mxu0 0.0
        %1513 = vmatprep.subr.mxu0 0.0
        %1514 = vmatpush2.xpose.msra.mxu0 0.0
        %1515 = vmatprep.subr.mxu0 0.0
        %1516 = vmatpush2.xpose.msra.mxu0 0.0
        %1517 = vmatprep.subr.mxu0 0.0
        %1518 = vmatpush2.xpose.msra.mxu0 0.0
        %1519 = vmatprep.subr.mxu0 0.0
        %1520 = vmatpush2.xpose.msra.mxu0 0.0
        %1521 = vmatprep.subr.mxu0 0.0
        %1522 = vmatpush2.xpose.msra.mxu0 0.0
        %1523 = vmatprep.subr.mxu0 0.0
        %1524 = vmatpush2.xpose.msra.mxu0 0.0
        %1525 = vmatprep.subr.mxu0 0.0
        %1526 = vmatpush2.xpose.msra.mxu0 0.0
        %1527 = vmatprep.subr.mxu0 0.0
        %1528 = vmatpush2.xpose.msra.mxu0 0.0
        %1529 = vmatprep.subr.mxu0 0.0
        %1530 = vmatpush2.xpose.msra.mxu0 0.0
        %1531 = vmatprep.subr.mxu0 0.0
        %1532 = vmatpush2.xpose.msra.mxu0 0.0
        %1533 = vmatprep.subr.mxu0 0.0
        %1534 = vmatpush2.xpose.msra.mxu0 0.0
        %1535 = vmatprep.mubr.f32.mxu0 0.0
        %1536 = vmatmul.mubr.f32.gmra.mxu0 %v1467
        %v1537 = vpop.f32.mrf.mxu0
        %v1538 = vadd.f32 %v745, %v1537
        %v1539 = vpop.f32.mrf.mxu0
        %1540 = vdwg.mxu0
        %v1541 = vsel %vm750, %v1538, -inf
        %1542 = vmax.xlane.f32.xlu0 %v1541
        %v1543 = vpop.xlane.xlu0 %1542
        %v1544 = vsub.f32 %v1538, %v1543
        %v1545 = vmul.f32 %v1544, 1.442695
        %v1546 = vpow.pop %v1545
        %v1547 = vsel %vm750, %v1546, 0.0
        %1548 = vadd.xlane.f32.xlu0 %v1547
        %v1549 = vpop.xlane.xlu0 %1548
        %v1550 = vrcp.pop %v1549
        %v1551 = vmul.f32 %v1546, %v1550
        %1552 = vrot.lane.b32.xlu0 %v733, 40
        %v1553 = vpop.permute.xlu0 %1552
        %v1556 = vsel %vm750, %v1551, 0
        %1558 = vmatprep.subr.mxu0 0.0
        %1559 = vmatpush1.msra.mxu0 0.0
        %1560 = vmatprep.subr.mxu0 0.0
        %1561 = vmatpush1.msra.mxu0 0.0
        %1562 = vmatprep.subr.mxu0 0.0
        %1563 = vmatpush1.msra.mxu0 0.0
        %1564 = vmatprep.subr.mxu0 0.0
        %1565 = vmatpush1.msra.mxu0 0.0
        %1566 = vmatprep.subr.mxu0 0.0
        %1567 = vmatpush1.msra.mxu0 0.0
        %1568 = vmatprep.subr.mxu0 0.0
        %1569 = vmatpush1.msra.mxu0 0.0
        %1570 = vmatprep.subr.mxu0 0.0
        %1571 = vmatpush1.msra.mxu0 0.0
        %1572 = vmatprep.subr.mxu0 0.0
        %1573 = vmatpush1.msra.mxu0 0.0
        %1574 = vmatprep.subr.mxu0 0.0
        %1575 = vmatpush1.msra.mxu0 0.0
        %1576 = vmatprep.subr.mxu0 0.0
        %1577 = vmatpush1.msra.mxu0 0.0
        %1578 = vmatprep.subr.mxu0 0.0
        %1579 = vmatpush1.msra.mxu0 0.0
        %1580 = vmatprep.subr.mxu0 0.0
        %1581 = vmatpush1.msra.mxu0 0.0
        %1582 = vmatprep.subr.mxu0 0.0
        %1583 = vmatpush1.msra.mxu0 0.0
        %1584 = vmatprep.subr.mxu0 0.0
        %1585 = vmatpush1.msra.mxu0 0.0
        %1586 = vmatprep.subr.mxu0 0.0
        %1587 = vmatpush1.msra.mxu0 0.0
        %1588 = vmatprep.subr.mxu0 0.0
        %1589 = vmatpush1.msra.mxu0 %v1553
        %1590 = vmatprep.subr.mxu0 0.0
        %1591 = vmatpush2.msra.mxu0 0.0
        %1592 = vmatprep.subr.mxu0 0.0
        %1593 = vmatpush2.msra.mxu0 0.0
        %1594 = vmatprep.subr.mxu0 0.0
        %1595 = vmatpush2.msra.mxu0 0.0
        %1596 = vmatprep.subr.mxu0 0.0
        %1597 = vmatpush2.msra.mxu0 0.0
        %1598 = vmatprep.subr.mxu0 0.0
        %1599 = vmatpush2.msra.mxu0 0.0
        %1600 = vmatprep.subr.mxu0 0.0
        %1601 = vmatpush2.msra.mxu0 0.0
        %1602 = vmatprep.subr.mxu0 0.0
        %1603 = vmatpush2.msra.mxu0 0.0
        %1604 = vmatprep.subr.mxu0 0.0
        %1605 = vmatpush2.msra.mxu0 0.0
        %1606 = vmatprep.subr.mxu0 0.0
        %1607 = vmatpush2.msra.mxu0 0.0
        %1608 = vmatprep.subr.mxu0 0.0
        %1609 = vmatpush2.msra.mxu0 0.0
        %1610 = vmatprep.subr.mxu0 0.0
        %1611 = vmatpush2.msra.mxu0 0.0
        %1612 = vmatprep.subr.mxu0 0.0
        %1613 = vmatpush2.msra.mxu0 0.0
        %1614 = vmatprep.subr.mxu0 0.0
        %1615 = vmatpush2.msra.mxu0 0.0
        %1616 = vmatprep.subr.mxu0 0.0
        %1617 = vmatpush2.msra.mxu0 0.0
        %1618 = vmatprep.subr.mxu0 0.0
        %1619 = vmatpush2.msra.mxu0 0.0
        %1620 = vmatprep.subr.mxu0 0.0
        %1621 = vmatpush2.msra.mxu0 0.0
        %1622 = vmatprep.mubr.f32.mxu0 0.0
        %1623 = vmatmul.mubr.f32.gmra.mxu0 %v1556
        %v1624 = vpop.f32.mrf.mxu0
        %v1625 = vadd.f32 0.0, %v1624
        %v1626 = vpop.f32.mrf.mxu0
        %1627 = vdwg.mxu0
        %v1629 = vsel %vm750, %v1625, 0
        %1631 = vmatprep.subr.mxu0 0.0
        %1632 = vmatpush1.msra.mxu0 0.0
        %1633 = vmatprep.subr.mxu0 0.0
        %1634 = vmatpush1.msra.mxu0 0.0
        %1635 = vmatprep.subr.mxu0 0.0
        %1636 = vmatpush1.msra.mxu0 0.0
        %1637 = vmatprep.subr.mxu0 0.0
        %1638 = vmatpush1.msra.mxu0 0.0
        %1639 = vmatprep.subr.mxu0 0.0
        %1640 = vmatpush1.msra.mxu0 0.0
        %1641 = vmatprep.subr.mxu0 0.0
        %1642 = vmatpush1.msra.mxu0 0.0
        %1643 = vmatprep.subr.mxu0 0.0
        %1644 = vmatpush1.msra.mxu0 0.0
        %1645 = vmatprep.subr.mxu0 0.0
        %1646 = vmatpush1.msra.mxu0 0.0
        %1647 = vmatprep.subr.mxu0 0.0
        %1648 = vmatpush1.msra.mxu0 0.0
        %1649 = vmatprep.subr.mxu0 0.0
        %1650 = vmatpush1.msra.mxu0 0.0
        %1651 = vmatprep.subr.mxu0 0.0
        %1652 = vmatpush1.msra.mxu0 0.0
        %1653 = vmatprep.subr.mxu0 0.0
        %1654 = vmatpush1.msra.mxu0 0.0
        %1655 = vmatprep.subr.mxu0 0.0
        %1656 = vmatpush1.msra.mxu0 0.0
        %1657 = vmatprep.subr.mxu0 0.0
        %1658 = vmatpush1.msra.mxu0 0.0
        %1659 = vmatprep.subr.mxu0 0.0
        %1660 = vmatpush1.msra.mxu0 0.0
        %1661 = vmatprep.subr.mxu0 0.0
        %1662 = vmatpush1.msra.mxu0 %v739
        %1663 = vmatprep.subr.mxu0 0.0
        %1664 = vmatpush2.msra.mxu0 0.0
        %1665 = vmatprep.subr.mxu0 0.0
        %1666 = vmatpush2.msra.mxu0 0.0
        %1667 = vmatprep.subr.mxu0 0.0
        %1668 = vmatpush2.msra.mxu0 0.0
        %1669 = vmatprep.subr.mxu0 0.0
        %1670 = vmatpush2.msra.mxu0 0.0
        %1671 = vmatprep.subr.mxu0 0.0
        %1672 = vmatpush2.msra.mxu0 0.0
        %1673 = vmatprep.subr.mxu0 0.0
        %1674 = vmatpush2.msra.mxu0 0.0
        %1675 = vmatprep.subr.mxu0 0.0
        %1676 = vmatpush2.msra.mxu0 0.0
        %1677 = vmatprep.subr.mxu0 0.0
        %1678 = vmatpush2.msra.mxu0 0.0
        %1679 = vmatprep.subr.mxu0 0.0
        %1680 = vmatpush2.msra.mxu0 0.0
        %1681 = vmatprep.subr.mxu0 0.0
        %1682 = vmatpush2.msra.mxu0 0.0
        %1683 = vmatprep.subr.mxu0 0.0
        %1684 = vmatpush2.msra.mxu0 0.0
        %1685 = vmatprep.subr.mxu0 0.0
        %1686 = vmatpush2.msra.mxu0 0.0
        %1687 = vmatprep.subr.mxu0 0.0
        %1688 = vmatpush2.msra.mxu0 0.0
        %1689 = vmatprep.subr.mxu0 0.0
        %1690 = vmatpush2.msra.mxu0 0.0
        %1691 = vmatprep.subr.mxu0 0.0
        %1692 = vmatpush2.msra.mxu0 0.0
        %1693 = vmatprep.subr.mxu0 0.0
        %1694 = vmatpush2.msra.mxu0 0.0
        %1695 = vmatprep.mubr.f32.mxu0 0.0
        %1696 = vmatmul.mubr.f32.gmra.mxu0 %v1629
        %v1697 = vpop.f32.mrf.mxu0
        %v1698 = vadd.f32 0.0, %v1697
        %v1699 = vpop.f32.mrf.mxu0
        %1700 = vdwg.mxu0
        %v1701 = vadd.f32 %v1462, %v1698
        %v1702 = vld [vmem:[%s8] sm:$0x1]
        %v1704 = vlaneseq
        %v1705 = vshrl.u32 %v1704, 7
        %v1706 = vsub.s32 0, %v1705
        %v1707 = vrot.slane %v1702, %v1706
        %v1709 = vadd.f32 %v1701, %v1707
        %v1710 = vadd.f32 %v1709, %v648
        %v1711 = vld [vmem:[%s9] sm:$0x1]
        %v1712 = vld [vmem:[%s10] sm:$0x1]
        %v1713 = vsel %vm620, %v1710, 0.0
        %1714 = vadd.xlane.f32.xlu0 %v1713
        %v1715 = vpop.xlane.xlu0 %1714
        %v1716 = vmul.f32 %v1715, %v624
        %v1717 = vsub.f32 %v1710, %v1716
        %v1718 = vmul.f32 %v1717, %v1717
        %v1719 = vsel %vm620, %v1718, 0.0
        %1720 = vadd.xlane.f32.xlu0 %v1719
        %v1721 = vpop.xlane.xlu0 %1720
        %v1722 = vmul.f32 %v1721, %v624
        %v1723 = vadd.f32 %v1722, 1e-12
        %v1724 = vrsqrt.pop %v1723
        %v1725 = vmul.f32 %v1717, %v1724
        %v1727 = vlaneseq
        %v1728 = vshrl.u32 %v1727, 7
        %v1729 = vsub.s32 0, %v1728
        %v1730 = vrot.slane %v1711, %v1729
        %v1732 = vmul.f32 %v1725, %v1730
        %v1734 = vlaneseq
        %v1735 = vshrl.u32 %v1734, 7
        %v1736 = vsub.s32 0, %v1735
        %v1737 = vrot.slane %v1712, %v1736
        %v1739 = vadd.f32 %v1732, %v1737
        %v1740 = vld [vmem:[%s11] sm:$0xff]
        %v1741 = vld [vmem:[%s11 + $0x8] sm:$0xff]
        %v1742 = vld [vmem:[%s11 + $0x10] sm:$0xff]
        %v1743 = vld [vmem:[%s11 + $0x18] sm:$0xff]
        %v1744 = vld [vmem:[%s12] sm:$0x1]
        %v1746 = vlaneseq
        %v1747 = vshrl.u32 %v1746, 7
        %v1748 = vsub.s32 0, %v1747
        %v1749 = vrot.slane %v1744, %v1748
        %v1752 = vsel %vm620, %v1739, 0
        %1754 = vmatprep.subr.mxu0 0.0
        %1755 = vmatpush1.msra.mxu0 0.0
        %1756 = vmatprep.subr.mxu0 0.0
        %1757 = vmatpush1.msra.mxu0 0.0
        %1758 = vmatprep.subr.mxu0 0.0
        %1759 = vmatpush1.msra.mxu0 0.0
        %1760 = vmatprep.subr.mxu0 0.0
        %1761 = vmatpush1.msra.mxu0 0.0
        %1762 = vmatprep.subr.mxu0 0.0
        %1763 = vmatpush1.msra.mxu0 0.0
        %1764 = vmatprep.subr.mxu0 0.0
        %1765 = vmatpush1.msra.mxu0 0.0
        %1766 = vmatprep.subr.mxu0 0.0
        %1767 = vmatpush1.msra.mxu0 0.0
        %1768 = vmatprep.subr.mxu0 0.0
        %1769 = vmatpush1.msra.mxu0 0.0
        %1770 = vmatprep.subr.mxu0 0.0
        %1771 = vmatpush1.msra.mxu0 0.0
        %1772 = vmatprep.subr.mxu0 0.0
        %1773 = vmatpush1.msra.mxu0 0.0
        %1774 = vmatprep.subr.mxu0 0.0
        %1775 = vmatpush1.msra.mxu0 0.0
        %1776 = vmatprep.subr.mxu0 0.0
        %1777 = vmatpush1.msra.mxu0 0.0
        %1778 = vmatprep.subr.mxu0 0.0
        %1779 = vmatpush1.msra.mxu0 %v1743
        %1780 = vmatprep.subr.mxu0 0.0
        %1781 = vmatpush1.msra.mxu0 %v1742
        %1782 = vmatprep.subr.mxu0 0.0
        %1783 = vmatpush1.msra.mxu0 %v1741
        %1784 = vmatprep.subr.mxu0 0.0
        %1785 = vmatpush1.msra.mxu0 %v1740
        %1786 = vmatprep.subr.mxu0 0.0
        %1787 = vmatpush2.msra.mxu0 0.0
        %1788 = vmatprep.subr.mxu0 0.0
        %1789 = vmatpush2.msra.mxu0 0.0
        %1790 = vmatprep.subr.mxu0 0.0
        %1791 = vmatpush2.msra.mxu0 0.0
        %1792 = vmatprep.subr.mxu0 0.0
        %1793 = vmatpush2.msra.mxu0 0.0
        %1794 = vmatprep.subr.mxu0 0.0
        %1795 = vmatpush2.msra.mxu0 0.0
        %1796 = vmatprep.subr.mxu0 0.0
        %1797 = vmatpush2.msra.mxu0 0.0
        %1798 = vmatprep.subr.mxu0 0.0
        %1799 = vmatpush2.msra.mxu0 0.0
        %1800 = vmatprep.subr.mxu0 0.0
        %1801 = vmatpush2.msra.mxu0 0.0
        %1802 = vmatprep.subr.mxu0 0.0
        %1803 = vmatpush2.msra.mxu0 0.0
        %1804 = vmatprep.subr.mxu0 0.0
        %1805 = vmatpush2.msra.mxu0 0.0
        %1806 = vmatprep.subr.mxu0 0.0
        %1807 = vmatpush2.msra.mxu0 0.0
        %1808 = vmatprep.subr.mxu0 0.0
        %1809 = vmatpush2.msra.mxu0 0.0
        %1810 = vmatprep.subr.mxu0 0.0
        %1811 = vmatpush2.msra.mxu0 0.0
        %1812 = vmatprep.subr.mxu0 0.0
        %1813 = vmatpush2.msra.mxu0 0.0
        %1814 = vmatprep.subr.mxu0 0.0
        %1815 = vmatpush2.msra.mxu0 0.0
        %1816 = vmatprep.subr.mxu0 0.0
        %1817 = vmatpush2.msra.mxu0 0.0
        %1818 = vmatprep.mubr.f32.mxu0 0.0
        %1819 = vmatmul.mubr.f32.gmra.mxu0 %v1752
        %v1820 = vpop.f32.mrf.mxu0
        %v1821 = vadd.f32 %v1749, %v1820
        %v1822 = vpop.f32.mrf.mxu0
        %1823 = vdwg.mxu0
        %v1824 = vmul.f32 %v1821, 0.5
        %v1825 = vmul.f32 %v1821, 0.044715
        %v1826 = vmul.f32 %v1825, %v1821
        %v1827 = vmul.f32 %v1826, %v1821
        %v1828 = vadd.f32 %v1821, %v1827
        %v1829 = vmul.f32 %v1828, 0.7978846
        %v1830 = vtanh.pop %v1829
        %v1831 = vadd.f32 %v1830, 1.0
        %v1832 = vmul.f32 %v1824, %v1831
        %v1833 = vld [vmem:[%s13] sm:$0xff]
        %v1834 = vld [vmem:[%s13 + $0x8] sm:$0xff]
        %v1835 = vld [vmem:[%s13 + $0x10] sm:$0xff]
        %v1836 = vld [vmem:[%s13 + $0x18] sm:$0xff]
        %v1837 = vld [vmem:[%s13 + $0x20] sm:$0xff]
        %v1838 = vld [vmem:[%s13 + $0x28] sm:$0xff]
        %v1839 = vld [vmem:[%s13 + $0x30] sm:$0xff]
        %v1840 = vld [vmem:[%s13 + $0x38] sm:$0xff]
        %v1841 = vld [vmem:[%s14] sm:$0x1]
        %v1843 = vlaneseq
        %v1844 = vshrl.u32 %v1843, 7
        %v1845 = vsub.s32 0, %v1844
        %v1846 = vrot.slane %v1841, %v1845
        %vm1848 = vcmask 523264
        %v1850 = vsel %vm1848, %v1832, 0
        %1852 = vmatprep.subr.mxu0 0.0
        %1853 = vmatpush1.msra.mxu0 0.0
        %1854 = vmatprep.subr.mxu0 0.0
        %1855 = vmatpush1.msra.mxu0 0.0
        %1856 = vmatprep.subr.mxu0 0.0
        %1857 = vmatpush1.msra.mxu0 0.0
        %1858 = vmatprep.subr.mxu0 0.0
        %1859 = vmatpush1.msra.mxu0 0.0
        %1860 = vmatprep.subr.mxu0 0.0
        %1861 = vmatpush1.msra.mxu0 0.0
        %1862 = vmatprep.subr.mxu0 0.0
        %1863 = vmatpush1.msra.mxu0 0.0
        %1864 = vmatprep.subr.mxu0 0.0
        %1865 = vmatpush1.msra.mxu0 0.0
        %1866 = vmatprep.subr.mxu0 0.0
        %1867 = vmatpush1.msra.mxu0 0.0
        %1868 = vmatprep.subr.mxu0 0.0
        %1869 = vmatpush1.msra.mxu0 %v1840
        %1870 = vmatprep.subr.mxu0 0.0
        %1871 = vmatpush1.msra.mxu0 %v1839
        %1872 = vmatprep.subr.mxu0 0.0
        %1873 = vmatpush1.msra.mxu0 %v1838
        %1874 = vmatprep.subr.mxu0 0.0
        %1875 = vmatpush1.msra.mxu0 %v1837
        %1876 = vmatprep.subr.mxu0 0.0
        %1877 = vmatpush1.msra.mxu0 %v1836
        %1878 = vmatprep.subr.mxu0 0.0
        %1879 = vmatpush1.msra.mxu0 %v1835
        %1880 = vmatprep.subr.mxu0 0.0
        %1881 = vmatpush1.msra.mxu0 %v1834
        %1882 = vmatprep.subr.mxu0 0.0
        %1883 = vmatpush1.msra.mxu0 %v1833
        %1884 = vmatprep.subr.mxu0 0.0
        %1885 = vmatpush2.msra.mxu0 0.0
        %1886 = vmatprep.subr.mxu0 0.0
        %1887 = vmatpush2.msra.mxu0 0.0
        %1888 = vmatprep.subr.mxu0 0.0
        %1889 = vmatpush2.msra.mxu0 0.0
        %1890 = vmatprep.subr.mxu0 0.0
        %1891 = vmatpush2.msra.mxu0 0.0
        %1892 = vmatprep.subr.mxu0 0.0
        %1893 = vmatpush2.msra.mxu0 0.0
        %1894 = vmatprep.subr.mxu0 0.0
        %1895 = vmatpush2.msra.mxu0 0.0
        %1896 = vmatprep.subr.mxu0 0.0
        %1897 = vmatpush2.msra.mxu0 0.0
        %1898 = vmatprep.subr.mxu0 0.0
        %1899 = vmatpush2.msra.mxu0 0.0
        %1900 = vmatprep.subr.mxu0 0.0
        %1901 = vmatpush2.msra.mxu0 0.0
        %1902 = vmatprep.subr.mxu0 0.0
        %1903 = vmatpush2.msra.mxu0 0.0
        %1904 = vmatprep.subr.mxu0 0.0
        %1905 = vmatpush2.msra.mxu0 0.0
        %1906 = vmatprep.subr.mxu0 0.0
        %1907 = vmatpush2.msra.mxu0 0.0
        %1908 = vmatprep.subr.mxu0 0.0
        %1909 = vmatpush2.msra.mxu0 0.0
        %1910 = vmatprep.subr.mxu0 0.0
        %1911 = vmatpush2.msra.mxu0 0.0
        %1912 = vmatprep.subr.mxu0 0.0
        %1913 = vmatpush2.msra.mxu0 0.0
        %1914 = vmatprep.subr.mxu0 0.0
        %1915 = vmatpush2.msra.mxu0 0.0
        %1916 = vmatprep.mubr.f32.mxu0 0.0
        %1917 = vmatmul.mubr.f32.gmra.mxu0 %v1850
        %v1918 = vpop.f32.mrf.mxu0
        %v1919 = vadd.f32 %v1846, %v1918
        %v1920 = vpop.f32.mrf.mxu0
        %1921 = vdwg.mxu0
        %v1922 = vadd.f32 %v1919, %v1739
        %v1923 = vld [vmem:[%s15] sm:$0x1]
        %v1924 = vld [vmem:[%s16] sm:$0x1]
        %v1925 = vsel %vm620, %v1922, 0.0
        %1926 = vadd.xlane.f32.xlu0 %v1925
        %v1927 = vpop.xlane.xlu0 %1926
        %v1928 = vmul.f32 %v1927, %v624
        %v1929 = vsub.f32 %v1922, %v1928
        %v1930 = vmul.f32 %v1929, %v1929
        %v1931 = vsel %vm620, %v1930, 0.0
        %1932 = vadd.xlane.f32.xlu0 %v1931
        %v1933 = vpop.xlane.xlu0 %1932
        %v1934 = vmul.f32 %v1933, %v624
        %v1935 = vadd.f32 %v1934, 1e-12
        %v1936 = vrsqrt.pop %v1935
        %v1937 = vmul.f32 %v1929, %v1936
        %v1939 = vlaneseq
        %v1940 = vshrl.u32 %v1939, 7
        %v1941 = vsub.s32 0, %v1940
        %v1942 = vrot.slane %v1923, %v1941
        %v1944 = vmul.f32 %v1937, %v1942
        %v1946 = vlaneseq
        %v1947 = vshrl.u32 %v1946, 7
        %v1948 = vsub.s32 0, %v1947
        %v1949 = vrot.slane %v1924, %v1948
        %v1951 = vadd.f32 %v1944, %v1949
        %s1952 = scalar_lea.vmem %s5, 32
        %v1953 = vld [vmem:[%s1952] sm:$0xff]
        %v1954 = vld [vmem:[%s1952 + $0x8] sm:$0xff]
        %v1955 = vld [vmem:[%s1952 + $0x10] sm:$0xff]
        %v1956 = vld [vmem:[%s1952 + $0x18] sm:$0xff]
        %s1957 = scalar_lea.vmem %s6, 1
        %v1958 = vld [vmem:[%s1957] sm:$0x1]
        %v1960 = vlaneseq
        %v1961 = vshrl.u32 %v1960, 7
        %v1962 = vsub.s32 0, %v1961
        %v1963 = vrot.slane %v1958, %v1962
        %v1966 = vsel %vm620, %v1951, 0
        %1968 = vmatprep.subr.mxu0 0.0
        %1969 = vmatpush1.msra.mxu0 0.0
        %1970 = vmatprep.subr.mxu0 0.0
        %1971 = vmatpush1.msra.mxu0 0.0
        %1972 = vmatprep.subr.mxu0 0.0
        %1973 = vmatpush1.msra.mxu0 0.0
        %1974 = vmatprep.subr.mxu0 0.0
        %1975 = vmatpush1.msra.mxu0 0.0
        %1976 = vmatprep.subr.mxu0 0.0
        %1977 = vmatpush1.msra.mxu0 0.0
        %1978 = vmatprep.subr.mxu0 0.0
        %1979 = vmatpush1.msra.mxu0 0.0
        %1980 = vmatprep.subr.mxu0 0.0
        %1981 = vmatpush1.msra.mxu0 0.0
        %1982 = vmatprep.subr.mxu0 0.0
        %1983 = vmatpush1.msra.mxu0 0.0
        %1984 = vmatprep.subr.mxu0 0.0
        %1985 = vmatpush1.msra.mxu0 0.0
        %1986 = vmatprep.subr.mxu0 0.0
        %1987 = vmatpush1.msra.mxu0 0.0
        %1988 = vmatprep.subr.mxu0 0.0
        %1989 = vmatpush1.msra.mxu0 0.0
        %1990 = vmatprep.subr.mxu0 0.0
        %1991 = vmatpush1.msra.mxu0 0.0
        %1992 = vmatprep.subr.mxu0 0.0
        %1993 = vmatpush1.msra.mxu0 %v1956
        %1994 = vmatprep.subr.mxu0 0.0
        %1995 = vmatpush1.msra.mxu0 %v1955
        %1996 = vmatprep.subr.mxu0 0.0
        %1997 = vmatpush1.msra.mxu0 %v1954
        %1998 = vmatprep.subr.mxu0 0.0
        %1999 = vmatpush1.msra.mxu0 %v1953
        %2000 = vmatprep.subr.mxu0 0.0
        %2001 = vmatpush2.msra.mxu0 0.0
        %2002 = vmatprep.subr.mxu0 0.0
        %2003 = vmatpush2.msra.mxu0 0.0
        %2004 = vmatprep.subr.mxu0 0.0
        %2005 = vmatpush2.msra.mxu0 0.0
        %2006 = vmatprep.subr.mxu0 0.0
        %2007 = vmatpush2.msra.mxu0 0.0
        %2008 = vmatprep.subr.mxu0 0.0
        %2009 = vmatpush2.msra.mxu0 0.0
        %2010 = vmatprep.subr.mxu0 0.0
        %2011 = vmatpush2.msra.mxu0 0.0
        %2012 = vmatprep.subr.mxu0 0.0
        %2013 = vmatpush2.msra.mxu0 0.0
        %2014 = vmatprep.subr.mxu0 0.0
        %2015 = vmatpush2.msra.mxu0 0.0
        %2016 = vmatprep.subr.mxu0 0.0
        %2017 = vmatpush2.msra.mxu0 0.0
        %2018 = vmatprep.subr.mxu0 0.0
        %2019 = vmatpush2.msra.mxu0 0.0
        %2020 = vmatprep.subr.mxu0 0.0
        %2021 = vmatpush2.msra.mxu0 0.0
        %2022 = vmatprep.subr.mxu0 0.0
        %2023 = vmatpush2.msra.mxu0 0.0
        %2024 = vmatprep.subr.mxu0 0.0
        %2025 = vmatpush2.msra.mxu0 0.0
        %2026 = vmatprep.subr.mxu0 0.0
        %2027 = vmatpush2.msra.mxu0 0.0
        %2028 = vmatprep.subr.mxu0 0.0
        %2029 = vmatpush2.msra.mxu0 0.0
        %2030 = vmatprep.subr.mxu0 0.0
        %2031 = vmatpush2.msra.mxu0 0.0
        %2032 = vmatprep.mubr.f32.mxu0 0.0
        %2033 = vmatmul.mubr.f32.gmra.mxu0 %v1966
        %v2034 = vpop.f32.mrf.mxu0
        %v2035 = vadd.f32 %v1963, %v2034
        %v2036 = vpop.f32.mrf.mxu0
        %2037 = vdwg.mxu0
        %s2038 = scalar_lea.vmem %s7, 32
        %v2039 = vld [vmem:[%s2038] sm:$0xff]
        %v2040 = vld [vmem:[%s2038 + $0x8] sm:$0xff]
        %v2041 = vld [vmem:[%s2038 + $0x10] sm:$0xff]
        %v2042 = vld [vmem:[%s2038 + $0x18] sm:$0xff]
        %v2043 = vmul.f32 %v2035, 0.35355338
        %2045 = vrot.lane.b32.xlu0 %v2035, 96
        %v2046 = vpop.permute.xlu0 %2045
        %v2048 = vsel %vm750, %v2043, 0
        %v2050 = vsel %vm750, %v2046, 0
        %2052 = vmatprep.subr.mxu0 0.0
        %2053 = vmatpush1.xpose.msra.mxu0 0.0
        %2054 = vmatprep.subr.mxu0 0.0
        %2055 = vmatpush1.xpose.msra.mxu0 0.0
        %2056 = vmatprep.subr.mxu0 0.0
        %2057 = vmatpush1.xpose.msra.mxu0 0.0
        %2058 = vmatprep.subr.mxu0 0.0
        %2059 = vmatpush1.xpose.msra.mxu0 0.0
        %2060 = vmatprep.subr.mxu0 0.0
        %2061 = vmatpush1.xpose.msra.mxu0 0.0
        %2062 = vmatprep.subr.mxu0 0.0
        %2063 = vmatpush1.xpose.msra.mxu0 0.0
        %2064 = vmatprep.subr.mxu0 0.0
        %2065 = vmatpush1.xpose.msra.mxu0 0.0
        %2066 = vmatprep.subr.mxu0 0.0
        %2067 = vmatpush1.xpose.msra.mxu0 0.0
        %2068 = vmatprep.subr.mxu0 0.0
        %2069 = vmatpush1.xpose.msra.mxu0 0.0
        %2070 = vmatprep.subr.mxu0 0.0
        %2071 = vmatpush1.xpose.msra.mxu0 0.0
        %2072 = vmatprep.subr.mxu0 0.0
        %2073 = vmatpush1.xpose.msra.mxu0 0.0
        %2074 = vmatprep.subr.mxu0 0.0
        %2075 = vmatpush1.xpose.msra.mxu0 0.0
        %2076 = vmatprep.subr.mxu0 0.0
        %2077 = vmatpush1.xpose.msra.mxu0 0.0
        %2078 = vmatprep.subr.mxu0 0.0
        %2079 = vmatpush1.xpose.msra.mxu0 0.0
        %2080 = vmatprep.subr.mxu0 0.0
        %2081 = vmatpush1.xpose.msra.mxu0 0.0
        %2082 = vmatprep.subr.mxu0 0.0
        %2083 = vmatpush1.xpose.msra.mxu0 %v2050
        %2084 = vmatprep.subr.mxu0 0.0
        %2085 = vmatpush2.xpose.msra.mxu0 0.0
        %2086 = vmatprep.subr.mxu0 0.0
        %2087 = vmatpush2.xpose.msra.mxu0 0.0
        %2088 = vmatprep.subr.mxu0 0.0
        %2089 = vmatpush2.xpose.msra.mxu0 0.0
        %2090 = vmatprep.subr.mxu0 0.0
        %2091 = vmatpush2.xpose.msra.mxu0 0.0
        %2092 = vmatprep.subr.mxu0 0.0
        %2093 = vmatpush2.xpose.msra.mxu0 0.0
        %2094 = vmatprep.subr.mxu0 0.0
        %2095 = vmatpush2.xpose.msra.mxu0 0.0
        %2096 = vmatprep.subr.mxu0 0.0
        %2097 = vmatpush2.xpose.msra.mxu0 0.0
        %2098 = vmatprep.subr.mxu0 0.0
        %2099 = vmatpush2.xpose.msra.mxu0 0.0
        %2100 = vmatprep.subr.mxu0 0.0
        %2101 = vmatpush2.xpose.msra.mxu0 0.0
        %2102 = vmatprep.subr.mxu0 0.0
        %2103 = vmatpush2.xpose.msra.mxu0 0.0
        %2104 = vmatprep.subr.mxu0 0.0
        %2105 = vmatpush2.xpose.msra.mxu0 0.0
        %2106 = vmatprep.subr.mxu0 0.0
        %2107 = vmatpush2.xpose.msra.mxu0 0.0
        %2108 = vmatprep.subr.mxu0 0.0
        %2109 = vmatpush2.xpose.msra.mxu0 0.0
        %2110 = vmatprep.subr.mxu0 0.0
        %2111 = vmatpush2.xpose.msra.mxu0 0.0
        %2112 = vmatprep.subr.mxu0 0.0
        %2113 = vmatpush2.xpose.msra.mxu0 0.0
        %2114 = vmatprep.subr.mxu0 0.0
        %2115 = vmatpush2.xpose.msra.mxu0 0.0
        %2116 = vmatprep.mubr.f32.mxu0 0.0
        %2117 = vmatmul.mubr.f32.gmra.mxu0 %v2048
        %v2118 = vpop.f32.mrf.mxu0
        %v2119 = vadd.f32 %v651, %v2118
        %v2120 = vpop.f32.mrf.mxu0
        %2121 = vdwg.mxu0
        %vm2122 = vcmask 57344
        %v2123 = vsel %vm2122, %v2119, -inf
        %2124 = vmax.xlane.f32.xlu0 %v2123
        %v2125 = vpop.xlane.xlu0 %2124
        %v2126 = vsub.f32 %v2119, %v2125
        %v2127 = vmul.f32 %v2126, 1.442695
        %v2128 = vpow.pop %v2127
        %v2129 = vsel %vm2122, %v2128, 0.0
        %2130 = vadd.xlane.f32.xlu0 %v2129
        %v2131 = vpop.xlane.xlu0 %2130
        %v2132 = vrcp.pop %v2131
        %v2133 = vmul.f32 %v2128, %v2132
        %2134 = vrot.lane.b32.xlu0 %v2035, 64
        %v2135 = vpop.permute.xlu0 %2134
        %v2138 = vsel %vm750, %v2133, 0
        %2140 = vmatprep.subr.mxu0 0.0
        %2141 = vmatpush1.msra.mxu0 0.0
        %2142 = vmatprep.subr.mxu0 0.0
        %2143 = vmatpush1.msra.mxu0 0.0
        %2144 = vmatprep.subr.mxu0 0.0
        %2145 = vmatpush1.msra.mxu0 0.0
        %2146 = vmatprep.subr.mxu0 0.0
        %2147 = vmatpush1.msra.mxu0 0.0
        %2148 = vmatprep.subr.mxu0 0.0
        %2149 = vmatpush1.msra.mxu0 0.0
        %2150 = vmatprep.subr.mxu0 0.0
        %2151 = vmatpush1.msra.mxu0 0.0
        %2152 = vmatprep.subr.mxu0 0.0
        %2153 = vmatpush1.msra.mxu0 0.0
        %2154 = vmatprep.subr.mxu0 0.0
        %2155 = vmatpush1.msra.mxu0 0.0
        %2156 = vmatprep.subr.mxu0 0.0
        %2157 = vmatpush1.msra.mxu0 0.0
        %2158 = vmatprep.subr.mxu0 0.0
        %2159 = vmatpush1.msra.mxu0 0.0
        %2160 = vmatprep.subr.mxu0 0.0
        %2161 = vmatpush1.msra.mxu0 0.0
        %2162 = vmatprep.subr.mxu0 0.0
        %2163 = vmatpush1.msra.mxu0 0.0
        %2164 = vmatprep.subr.mxu0 0.0
        %2165 = vmatpush1.msra.mxu0 0.0
        %2166 = vmatprep.subr.mxu0 0.0
        %2167 = vmatpush1.msra.mxu0 0.0
        %2168 = vmatprep.subr.mxu0 0.0
        %2169 = vmatpush1.msra.mxu0 0.0
        %2170 = vmatprep.subr.mxu0 0.0
        %2171 = vmatpush1.msra.mxu0 %v2135
        %2172 = vmatprep.subr.mxu0 0.0
        %2173 = vmatpush2.msra.mxu0 0.0
        %2174 = vmatprep.subr.mxu0 0.0
        %2175 = vmatpush2.msra.mxu0 0.0
        %2176 = vmatprep.subr.mxu0 0.0
        %2177 = vmatpush2.msra.mxu0 0.0
        %2178 = vmatprep.subr.mxu0 0.0
        %2179 = vmatpush2.msra.mxu0 0.0
        %2180 = vmatprep.subr.mxu0 0.0
        %2181 = vmatpush2.msra.mxu0 0.0
        %2182 = vmatprep.subr.mxu0 0.0
        %2183 = vmatpush2.msra.mxu0 0.0
        %2184 = vmatprep.subr.mxu0 0.0
        %2185 = vmatpush2.msra.mxu0 0.0
        %2186 = vmatprep.subr.mxu0 0.0
        %2187 = vmatpush2.msra.mxu0 0.0
        %2188 = vmatprep.subr.mxu0 0.0
        %2189 = vmatpush2.msra.mxu0 0.0
        %2190 = vmatprep.subr.mxu0 0.0
        %2191 = vmatpush2.msra.mxu0 0.0
        %2192 = vmatprep.subr.mxu0 0.0
        %2193 = vmatpush2.msra.mxu0 0.0
        %2194 = vmatprep.subr.mxu0 0.0
        %2195 = vmatpush2.msra.mxu0 0.0
        %2196 = vmatprep.subr.mxu0 0.0
        %2197 = vmatpush2.msra.mxu0 0.0
        %2198 = vmatprep.subr.mxu0 0.0
        %2199 = vmatpush2.msra.mxu0 0.0
        %2200 = vmatprep.subr.mxu0 0.0
        %2201 = vmatpush2.msra.mxu0 0.0
        %2202 = vmatprep.subr.mxu0 0.0
        %2203 = vmatpush2.msra.mxu0 0.0
        %2204 = vmatprep.mubr.f32.mxu0 0.0
        %2205 = vmatmul.mubr.f32.gmra.mxu0 %v2138
        %v2206 = vpop.f32.mrf.mxu0
        %v2207 = vadd.f32 0.0, %v2206
        %v2208 = vpop.f32.mrf.mxu0
        %2209 = vdwg.mxu0
        %2210 = vrot.lane.b32.xlu0 %v2043, 120
        %v2211 = vpop.permute.xlu0 %2210
        %2212 = vrot.lane.b32.xlu0 %v2035, 88
        %v2213 = vpop.permute.xlu0 %2212
        %v2214 = vsel %vm750, %v2211, 0
        %v2216 = vsel %vm750, %v2213, 0
        %2218 = vmatprep.subr.mxu0 0.0
        %2219 = vmatpush1.xpose.msra.mxu0 0.0
        %2220 = vmatprep.subr.mxu0 0.0
        %2221 = vmatpush1.xpose.msra.mxu0 0.0
        %2222 = vmatprep.subr.mxu0 0.0
        %2223 = vmatpush1.xpose.msra.mxu0 0.0
        %2224 = vmatprep.subr.mxu0 0.0
        %2225 = vmatpush1.xpose.msra.mxu0 0.0
        %2226 = vmatprep.subr.mxu0 0.0
        %2227 = vmatpush1.xpose.msra.mxu0 0.0
        %2228 = vmatprep.subr.mxu0 0.0
        %2229 = vmatpush1.xpose.msra.mxu0 0.0
        %2230 = vmatprep.subr.mxu0 0.0
        %2231 = vmatpush1.xpose.msra.mxu0 0.0
        %2232 = vmatprep.subr.mxu0 0.0
        %2233 = vmatpush1.xpose.msra.mxu0 0.0
        %2234 = vmatprep.subr.mxu0 0.0
        %2235 = vmatpush1.xpose.msra.mxu0 0.0
        %2236 = vmatprep.subr.mxu0 0.0
        %2237 = vmatpush1.xpose.msra.mxu0 0.0
        %2238 = vmatprep.subr.mxu0 0.0
        %2239 = vmatpush1.xpose.msra.mxu0 0.0
        %2240 = vmatprep.subr.mxu0 0.0
        %2241 = vmatpush1.xpose.msra.mxu0 0.0
        %2242 = vmatprep.subr.mxu0 0.0
        %2243 = vmatpush1.xpose.msra.mxu0 0.0
        %2244 = vmatprep.subr.mxu0 0.0
        %2245 = vmatpush1.xpose.msra.mxu0 0.0
        %2246 = vmatprep.subr.mxu0 0.0
        %2247 = vmatpush1.xpose.msra.mxu0 0.0
        %2248 = vmatprep.subr.mxu0 0.0
        %2249 = vmatpush1.xpose.msra.mxu0 %v2216
        %2250 = vmatprep.subr.mxu0 0.0
        %2251 = vmatpush2.xpose.msra.mxu0 0.0
        %2252 = vmatprep.subr.mxu0 0.0
        %2253 = vmatpush2.xpose.msra.mxu0 0.0
        %2254 = vmatprep.subr.mxu0 0.0
        %2255 = vmatpush2.xpose.msra.mxu0 0.0
        %2256 = vmatprep.subr.mxu0 0.0
        %2257 = vmatpush2.xpose.msra.mxu0 0.0
        %2258 = vmatprep.subr.mxu0 0.0
        %2259 = vmatpush2.xpose.msra.mxu0 0.0
        %2260 = vmatprep.subr.mxu0 0.0
        %2261 = vmatpush2.xpose.msra.mxu0 0.0
        %2262 = vmatprep.subr.mxu0 0.0
        %2263 = vmatpush2.xpose.msra.mxu0 0.0
        %2264 = vmatprep.subr.mxu0 0.0
        %2265 = vmatpush2.xpose.msra.mxu0 0.0
        %2266 = vmatprep.subr.mxu0 0.0
        %2267 = vmatpush2.xpose.msra.mxu0 0.0
        %2268 = vmatprep.subr.mxu0 0.0
        %2269 = vmatpush2.xpose.msra.mxu0 0.0
        %2270 = vmatprep.subr.mxu0 0.0
        %2271 = vmatpush2.xpose.msra.mxu0 0.0
        %2272 = vmatprep.subr.mxu0 0.0
        %2273 = vmatpush2.xpose.msra.mxu0 0.0
        %2274 = vmatprep.subr.mxu0 0.0
        %2275 = vmatpush2.xpose.msra.mxu0 0.0
        %2276 = vmatprep.subr.mxu0 0.0
        %2277 = vmatpush2.xpose.msra.mxu0 0.0
        %2278 = vmatprep.subr.mxu0 0.0
        %2279 = vmatpush2.xpose.msra.mxu0 0.0
        %2280 = vmatprep.subr.mxu0 0.0
        %2281 = vmatpush2.xpose.msra.mxu0 0.0
        %2282 = vmatprep.mubr.f32.mxu0 0.0
        %2283 = vmatmul.mubr.f32.gmra.mxu0 %v2214
        %v2284 = vpop.f32.mrf.mxu0
        %v2285 = vadd.f32 %v651, %v2284
        %v2286 = vpop.f32.mrf.mxu0
        %2287 = vdwg.mxu0
        %v2288 = vsel %vm2122, %v2285, -inf
        %2289 = vmax.xlane.f32.xlu0 %v2288
        %v2290 = vpop.xlane.xlu0 %2289
        %v2291 = vsub.f32 %v2285, %v2290
        %v2292 = vmul.f32 %v2291, 1.442695
        %v2293 = vpow.pop %v2292
        %v2294 = vsel %vm2122, %v2293, 0.0
        %2295 = vadd.xlane.f32.xlu0 %v2294
        %v2296 = vpop.xlane.xlu0 %2295
        %v2297 = vrcp.pop %v2296
        %v2298 = vmul.f32 %v2293, %v2297
        %2299 = vrot.lane.b32.xlu0 %v2035, 56
        %v2300 = vpop.permute.xlu0 %2299
        %v2303 = vsel %vm750, %v2298, 0
        %2305 = vmatprep.subr.mxu0 0.0
        %2306 = vmatpush1.msra.mxu0 0.0
        %2307 = vmatprep.subr.mxu0 0.0
        %2308 = vmatpush1.msra.mxu0 0.0
        %2309 = vmatprep.subr.mxu0 0.0
        %2310 = vmatpush1.msra.mxu0 0.0
        %2311 = vmatprep.subr.mxu0 0.0
        %2312 = vmatpush1.msra.mxu0 0.0
        %2313 = vmatprep.subr.mxu0 0.0
        %2314 = vmatpush1.msra.mxu0 0.0
        %2315 = vmatprep.subr.mxu0 0.0
        %2316 = vmatpush1.msra.mxu0 0.0
        %2317 = vmatprep.subr.mxu0 0.0
        %2318 = vmatpush1.msra.mxu0 0.0
        %2319 = vmatprep.subr.mxu0 0.0
        %2320 = vmatpush1.msra.mxu0 0.0
        %2321 = vmatprep.subr.mxu0 0.0
        %2322 = vmatpush1.msra.mxu0 0.0
        %2323 = vmatprep.subr.mxu0 0.0
        %2324 = vmatpush1.msra.mxu0 0.0
        %2325 = vmatprep.subr.mxu0 0.0
        %2326 = vmatpush1.msra.mxu0 0.0
        %2327 = vmatprep.subr.mxu0 0.0
        %2328 = vmatpush1.msra.mxu0 0.0
        %2329 = vmatprep.subr.mxu0 0.0
        %2330 = vmatpush1.msra.mxu0 0.0
        %2331 = vmatprep.subr.mxu0 0.0
        %2332 = vmatpush1.msra.mxu0 0.0
        %2333 = vmatprep.subr.mxu0 0.0
        %2334 = vmatpush1.msra.mxu0 0.0
        %2335 = vmatprep.subr.mxu0 0.0
        %2336 = vmatpush1.msra.mxu0 %v2300
        %2337 = vmatprep.subr.mxu0 0.0
        %2338 = vmatpush2.msra.mxu0 0.0
        %2339 = vmatprep.subr.mxu0 0.0
        %2340 = vmatpush2.msra.mxu0 0.0
        %2341 = vmatprep.subr.mxu0 0.0
        %2342 = vmatpush2.msra.mxu0 0.0
        %2343 = vmatprep.subr.mxu0 0.0
        %2344 = vmatpush2.msra.mxu0 0.0
        %2345 = vmatprep.subr.mxu0 0.0
        %2346 = vmatpush2.msra.mxu0 0.0
        %2347 = vmatprep.subr.mxu0 0.0
        %2348 = vmatpush2.msra.mxu0 0.0
        %2349 = vmatprep.subr.mxu0 0.0
        %2350 = vmatpush2.msra.mxu0 0.0
        %2351 = vmatprep.subr.mxu0 0.0
        %2352 = vmatpush2.msra.mxu0 0.0
        %2353 = vmatprep.subr.mxu0 0.0
        %2354 = vmatpush2.msra.mxu0 0.0
        %2355 = vmatprep.subr.mxu0 0.0
        %2356 = vmatpush2.msra.mxu0 0.0
        %2357 = vmatprep.subr.mxu0 0.0
        %2358 = vmatpush2.msra.mxu0 0.0
        %2359 = vmatprep.subr.mxu0 0.0
        %2360 = vmatpush2.msra.mxu0 0.0
        %2361 = vmatprep.subr.mxu0 0.0
        %2362 = vmatpush2.msra.mxu0 0.0
        %2363 = vmatprep.subr.mxu0 0.0
        %2364 = vmatpush2.msra.mxu0 0.0
        %2365 = vmatprep.subr.mxu0 0.0
        %2366 = vmatpush2.msra.mxu0 0.0
        %2367 = vmatprep.subr.mxu0 0.0
        %2368 = vmatpush2.msra.mxu0 0.0
        %2369 = vmatprep.mubr.f32.mxu0 0.0
        %2370 = vmatmul.mubr.f32.gmra.mxu0 %v2303
        %v2371 = vpop.f32.mrf.mxu0
        %v2372 = vadd.f32 0.0, %v2371
        %v2373 = vpop.f32.mrf.mxu0
        %2374 = vdwg.mxu0
        %v2376 = vsel %vm750, %v2372, 0
        %2378 = vmatprep.subr.mxu0 0.0
        %2379 = vmatpush1.msra.mxu0 0.0
        %2380 = vmatprep.subr.mxu0 0.0
        %2381 = vmatpush1.msra.mxu0 0.0
        %2382 = vmatprep.subr.mxu0 0.0
        %2383 = vmatpush1.msra.mxu0 0.0
        %2384 = vmatprep.subr.mxu0 0.0
        %2385 = vmatpush1.msra.mxu0 0.0
        %2386 = vmatprep.subr.mxu0 0.0
        %2387 = vmatpush1.msra.mxu0 0.0
        %2388 = vmatprep.subr.mxu0 0.0
        %2389 = vmatpush1.msra.mxu0 0.0
        %2390 = vmatprep.subr.mxu0 0.0
        %2391 = vmatpush1.msra.mxu0 0.0
        %2392 = vmatprep.subr.mxu0 0.0
        %2393 = vmatpush1.msra.mxu0 0.0
        %2394 = vmatprep.subr.mxu0 0.0
        %2395 = vmatpush1.msra.mxu0 0.0
        %2396 = vmatprep.subr.mxu0 0.0
        %2397 = vmatpush1.msra.mxu0 0.0
        %2398 = vmatprep.subr.mxu0 0.0
        %2399 = vmatpush1.msra.mxu0 0.0
        %2400 = vmatprep.subr.mxu0 0.0
        %2401 = vmatpush1.msra.mxu0 0.0
        %2402 = vmatprep.subr.mxu0 0.0
        %2403 = vmatpush1.msra.mxu0 0.0
        %2404 = vmatprep.subr.mxu0 0.0
        %2405 = vmatpush1.msra.mxu0 0.0
        %2406 = vmatprep.subr.mxu0 0.0
        %2407 = vmatpush1.msra.mxu0 0.0
        %2408 = vmatprep.subr.mxu0 0.0
        %2409 = vmatpush1.msra.mxu0 %v2040
        %2410 = vmatprep.subr.mxu0 0.0
        %2411 = vmatpush2.msra.mxu0 0.0
        %2412 = vmatprep.subr.mxu0 0.0
        %2413 = vmatpush2.msra.mxu0 0.0
        %2414 = vmatprep.subr.mxu0 0.0
        %2415 = vmatpush2.msra.mxu0 0.0
        %2416 = vmatprep.subr.mxu0 0.0
        %2417 = vmatpush2.msra.mxu0 0.0
        %2418 = vmatprep.subr.mxu0 0.0
        %2419 = vmatpush2.msra.mxu0 0.0
        %2420 = vmatprep.subr.mxu0 0.0
        %2421 = vmatpush2.msra.mxu0 0.0
        %2422 = vmatprep.subr.mxu0 0.0
        %2423 = vmatpush2.msra.mxu0 0.0
        %2424 = vmatprep.subr.mxu0 0.0
        %2425 = vmatpush2.msra.mxu0 0.0
        %2426 = vmatprep.subr.mxu0 0.0
        %2427 = vmatpush2.msra.mxu0 0.0
        %2428 = vmatprep.subr.mxu0 0.0
        %2429 = vmatpush2.msra.mxu0 0.0
        %2430 = vmatprep.subr.mxu0 0.0
        %2431 = vmatpush2.msra.mxu0 0.0
        %2432 = vmatprep.subr.mxu0 0.0
        %2433 = vmatpush2.msra.mxu0 0.0
        %2434 = vmatprep.subr.mxu0 0.0
        %2435 = vmatpush2.msra.mxu0 0.0
        %2436 = vmatprep.subr.mxu0 0.0
        %2437 = vmatpush2.msra.mxu0 0.0
        %2438 = vmatprep.subr.mxu0 0.0
        %2439 = vmatpush2.msra.mxu0 0.0
        %2440 = vmatprep.subr.mxu0 0.0
        %2441 = vmatpush2.msra.mxu0 0.0
        %2442 = vmatprep.mubr.f32.mxu0 0.0
        %2443 = vmatmul.mubr.f32.gmra.mxu0 %v2376
        %v2444 = vpop.f32.mrf.mxu0
        %v2445 = vadd.f32 0.0, %v2444
        %v2446 = vpop.f32.mrf.mxu0
        %2447 = vdwg.mxu0
        %v2449 = vsel %vm750, %v2207, 0
        %2451 = vmatprep.subr.mxu0 0.0
        %2452 = vmatpush1.msra.mxu0 0.0
        %2453 = vmatprep.subr.mxu0 0.0
        %2454 = vmatpush1.msra.mxu0 0.0
        %2455 = vmatprep.subr.mxu0 0.0
        %2456 = vmatpush1.msra.mxu0 0.0
        %2457 = vmatprep.subr.mxu0 0.0
        %2458 = vmatpush1.msra.mxu0 0.0
        %2459 = vmatprep.subr.mxu0 0.0
        %2460 = vmatpush1.msra.mxu0 0.0
        %2461 = vmatprep.subr.mxu0 0.0
        %2462 = vmatpush1.msra.mxu0 0.0
        %2463 = vmatprep.subr.mxu0 0.0
        %2464 = vmatpush1.msra.mxu0 0.0
        %2465 = vmatprep.subr.mxu0 0.0
        %2466 = vmatpush1.msra.mxu0 0.0
        %2467 = vmatprep.subr.mxu0 0.0
        %2468 = vmatpush1.msra.mxu0 0.0
        %2469 = vmatprep.subr.mxu0 0.0
        %2470 = vmatpush1.msra.mxu0 0.0
        %2471 = vmatprep.subr.mxu0 0.0
        %2472 = vmatpush1.msra.mxu0 0.0
        %2473 = vmatprep.subr.mxu0 0.0
        %2474 = vmatpush1.msra.mxu0 0.0
        %2475 = vmatprep.subr.mxu0 0.0
        %2476 = vmatpush1.msra.mxu0 0.0
        %2477 = vmatprep.subr.mxu0 0.0
        %2478 = vmatpush1.msra.mxu0 0.0
        %2479 = vmatprep.subr.mxu0 0.0
        %2480 = vmatpush1.msra.mxu0 0.0
        %2481 = vmatprep.subr.mxu0 0.0
        %2482 = vmatpush1.msra.mxu0 %v2039
        %2483 = vmatprep.subr.mxu0 0.0
        %2484 = vmatpush2.msra.mxu0 0.0
        %2485 = vmatprep.subr.mxu0 0.0
        %2486 = vmatpush2.msra.mxu0 0.0
        %2487 = vmatprep.subr.mxu0 0.0
        %2488 = vmatpush2.msra.mxu0 0.0
        %2489 = vmatprep.subr.mxu0 0.0
        %2490 = vmatpush2.msra.mxu0 0.0
        %2491 = vmatprep.subr.mxu0 0.0
        %2492 = vmatpush2.msra.mxu0 0.0
        %2493 = vmatprep.subr.mxu0 0.0
        %2494 = vmatpush2.msra.mxu0 0.0
        %2495 = vmatprep.subr.mxu0 0.0
        %2496 = vmatpush2.msra.mxu0 0.0
        %2497 = vmatprep.subr.mxu0 0.0
        %2498 = vmatpush2.msra.mxu0 0.0
        %2499 = vmatprep.subr.mxu0 0.0
        %2500 = vmatpush2.msra.mxu0 0.0
        %2501 = vmatprep.subr.mxu0 0.0
        %2502 = vmatpush2.msra.mxu0 0.0
        %2503 = vmatprep.subr.mxu0 0.0
        %2504 = vmatpush2.msra.mxu0 0.0
        %2505 = vmatprep.subr.mxu0 0.0
        %2506 = vmatpush2.msra.mxu0 0.0
        %2507 = vmatprep.subr.mxu0 0.0
        %2508 = vmatpush2.msra.mxu0 0.0
        %2509 = vmatprep.subr.mxu0 0.0
        %2510 = vmatpush2.msra.mxu0 0.0
        %2511 = vmatprep.subr.mxu0 0.0
        %2512 = vmatpush2.msra.mxu0 0.0
        %2513 = vmatprep.subr.mxu0 0.0
        %2514 = vmatpush2.msra.mxu0 0.0
        %2515 = vmatprep.mubr.f32.mxu0 0.0
        %2516 = vmatmul.mubr.f32.gmra.mxu0 %v2449
        %v2517 = vpop.f32.mrf.mxu0
        %v2518 = vadd.f32 %v2445, %v2517
        %v2519 = vpop.f32.mrf.mxu0
        %2520 = vdwg.mxu0
        %2521 = vrot.lane.b32.xlu0 %v2043, 112
        %v2522 = vpop.permute.xlu0 %2521
        %2523 = vrot.lane.b32.xlu0 %v2035, 80
        %v2524 = vpop.permute.xlu0 %2523
        %v2525 = vsel %vm750, %v2522, 0
        %v2527 = vsel %vm750, %v2524, 0
        %2529 = vmatprep.subr.mxu0 0.0
        %2530 = vmatpush1.xpose.msra.mxu0 0.0
        %2531 = vmatprep.subr.mxu0 0.0
        %2532 = vmatpush1.xpose.msra.mxu0 0.0
        %2533 = vmatprep.subr.mxu0 0.0
        %2534 = vmatpush1.xpose.msra.mxu0 0.0
        %2535 = vmatprep.subr.mxu0 0.0
        %2536 = vmatpush1.xpose.msra.mxu0 0.0
        %2537 = vmatprep.subr.mxu0 0.0
        %2538 = vmatpush1.xpose.msra.mxu0 0.0
        %2539 = vmatprep.subr.mxu0 0.0
        %2540 = vmatpush1.xpose.msra.mxu0 0.0
        %2541 = vmatprep.subr.mxu0 0.0
        %2542 = vmatpush1.xpose.msra.mxu0 0.0
        %2543 = vmatprep.subr.mxu0 0.0
        %2544 = vmatpush1.xpose.msra.mxu0 0.0
        %2545 = vmatprep.subr.mxu0 0.0
        %2546 = vmatpush1.xpose.msra.mxu0 0.0
        %2547 = vmatprep.subr.mxu0 0.0
        %2548 = vmatpush1.xpose.msra.mxu0 0.0
        %2549 = vmatprep.subr.mxu0 0.0
        %2550 = vmatpush1.xpose.msra.mxu0 0.0
        %2551 = vmatprep.subr.mxu0 0.0
        %2552 = vmatpush1.xpose.msra.mxu0 0.0
        %2553 = vmatprep.subr.mxu0 0.0
        %2554 = vmatpush1.xpose.msra.mxu0 0.0
        %2555 = vmatprep.subr.mxu0 0.0
        %2556 = vmatpush1.xpose.msra.mxu0 0.0
        %2557 = vmatprep.subr.mxu0 0.0
        %2558 = vmatpush1.xpose.msra.mxu0 0.0
        %2559 = vmatprep.subr.mxu0 0.0
        %2560 = vmatpush1.xpose.msra.mxu0 %v2527
        %2561 = vmatprep.subr.mxu0 0.0
        %2562 = vmatpush2.xpose.msra.mxu0 0.0
        %2563 = vmatprep.subr.mxu0 0.0
        %2564 = vmatpush2.xpose.msra.mxu0 0.0
        %2565 = vmatprep.subr.mxu0 0.0
        %2566 = vmatpush2.xpose.msra.mxu0 0.0
        %2567 = vmatprep.subr.mxu0 0.0
        %2568 = vmatpush2.xpose.msra.mxu0 0.0
        %2569 = vmatprep.subr.mxu0 0.0
        %2570 = vmatpush2.xpose.msra.mxu0 0.0
        %2571 = vmatprep.subr.mxu0 0.0
        %2572 = vmatpush2.xpose.msra.mxu0 0.0
        %2573 = vmatprep.subr.mxu0 0.0
        %2574 = vmatpush2.xpose.msra.mxu0 0.0
        %2575 = vmatprep.subr.mxu0 0.0
        %2576 = vmatpush2.xpose.msra.mxu0 0.0
        %2577 = vmatprep.subr.mxu0 0.0
        %2578 = vmatpush2.xpose.msra.mxu0 0.0
        %2579 = vmatprep.subr.mxu0 0.0
        %2580 = vmatpush2.xpose.msra.mxu0 0.0
        %2581 = vmatprep.subr.mxu0 0.0
        %2582 = vmatpush2.xpose.msra.mxu0 0.0
        %2583 = vmatprep.subr.mxu0 0.0
        %2584 = vmatpush2.xpose.msra.mxu0 0.0
        %2585 = vmatprep.subr.mxu0 0.0
        %2586 = vmatpush2.xpose.msra.mxu0 0.0
        %2587 = vmatprep.subr.mxu0 0.0
        %2588 = vmatpush2.xpose.msra.mxu0 0.0
        %2589 = vmatprep.subr.mxu0 0.0
        %2590 = vmatpush2.xpose.msra.mxu0 0.0
        %2591 = vmatprep.subr.mxu0 0.0
        %2592 = vmatpush2.xpose.msra.mxu0 0.0
        %2593 = vmatprep.mubr.f32.mxu0 0.0
        %2594 = vmatmul.mubr.f32.gmra.mxu0 %v2525
        %v2595 = vpop.f32.mrf.mxu0
        %v2596 = vadd.f32 %v651, %v2595
        %v2597 = vpop.f32.mrf.mxu0
        %2598 = vdwg.mxu0
        %v2599 = vsel %vm2122, %v2596, -inf
        %2600 = vmax.xlane.f32.xlu0 %v2599
        %v2601 = vpop.xlane.xlu0 %2600
        %v2602 = vsub.f32 %v2596, %v2601
        %v2603 = vmul.f32 %v2602, 1.442695
        %v2604 = vpow.pop %v2603
        %v2605 = vsel %vm2122, %v2604, 0.0
        %2606 = vadd.xlane.f32.xlu0 %v2605
        %v2607 = vpop.xlane.xlu0 %2606
        %v2608 = vrcp.pop %v2607
        %v2609 = vmul.f32 %v2604, %v2608
        %2610 = vrot.lane.b32.xlu0 %v2035, 48
        %v2611 = vpop.permute.xlu0 %2610
        %v2614 = vsel %vm750, %v2609, 0
        %2616 = vmatprep.subr.mxu0 0.0
        %2617 = vmatpush1.msra.mxu0 0.0
        %2618 = vmatprep.subr.mxu0 0.0
        %2619 = vmatpush1.msra.mxu0 0.0
        %2620 = vmatprep.subr.mxu0 0.0
        %2621 = vmatpush1.msra.mxu0 0.0
        %2622 = vmatprep.subr.mxu0 0.0
        %2623 = vmatpush1.msra.mxu0 0.0
        %2624 = vmatprep.subr.mxu0 0.0
        %2625 = vmatpush1.msra.mxu0 0.0
        %2626 = vmatprep.subr.mxu0 0.0
        %2627 = vmatpush1.msra.mxu0 0.0
        %2628 = vmatprep.subr.mxu0 0.0
        %2629 = vmatpush1.msra.mxu0 0.0
        %2630 = vmatprep.subr.mxu0 0.0
        %2631 = vmatpush1.msra.mxu0 0.0
        %2632 = vmatprep.subr.mxu0 0.0
        %2633 = vmatpush1.msra.mxu0 0.0
        %2634 = vmatprep.subr.mxu0 0.0
        %2635 = vmatpush1.msra.mxu0 0.0
        %2636 = vmatprep.subr.mxu0 0.0
        %2637 = vmatpush1.msra.mxu0 0.0
        %2638 = vmatprep.subr.mxu0 0.0
        %2639 = vmatpush1.msra.mxu0 0.0
        %2640 = vmatprep.subr.mxu0 0.0
        %2641 = vmatpush1.msra.mxu0 0.0
        %2642 = vmatprep.subr.mxu0 0.0
        %2643 = vmatpush1.msra.mxu0 0.0
        %2644 = vmatprep.subr.mxu0 0.0
        %2645 = vmatpush1.msra.mxu0 0.0
        %2646 = vmatprep.subr.mxu0 0.0
        %2647 = vmatpush1.msra.mxu0 %v2611
        %2648 = vmatprep.subr.mxu0 0.0
        %2649 = vmatpush2.msra.mxu0 0.0
        %2650 = vmatprep.subr.mxu0 0.0
        %2651 = vmatpush2.msra.mxu0 0.0
        %2652 = vmatprep.subr.mxu0 0.0
        %2653 = vmatpush2.msra.mxu0 0.0
        %2654 = vmatprep.subr.mxu0 0.0
        %2655 = vmatpush2.msra.mxu0 0.0
        %2656 = vmatprep.subr.mxu0 0.0
        %2657 = vmatpush2.msra.mxu0 0.0
        %2658 = vmatprep.subr.mxu0 0.0
        %2659 = vmatpush2.msra.mxu0 0.0
        %2660 = vmatprep.subr.mxu0 0.0
        %2661 = vmatpush2.msra.mxu0 0.0
        %2662 = vmatprep.subr.mxu0 0.0
        %2663 = vmatpush2.msra.mxu0 0.0
        %2664 = vmatprep.subr.mxu0 0.0
        %2665 = vmatpush2.msra.mxu0 0.0
        %2666 = vmatprep.subr.mxu0 0.0
        %2667 = vmatpush2.msra.mxu0 0.0
        %2668 = vmatprep.subr.mxu0 0.0
        %2669 = vmatpush2.msra.mxu0 0.0
        %2670 = vmatprep.subr.mxu0 0.0
        %2671 = vmatpush2.msra.mxu0 0.0
        %2672 = vmatprep.subr.mxu0 0.0
        %2673 = vmatpush2.msra.mxu0 0.0
        %2674 = vmatprep.subr.mxu0 0.0
        %2675 = vmatpush2.msra.mxu0 0.0
        %2676 = vmatprep.subr.mxu0 0.0
        %2677 = vmatpush2.msra.mxu0 0.0
        %2678 = vmatprep.subr.mxu0 0.0
        %2679 = vmatpush2.msra.mxu0 0.0
        %2680 = vmatprep.mubr.f32.mxu0 0.0
        %2681 = vmatmul.mubr.f32.gmra.mxu0 %v2614
        %v2682 = vpop.f32.mrf.mxu0
        %v2683 = vadd.f32 0.0, %v2682
        %v2684 = vpop.f32.mrf.mxu0
        %2685 = vdwg.mxu0
        %v2687 = vsel %vm750, %v2683, 0
        %2689 = vmatprep.subr.mxu0 0.0
        %2690 = vmatpush1.msra.mxu0 0.0
        %2691 = vmatprep.subr.mxu0 0.0
        %2692 = vmatpush1.msra.mxu0 0.0
        %2693 = vmatprep.subr.mxu0 0.0
        %2694 = vmatpush1.msra.mxu0 0.0
        %2695 = vmatprep.subr.mxu0 0.0
        %2696 = vmatpush1.msra.mxu0 0.0
        %2697 = vmatprep.subr.mxu0 0.0
        %2698 = vmatpush1.msra.mxu0 0.0
        %2699 = vmatprep.subr.mxu0 0.0
        %2700 = vmatpush1.msra.mxu0 0.0
        %2701 = vmatprep.subr.mxu0 0.0
        %2702 = vmatpush1.msra.mxu0 0.0
        %2703 = vmatprep.subr.mxu0 0.0
        %2704 = vmatpush1.msra.mxu0 0.0
        %2705 = vmatprep.subr.mxu0 0.0
        %2706 = vmatpush1.msra.mxu0 0.0
        %2707 = vmatprep.subr.mxu0 0.0
        %2708 = vmatpush1.msra.mxu0 0.0
        %2709 = vmatprep.subr.mxu0 0.0
        %2710 = vmatpush1.msra.mxu0 0.0
        %2711 = vmatprep.subr.mxu0 0.0
        %2712 = vmatpush1.msra.mxu0 0.0
        %2713 = vmatprep.subr.mxu0 0.0
        %2714 = vmatpush1.msra.mxu0 0.0
        %2715 = vmatprep.subr.mxu0 0.0
        %2716 = vmatpush1.msra.mxu0 0.0
        %2717 = vmatprep.subr.mxu0 0.0
        %2718 = vmatpush1.msra.mxu0 0.0
        %2719 = vmatprep.subr.mxu0 0.0
        %2720 = vmatpush1.msra.mxu0 %v2041
        %2721 = vmatprep.subr.mxu0 0.0
        %2722 = vmatpush2.msra.mxu0 0.0
        %2723 = vmatprep.subr.mxu0 0.0
        %2724 = vmatpush2.msra.mxu0 0.0
        %2725 = vmatprep.subr.mxu0 0.0
        %2726 = vmatpush2.msra.mxu0 0.0
        %2727 = vmatprep.subr.mxu0 0.0
        %2728 = vmatpush2.msra.mxu0 0.0
        %2729 = vmatprep.subr.mxu0 0.0
        %2730 = vmatpush2.msra.mxu0 0.0
        %2731 = vmatprep.subr.mxu0 0.0
        %2732 = vmatpush2.msra.mxu0 0.0
        %2733 = vmatprep.subr.mxu0 0.0
        %2734 = vmatpush2.msra.mxu0 0.0
        %2735 = vmatprep.subr.mxu0 0.0
        %2736 = vmatpush2.msra.mxu0 0.0
        %2737 = vmatprep.subr.mxu0 0.0
        %2738 = vmatpush2.msra.mxu0 0.0
        %2739 = vmatprep.subr.mxu0 0.0
        %2740 = vmatpush2.msra.mxu0 0.0
        %2741 = vmatprep.subr.mxu0 0.0
        %2742 = vmatpush2.msra.mxu0 0.0
        %2743 = vmatprep.subr.mxu0 0.0
        %2744 = vmatpush2.msra.mxu0 0.0
        %2745 = vmatprep.subr.mxu0 0.0
        %2746 = vmatpush2.msra.mxu0 0.0
        %2747 = vmatprep.subr.mxu0 0.0
        %2748 = vmatpush2.msra.mxu0 0.0
        %2749 = vmatprep.subr.mxu0 0.0
        %2750 = vmatpush2.msra.mxu0 0.0
        %2751 = vmatprep.subr.mxu0 0.0
        %2752 = vmatpush2.msra.mxu0 0.0
        %2753 = vmatprep.mubr.f32.mxu0 0.0
        %2754 = vmatmul.mubr.f32.gmra.mxu0 %v2687
        %v2755 = vpop.f32.mrf.mxu0
        %v2756 = vadd.f32 0.0, %v2755
        %v2757 = vpop.f32.mrf.mxu0
        %2758 = vdwg.mxu0
        %v2759 = vadd.f32 %v2518, %v2756
        %2760 = vrot.lane.b32.xlu0 %v2043, 104
        %v2761 = vpop.permute.xlu0 %2760
        %2762 = vrot.lane.b32.xlu0 %v2035, 72
        %v2763 = vpop.permute.xlu0 %2762
        %v2764 = vsel %vm750, %v2761, 0
        %v2766 = vsel %vm750, %v2763, 0
        %2768 = vmatprep.subr.mxu0 0.0
        %2769 = vmatpush1.xpose.msra.mxu0 0.0
        %2770 = vmatprep.subr.mxu0 0.0
        %2771 = vmatpush1.xpose.msra.mxu0 0.0
        %2772 = vmatprep.subr.mxu0 0.0
        %2773 = vmatpush1.xpose.msra.mxu0 0.0
        %2774 = vmatprep.subr.mxu0 0.0
        %2775 = vmatpush1.xpose.msra.mxu0 0.0
        %2776 = vmatprep.subr.mxu0 0.0
        %2777 = vmatpush1.xpose.msra.mxu0 0.0
        %2778 = vmatprep.subr.mxu0 0.0
        %2779 = vmatpush1.xpose.msra.mxu0 0.0
        %2780 = vmatprep.subr.mxu0 0.0
        %2781 = vmatpush1.xpose.msra.mxu0 0.0
        %2782 = vmatprep.subr.mxu0 0.0
        %2783 = vmatpush1.xpose.msra.mxu0 0.0
        %2784 = vmatprep.subr.mxu0 0.0
        %2785 = vmatpush1.xpose.msra.mxu0 0.0
        %2786 = vmatprep.subr.mxu0 0.0
        %2787 = vmatpush1.xpose.msra.mxu0 0.0
        %2788 = vmatprep.subr.mxu0 0.0
        %2789 = vmatpush1.xpose.msra.mxu0 0.0
        %2790 = vmatprep.subr.mxu0 0.0
        %2791 = vmatpush1.xpose.msra.mxu0 0.0
        %2792 = vmatprep.subr.mxu0 0.0
        %2793 = vmatpush1.xpose.msra.mxu0 0.0
        %2794 = vmatprep.subr.mxu0 0.0
        %2795 = vmatpush1.xpose.msra.mxu0 0.0
        %2796 = vmatprep.subr.mxu0 0.0
        %2797 = vmatpush1.xpose.msra.mxu0 0.0
        %2798 = vmatprep.subr.mxu0 0.0
        %2799 = vmatpush1.xpose.msra.mxu0 %v2766
        %2800 = vmatprep.subr.mxu0 0.0
        %2801 = vmatpush2.xpose.msra.mxu0 0.0
        %2802 = vmatprep.subr.mxu0 0.0
        %2803 = vmatpush2.xpose.msra.mxu0 0.0
        %2804 = vmatprep.subr.mxu0 0.0
        %2805 = vmatpush2.xpose.msra.mxu0 0.0
        %2806 = vmatprep.subr.mxu0 0.0
        %2807 = vmatpush2.xpose.msra.mxu0 0.0
        %2808 = vmatprep.subr.mxu0 0.0
        %2809 = vmatpush2.xpose.msra.mxu0 0.0
        %2810 = vmatprep.subr.mxu0 0.0
        %2811 = vmatpush2.xpose.msra.mxu0 0.0
        %2812 = vmatprep.subr.mxu0 0.0
        %2813 = vmatpush2.xpose.msra.mxu0 0.0
        %2814 = vmatprep.subr.mxu0 0.0
        %2815 = vmatpush2.xpose.msra.mxu0 0.0
        %2816 = vmatprep.subr.mxu0 0.0
        %2817 = vmatpush2.xpose.msra.mxu0 0.0
        %2818 = vmatprep.subr.mxu0 0.0
        %2819 = vmatpush2.xpose.msra.mxu0 0.0
        %2820 = vmatprep.subr.mxu0 0.0
        %2821 = vmatpush2.xpose.msra.mxu0 0.0
        %2822 = vmatprep.subr.mxu0 0.0
        %2823 = vmatpush2.xpose.msra.mxu0 0.0
        %2824 = vmatprep.subr.mxu0 0.0
        %2825 = vmatpush2.xpose.msra.mxu0 0.0
        %2826 = vmatprep.subr.mxu0 0.0
        %2827 = vmatpush2.xpose.msra.mxu0 0.0
        %2828 = vmatprep.subr.mxu0 0.0
        %2829 = vmatpush2.xpose.msra.mxu0 0.0
        %2830 = vmatprep.subr.mxu0 0.0
        %2831 = vmatpush2.xpose.msra.mxu0 0.0
        %2832 = vmatprep.mubr.f32.mxu0 0.0
        %2833 = vmatmul.mubr.f32.gmra.mxu0 %v2764
        %v2834 = vpop.f32.mrf.mxu0
        %v2835 = vadd.f32 %v651, %v2834
        %v2836 = vpop.f32.mrf.mxu0
        %2837 = vdwg.mxu0
        %v2838 = vsel %vm2122, %v2835, -inf
        %2839 = vmax.xlane.f32.xlu0 %v2838
        %v2840 = vpop.xlane.xlu0 %2839
        %v2841 = vsub.f32 %v2835, %v2840
        %v2842 = vmul.f32 %v2841, 1.442695
        %v2843 = vpow.pop %v2842
        %v2844 = vsel %vm2122, %v2843, 0.0
        %2845 = vadd.xlane.f32.xlu0 %v2844
        %v2846 = vpop.xlane.xlu0 %2845
        %v2847 = vrcp.pop %v2846
        %v2848 = vmul.f32 %v2843, %v2847
        %2849 = vrot.lane.b32.xlu0 %v2035, 40
        %v2850 = vpop.permute.xlu0 %2849
        %v2853 = vsel %vm750, %v2848, 0
        %2855 = vmatprep.subr.mxu0 0.0
        %2856 = vmatpush1.msra.mxu0 0.0
        %2857 = vmatprep.subr.mxu0 0.0
        %2858 = vmatpush1.msra.mxu0 0.0
        %2859 = vmatprep.subr.mxu0 0.0
        %2860 = vmatpush1.msra.mxu0 0.0
        %2861 = vmatprep.subr.mxu0 0.0
        %2862 = vmatpush1.msra.mxu0 0.0
        %2863 = vmatprep.subr.mxu0 0.0
        %2864 = vmatpush1.msra.mxu0 0.0
        %2865 = vmatprep.subr.mxu0 0.0
        %2866 = vmatpush1.msra.mxu0 0.0
        %2867 = vmatprep.subr.mxu0 0.0
        %2868 = vmatpush1.msra.mxu0 0.0
        %2869 = vmatprep.subr.mxu0 0.0
        %2870 = vmatpush1.msra.mxu0 0.0
        %2871 = vmatprep.subr.mxu0 0.0
        %2872 = vmatpush1.msra.mxu0 0.0
        %2873 = vmatprep.subr.mxu0 0.0
        %2874 = vmatpush1.msra.mxu0 0.0
        %2875 = vmatprep.subr.mxu0 0.0
        %2876 = vmatpush1.msra.mxu0 0.0
        %2877 = vmatprep.subr.mxu0 0.0
        %2878 = vmatpush1.msra.mxu0 0.0
        %2879 = vmatprep.subr.mxu0 0.0
        %2880 = vmatpush1.msra.mxu0 0.0
        %2881 = vmatprep.subr.mxu0 0.0
        %2882 = vmatpush1.msra.mxu0 0.0
        %2883 = vmatprep.subr.mxu0 0.0
        %2884 = vmatpush1.msra.mxu0 0.0
        %2885 = vmatprep.subr.mxu0 0.0
        %2886 = vmatpush1.msra.mxu0 %v2850
        %2887 = vmatprep.subr.mxu0 0.0
        %2888 = vmatpush2.msra.mxu0 0.0
        %2889 = vmatprep.subr.mxu0 0.0
        %2890 = vmatpush2.msra.mxu0 0.0
        %2891 = vmatprep.subr.mxu0 0.0
        %2892 = vmatpush2.msra.mxu0 0.0
        %2893 = vmatprep.subr.mxu0 0.0
        %2894 = vmatpush2.msra.mxu0 0.0
        %2895 = vmatprep.subr.mxu0 0.0
        %2896 = vmatpush2.msra.mxu0 0.0
        %2897 = vmatprep.subr.mxu0 0.0
        %2898 = vmatpush2.msra.mxu0 0.0
        %2899 = vmatprep.subr.mxu0 0.0
        %2900 = vmatpush2.msra.mxu0 0.0
        %2901 = vmatprep.subr.mxu0 0.0
        %2902 = vmatpush2.msra.mxu0 0.0
        %2903 = vmatprep.subr.mxu0 0.0
        %2904 = vmatpush2.msra.mxu0 0.0
        %2905 = vmatprep.subr.mxu0 0.0
        %2906 = vmatpush2.msra.mxu0 0.0
        %2907 = vmatprep.subr.mxu0 0.0
        %2908 = vmatpush2.msra.mxu0 0.0
        %2909 = vmatprep.subr.mxu0 0.0
        %2910 = vmatpush2.msra.mxu0 0.0
        %2911 = vmatprep.subr.mxu0 0.0
        %2912 = vmatpush2.msra.mxu0 0.0
        %2913 = vmatprep.subr.mxu0 0.0
        %2914 = vmatpush2.msra.mxu0 0.0
        %2915 = vmatprep.subr.mxu0 0.0
        %2916 = vmatpush2.msra.mxu0 0.0
        %2917 = vmatprep.subr.mxu0 0.0
        %2918 = vmatpush2.msra.mxu0 0.0
        %2919 = vmatprep.mubr.f32.mxu0 0.0
        %2920 = vmatmul.mubr.f32.gmra.mxu0 %v2853
        %v2921 = vpop.f32.mrf.mxu0
        %v2922 = vadd.f32 0.0, %v2921
        %v2923 = vpop.f32.mrf.mxu0
        %2924 = vdwg.mxu0
        %v2926 = vsel %vm750, %v2922, 0
        %2928 = vmatprep.subr.mxu0 0.0
        %2929 = vmatpush1.msra.mxu0 0.0
        %2930 = vmatprep.subr.mxu0 0.0
        %2931 = vmatpush1.msra.mxu0 0.0
        %2932 = vmatprep.subr.mxu0 0.0
        %2933 = vmatpush1.msra.mxu0 0.0
        %2934 = vmatprep.subr.mxu0 0.0
        %2935 = vmatpush1.msra.mxu0 0.0
        %2936 = vmatprep.subr.mxu0 0.0
        %2937 = vmatpush1.msra.mxu0 0.0
        %2938 = vmatprep.subr.mxu0 0.0
        %2939 = vmatpush1.msra.mxu0 0.0
        %2940 = vmatprep.subr.mxu0 0.0
        %2941 = vmatpush1.msra.mxu0 0.0
        %2942 = vmatprep.subr.mxu0 0.0
        %2943 = vmatpush1.msra.mxu0 0.0
        %2944 = vmatprep.subr.mxu0 0.0
        %2945 = vmatpush1.msra.mxu0 0.0
        %2946 = vmatprep.subr.mxu0 0.0
        %2947 = vmatpush1.msra.mxu0 0.0
        %2948 = vmatprep.subr.mxu0 0.0
        %2949 = vmatpush1.msra.mxu0 0.0
        %2950 = vmatprep.subr.mxu0 0.0
        %2951 = vmatpush1.msra.mxu0 0.0
        %2952 = vmatprep.subr.mxu0 0.0
        %2953 = vmatpush1.msra.mxu0 0.0
        %2954 = vmatprep.subr.mxu0 0.0
        %2955 = vmatpush1.msra.mxu0 0.0
        %2956 = vmatprep.subr.mxu0 0.0
        %2957 = vmatpush1.msra.mxu0 0.0
        %2958 = vmatprep.subr.mxu0 0.0
        %2959 = vmatpush1.msra.mxu0 %v2042
        %2960 = vmatprep.subr.mxu0 0.0
        %2961 = vmatpush2.msra.mxu0 0.0
        %2962 = vmatprep.subr.mxu0 0.0
        %2963 = vmatpush2.msra.mxu0 0.0
        %2964 = vmatprep.subr.mxu0 0.0
        %2965 = vmatpush2.msra.mxu0 0.0
        %2966 = vmatprep.subr.mxu0 0.0
        %2967 = vmatpush2.msra.mxu0 0.0
        %2968 = vmatprep.subr.mxu0 0.0
        %2969 = vmatpush2.msra.mxu0 0.0
        %2970 = vmatprep.subr.mxu0 0.0
        %2971 = vmatpush2.msra.mxu0 0.0
        %2972 = vmatprep.subr.mxu0 0.0
        %2973 = vmatpush2.msra.mxu0 0.0
        %2974 = vmatprep.subr.mxu0 0.0
        %2975 = vmatpush2.msra.mxu0 0.0
        %2976 = vmatprep.subr.mxu0 0.0
        %2977 = vmatpush2.msra.mxu0 0.0
        %2978 = vmatprep.subr.mxu0 0.0
        %2979 = vmatpush2.msra.mxu0 0.0
        %2980 = vmatprep.subr.mxu0 0.0
        %2981 = vmatpush2.msra.mxu0 0.0
        %2982 = vmatprep.subr.mxu0 0.0
        %2983 = vmatpush2.msra.mxu0 0.0
        %2984 = vmatprep.subr.mxu0 0.0
        %2985 = vmatpush2.msra.mxu0 0.0
        %2986 = vmatprep.subr.mxu0 0.0
        %2987 = vmatpush2.msra.mxu0 0.0
        %2988 = vmatprep.subr.mxu0 0.0
        %2989 = vmatpush2.msra.mxu0 0.0
        %2990 = vmatprep.subr.mxu0 0.0
        %2991 = vmatpush2.msra.mxu0 0.0
        %2992 = vmatprep.mubr.f32.mxu0 0.0
        %2993 = vmatmul.mubr.f32.gmra.mxu0 %v2926
        %v2994 = vpop.f32.mrf.mxu0
        %v2995 = vadd.f32 0.0, %v2994
        %v2996 = vpop.f32.mrf.mxu0
        %2997 = vdwg.mxu0
        %v2998 = vadd.f32 %v2759, %v2995
        %s2999 = scalar_lea.vmem %s8, 1
        %v3000 = vld [vmem:[%s2999] sm:$0x1]
        %v3001 = vadd.f32 %v2998, %v3000
        %v3002 = vadd.f32 %v3001, %v1951
        %s3003 = scalar_lea.vmem %s9, 1
        %v3004 = vld [vmem:[%s3003] sm:$0x1]
        %s3005 = scalar_lea.vmem %s10, 1
        %v3006 = vld [vmem:[%s3005] sm:$0x1]
        %vm3007 = vcmask 253952
        %v3008 = vsel %vm3007, %v3002, 0.0
        %3009 = vadd.xlane.f32.xlu0 %v3008
        %v3010 = vpop.xlane.xlu0 %3009
        %v3011 = vmul.f32 %v3010, %v624
        %v3012 = vsub.f32 %v3002, %v3011
        %v3013 = vmul.f32 %v3012, %v3012
        %v3014 = vsel %vm3007, %v3013, 0.0
        %3015 = vadd.xlane.f32.xlu0 %v3014
        %v3016 = vpop.xlane.xlu0 %3015
        %v3017 = vmul.f32 %v3016, %v624
        %v3018 = vadd.f32 %v3017, 1e-12
        %v3019 = vrsqrt.pop %v3018
        %v3020 = vmul.f32 %v3012, %v3019
        %v3021 = vmul.f32 %v3020, %v3004
        %v3022 = vadd.f32 %v3021, %v3006
        %s3023 = scalar_lea.vmem %s11, 32
        %v3024 = vld [vmem:[%s3023] sm:$0xff]
        %v3025 = vld [vmem:[%s3023 + $0x8] sm:$0xff]
        %v3026 = vld [vmem:[%s3023 + $0x10] sm:$0xff]
        %v3027 = vld [vmem:[%s3023 + $0x18] sm:$0xff]
        %s3028 = scalar_lea.vmem %s12, 1
        %v3029 = vld [vmem:[%s3028] sm:$0x1]
        %v3031 = vsel %vm620, %v3022, 0
        %3033 = vmatprep.subr.mxu0 0.0
        %3034 = vmatpush1.msra.mxu0 0.0
        %3035 = vmatprep.subr.mxu0 0.0
        %3036 = vmatpush1.msra.mxu0 0.0
        %3037 = vmatprep.subr.mxu0 0.0
        %3038 = vmatpush1.msra.mxu0 0.0
        %3039 = vmatprep.subr.mxu0 0.0
        %3040 = vmatpush1.msra.mxu0 0.0
        %3041 = vmatprep.subr.mxu0 0.0
        %3042 = vmatpush1.msra.mxu0 0.0
        %3043 = vmatprep.subr.mxu0 0.0
        %3044 = vmatpush1.msra.mxu0 0.0
        %3045 = vmatprep.subr.mxu0 0.0
        %3046 = vmatpush1.msra.mxu0 0.0
        %3047 = vmatprep.subr.mxu0 0.0
        %3048 = vmatpush1.msra.mxu0 0.0
        %3049 = vmatprep.subr.mxu0 0.0
        %3050 = vmatpush1.msra.mxu0 0.0
        %3051 = vmatprep.subr.mxu0 0.0
        %3052 = vmatpush1.msra.mxu0 0.0
        %3053 = vmatprep.subr.mxu0 0.0
        %3054 = vmatpush1.msra.mxu0 0.0
        %3055 = vmatprep.subr.mxu0 0.0
        %3056 = vmatpush1.msra.mxu0 0.0
        %3057 = vmatprep.subr.mxu0 0.0
        %3058 = vmatpush1.msra.mxu0 %v3027
        %3059 = vmatprep.subr.mxu0 0.0
        %3060 = vmatpush1.msra.mxu0 %v3026
        %3061 = vmatprep.subr.mxu0 0.0
        %3062 = vmatpush1.msra.mxu0 %v3025
        %3063 = vmatprep.subr.mxu0 0.0
        %3064 = vmatpush1.msra.mxu0 %v3024
        %3065 = vmatprep.subr.mxu0 0.0
        %3066 = vmatpush2.msra.mxu0 0.0
        %3067 = vmatprep.subr.mxu0 0.0
        %3068 = vmatpush2.msra.mxu0 0.0
        %3069 = vmatprep.subr.mxu0 0.0
        %3070 = vmatpush2.msra.mxu0 0.0
        %3071 = vmatprep.subr.mxu0 0.0
        %3072 = vmatpush2.msra.mxu0 0.0
        %3073 = vmatprep.subr.mxu0 0.0
        %3074 = vmatpush2.msra.mxu0 0.0
        %3075 = vmatprep.subr.mxu0 0.0
        %3076 = vmatpush2.msra.mxu0 0.0
        %3077 = vmatprep.subr.mxu0 0.0
        %3078 = vmatpush2.msra.mxu0 0.0
        %3079 = vmatprep.subr.mxu0 0.0
        %3080 = vmatpush2.msra.mxu0 0.0
        %3081 = vmatprep.subr.mxu0 0.0
        %3082 = vmatpush2.msra.mxu0 0.0
        %3083 = vmatprep.subr.mxu0 0.0
        %3084 = vmatpush2.msra.mxu0 0.0
        %3085 = vmatprep.subr.mxu0 0.0
        %3086 = vmatpush2.msra.mxu0 0.0
        %3087 = vmatprep.subr.mxu0 0.0
        %3088 = vmatpush2.msra.mxu0 0.0
        %3089 = vmatprep.subr.mxu0 0.0
        %3090 = vmatpush2.msra.mxu0 0.0
        %3091 = vmatprep.subr.mxu0 0.0
        %3092 = vmatpush2.msra.mxu0 0.0
        %3093 = vmatprep.subr.mxu0 0.0
        %3094 = vmatpush2.msra.mxu0 0.0
        %3095 = vmatprep.subr.mxu0 0.0
        %3096 = vmatpush2.msra.mxu0 0.0
        %3097 = vmatprep.mubr.f32.mxu0 0.0
        %3098 = vmatmul.mubr.f32.gmra.mxu0 %v3031
        %v3099 = vpop.f32.mrf.mxu0
        %v3100 = vadd.f32 %v3029, %v3099
        %v3101 = vpop.f32.mrf.mxu0
        %3102 = vdwg.mxu0
        %v3103 = vmul.f32 %v3100, 0.5
        %v3104 = vmul.f32 %v3100, 0.044715
        %v3105 = vmul.f32 %v3104, %v3100
        %v3106 = vmul.f32 %v3105, %v3100
        %v3107 = vadd.f32 %v3100, %v3106
        %v3108 = vmul.f32 %v3107, 0.7978846
        %v3109 = vtanh.pop %v3108
        %v3110 = vadd.f32 %v3109, 1.0
        %v3111 = vmul.f32 %v3103, %v3110
        %s3112 = scalar_lea.vmem %s13, 64
        %v3113 = vld [vmem:[%s3112] sm:$0xff]
        %v3114 = vld [vmem:[%s3112 + $0x8] sm:$0xff]
        %v3115 = vld [vmem:[%s3112 + $0x10] sm:$0xff]
        %v3116 = vld [vmem:[%s3112 + $0x18] sm:$0xff]
        %v3117 = vld [vmem:[%s3112 + $0x20] sm:$0xff]
        %v3118 = vld [vmem:[%s3112 + $0x28] sm:$0xff]
        %v3119 = vld [vmem:[%s3112 + $0x30] sm:$0xff]
        %v3120 = vld [vmem:[%s3112 + $0x38] sm:$0xff]
        %s3121 = scalar_lea.vmem %s14, 1
        %v3122 = vld [vmem:[%s3121] sm:$0x1]
        %v3124 = vsel %vm1848, %v3111, 0
        %3126 = vmatprep.subr.mxu0 0.0
        %3127 = vmatpush1.msra.mxu0 0.0
        %3128 = vmatprep.subr.mxu0 0.0
        %3129 = vmatpush1.msra.mxu0 0.0
        %3130 = vmatprep.subr.mxu0 0.0
        %3131 = vmatpush1.msra.mxu0 0.0
        %3132 = vmatprep.subr.mxu0 0.0
        %3133 = vmatpush1.msra.mxu0 0.0
        %3134 = vmatprep.subr.mxu0 0.0
        %3135 = vmatpush1.msra.mxu0 0.0
        %3136 = vmatprep.subr.mxu0 0.0
        %3137 = vmatpush1.msra.mxu0 0.0
        %3138 = vmatprep.subr.mxu0 0.0
        %3139 = vmatpush1.msra.mxu0 0.0
        %3140 = vmatprep.subr.mxu0 0.0
        %3141 = vmatpush1.msra.mxu0 0.0
        %3142 = vmatprep.subr.mxu0 0.0
        %3143 = vmatpush1.msra.mxu0 %v3120
        %3144 = vmatprep.subr.mxu0 0.0
        %3145 = vmatpush1.msra.mxu0 %v3119
        %3146 = vmatprep.subr.mxu0 0.0
        %3147 = vmatpush1.msra.mxu0 %v3118
        %3148 = vmatprep.subr.mxu0 0.0
        %3149 = vmatpush1.msra.mxu0 %v3117
        %3150 = vmatprep.subr.mxu0 0.0
        %3151 = vmatpush1.msra.mxu0 %v3116
        %3152 = vmatprep.subr.mxu0 0.0
        %3153 = vmatpush1.msra.mxu0 %v3115
        %3154 = vmatprep.subr.mxu0 0.0
        %3155 = vmatpush1.msra.mxu0 %v3114
        %3156 = vmatprep.subr.mxu0 0.0
        %3157 = vmatpush1.msra.mxu0 %v3113
        %3158 = vmatprep.subr.mxu0 0.0
        %3159 = vmatpush2.msra.mxu0 0.0
        %3160 = vmatprep.subr.mxu0 0.0
        %3161 = vmatpush2.msra.mxu0 0.0
        %3162 = vmatprep.subr.mxu0 0.0
        %3163 = vmatpush2.msra.mxu0 0.0
        %3164 = vmatprep.subr.mxu0 0.0
        %3165 = vmatpush2.msra.mxu0 0.0
        %3166 = vmatprep.subr.mxu0 0.0
        %3167 = vmatpush2.msra.mxu0 0.0
        %3168 = vmatprep.subr.mxu0 0.0
        %3169 = vmatpush2.msra.mxu0 0.0
        %3170 = vmatprep.subr.mxu0 0.0
        %3171 = vmatpush2.msra.mxu0 0.0
        %3172 = vmatprep.subr.mxu0 0.0
        %3173 = vmatpush2.msra.mxu0 0.0
        %3174 = vmatprep.subr.mxu0 0.0
        %3175 = vmatpush2.msra.mxu0 0.0
        %3176 = vmatprep.subr.mxu0 0.0
        %3177 = vmatpush2.msra.mxu0 0.0
        %3178 = vmatprep.subr.mxu0 0.0
        %3179 = vmatpush2.msra.mxu0 0.0
        %3180 = vmatprep.subr.mxu0 0.0
        %3181 = vmatpush2.msra.mxu0 0.0
        %3182 = vmatprep.subr.mxu0 0.0
        %3183 = vmatpush2.msra.mxu0 0.0
        %3184 = vmatprep.subr.mxu0 0.0
        %3185 = vmatpush2.msra.mxu0 0.0
        %3186 = vmatprep.subr.mxu0 0.0
        %3187 = vmatpush2.msra.mxu0 0.0
        %3188 = vmatprep.subr.mxu0 0.0
        %3189 = vmatpush2.msra.mxu0 0.0
        %3190 = vmatprep.mubr.f32.mxu0 0.0
        %3191 = vmatmul.mubr.f32.gmra.mxu0 %v3124
        %v3192 = vpop.f32.mrf.mxu0
        %v3193 = vadd.f32 %v3122, %v3192
        %v3194 = vpop.f32.mrf.mxu0
        %3195 = vdwg.mxu0
        %v3196 = vadd.f32 %v3193, %v3022
        %s3197 = scalar_lea.vmem %s15, 1
        %v3198 = vld [vmem:[%s3197] sm:$0x1]
        %s3199 = scalar_lea.vmem %s16, 1
        %v3200 = vld [vmem:[%s3199] sm:$0x1]
        %v3201 = vsel %vm3007, %v3196, 0.0
        %3202 = vadd.xlane.f32.xlu0 %v3201
        %v3203 = vpop.xlane.xlu0 %3202
        %v3204 = vmul.f32 %v3203, %v624
        %v3205 = vsub.f32 %v3196, %v3204
        %v3206 = vmul.f32 %v3205, %v3205
        %v3207 = vsel %vm3007, %v3206, 0.0
        %3208 = vadd.xlane.f32.xlu0 %v3207
        %v3209 = vpop.xlane.xlu0 %3208
        %v3210 = vmul.f32 %v3209, %v624
        %v3211 = vadd.f32 %v3210, 1e-12
        %v3212 = vrsqrt.pop %v3211
        %v3213 = vmul.f32 %v3205, %v3212
        %v3214 = vmul.f32 %v3213, %v3198
        %v3215 = vadd.f32 %v3214, %v3200
        %3216 = vst.msk [vmem:[%s611] sm:$0x1] %vm3007, %v3215
        %s3217 = sand.u32 %s411, 1
        %s3218 = scalar_lea.sflag [#allocation4], %s3217
        %s3219 = sand.u32 %s411, 1
        %s3220 = scalar_lea.vmem [#allocation10], %s3219
        // Predicated region
        $region105: #{tpu_custom_call.1} parent=87 // pred_check
          %p3221 = pneg %p421
        $region106: #{tpu_custom_call.1} parent=87 // pred_check_branch
          %3223 = sbr.rel (%p3221) target = $region108
        $region107: #{tpu_custom_call.1} parent=87 // pred_region
          %s3225 = ssub.s32 16, 16
          %3226 = vsyncadd %s3218, %s3225
          %s3227 = smul.addr %s36, 16
          %s3228 = scalar_lea.hbm %s17, %s3227
          %s3230 = sshll.u32 %s3220, 4
          %s3231 = int_to_ptr.vmem [resolvable:$true] %s3230
          %3233 = dma.vmem_to_hbm [thread:$0]  %s3231, 16, %s3228, %s3218
        $region108: #{tpu_custom_call.1} parent=87 // pred_fallthru
          _
      $region88: #{tpu_custom_call.1} parent=5 // pred_fallthru
        _
      %p3234 = scmp.le.s32.totalorder 2, %s31
      // Predicated region
      $region109: #{tpu_custom_call.1} parent=5 // pred_check
        %p3235 = pneg %p3234
      $region110: #{tpu_custom_call.1} parent=5 // pred_check_branch
        %3237 = sbr.rel (%p3235) target = $region112
      $region111: #{tpu_custom_call.1} parent=5 // pred_region
        %s3238 = ssub.s32 %s31, 2
        // Predicated region
        $region113: #{tpu_custom_call.1} parent=111 // pred_check
          %p3239 = pneg %p427
        $region114: #{tpu_custom_call.1} parent=111 // pred_check_branch
          %3241 = sbr.rel (%p3239) target = $region116
        $region115: #{tpu_custom_call.1} parent=111 // pred_region
          %s3242 = sand.u32 %s412, 1
          %s3243 = scalar_lea.sflag [#allocation4], %s3242
          %s3244 = sand.u32 %s412, 1
          %s3245 = scalar_lea.vmem [#allocation10], %s3244
          %3246 = dma.done %s3243, 16
        $region116: #{tpu_custom_call.1} parent=111 // pred_fallthru
          _
      $region112: #{tpu_custom_call.1} parent=5 // pred_fallthru
        _
    $region6: #{tpu_custom_call.1} parent=1 // loop_footer
      %s35 = sadd.s32 1, %s31
    $region7: #{tpu_custom_call.1} parent=1 // loop_footer_branch
      %30 = sbr.rel target = $region3
    $region8: #{tpu_custom_call.1} parent=1 // loop_exit
      _
    %3247 = vsyncpa [#allocation3], 1
    %s3248 = scalar_lea.sflag [#allocation3], 1
    %3249 = vsyncpa %s3248, 1
    %3250 = vsyncpa [#allocation6], 1
    %3251 = vsyncpa [#allocation9], 1
    %3252 = vsyncpa [#allocation4], 1
    %s3253 = scalar_lea.sflag [#allocation4], 1
    %3254 = vsyncpa %s3253, 1

</llo_original>
